<compile_context>
chip_gen: v5e
topology: v5e:2x2
jax: 0.10.0
libtpu: 0.0.40
codegen_flags: <defaults>
</compile_context>

<pallas_src>
import jax
import jax.numpy as jnp
from jax.experimental import pallas as pl
from jax.experimental.pallas import tpu as pltpu


# ----------------------------------------------------------------------------- helpers
def _round_up(x, m):
    return ((x + m - 1) // m) * m


def _pick_tile(dim, align, cap):
    """Largest multiple of `align` that divides `dim` and is <= cap."""
    if dim <= align:
        return dim
    t = min(dim, cap)
    t -= t % align
    while t > align:
        if dim % t == 0:
            return t
        t -= align
    return align


def _pad_gate_weight(w, H, Hp, kp=None):
    """PyTorch (3H, K) gate-stacked weight -> (K or Kp, 3*Hp), gate-blocked and
    lane-padded so gate g occupies columns [g*Hp, (g+1)*Hp)."""
    K = w.shape[1]
    wg = w.reshape(3, H, K)
    wg = jnp.pad(wg, ((0, 0), (0, Hp - H), (0, 0)))          # (3, Hp, K)
    out = jnp.transpose(wg, (2, 0, 1)).reshape(K, 3 * Hp)    # (K, 3Hp)
    if kp is not None and kp > K:
        out = jnp.pad(out, ((0, kp - K), (0, 0)))
    return out


def _pad_gate_bias(b, H, Hp):
    bg = b.reshape(3, H)
    bg = jnp.pad(bg, ((0, 0), (0, Hp - H)))
    return bg.reshape(1, 3 * Hp)


# ----------------------------------------------------------------------------- kernels
def _matmul_bias_kernel(a_ref, w_ref, bias_ref, o_ref):
    """o = a @ w + bias, one (tm, tn) output tile per grid step (K resident)."""
    o_ref[...] = (jnp.dot(a_ref[...], w_ref[...],
                          preferred_element_type=jnp.float32)
                  + bias_ref[...]).astype(o_ref.dtype)


def _matmul_bias(a, w, bias, *, tm_cap=256, tn_cap=512):
    """a (M, K) @ w (K, N) + bias (1, N); M % 8 == 0 and N % 128 == 0."""
    M, K = a.shape
    _, N = w.shape
    tm = _pick_tile(M, 8, tm_cap)
    tn = _pick_tile(N, 128, tn_cap)
    return pl.pallas_call(
        _matmul_bias_kernel,
        out_shape=jax.ShapeDtypeStruct((M, N), jnp.float32),
        grid=(M // tm, N // tn),
        in_specs=[
            pl.BlockSpec((tm, K), lambda i, j: (i, 0)),
            pl.BlockSpec((K, tn), lambda i, j: (0, j)),
            pl.BlockSpec((1, tn), lambda i, j: (0, j)),
        ],
        out_specs=pl.BlockSpec((tm, tn), lambda i, j: (i, j)),
        compiler_params=pltpu.CompilerParams(
            dimension_semantics=("parallel", "parallel"),
            vmem_limit_bytes=32 * 1024 * 1024),
    )(a, w, bias)


def _gru_recurrence_kernel(h0_ref, gi_ref, whh_ref, bhh_ref, hseq_ref, h_scr):
    """One (batch-tile, time-tile) step of the GRU recurrence.

    h0_ref:   (tB, Hp)        initial hidden for this batch tile
    gi_ref:   (tB, TA, 3Hp)   precomputed input-side gates (W_ih x + b_ih)
    whh_ref:  (Hp, 3Hp)       gate-blocked recurrent weight (VMEM resident)
    bhh_ref:  (1, 3Hp)
    hseq_ref: (tB, TA, Hp)    hidden state for every step of this tile (output)
    h_scr:    (tB, Hp)        hidden-state carry across time tiles (scratch)
    """
    @pl.when(pl.program_id(1) == 0)
    def _():
        h_scr[...] = h0_ref[...]

    h = h_scr[...]
    whh = whh_ref[...]
    tB, Hp = h.shape
    TA = gi_ref.shape[1]
    # Hoist the bias broadcast out of the unrolled time loop (no CSE in-loop).
    bhh = jnp.broadcast_to(bhh_ref[...], (tB, bhh_ref.shape[1]))

    # Fully unrolled short time loop (TA = 8): only the (tB,Hp)x(Hp,3Hp) matmul
    # and gate math remain on the serial chain; slices are lane-aligned.
    for k in range(TA):
        gi = gi_ref[:, k, :]                                     # (tB, 3Hp)
        gh = jnp.dot(h, whh, preferred_element_type=jnp.float32) + bhh
        r = jax.nn.sigmoid(gi[:, 0:Hp] + gh[:, 0:Hp])
        z = jax.nn.sigmoid(gi[:, Hp:2 * Hp] + gh[:, Hp:2 * Hp])
        n = jnp.tanh(gi[:, 2 * Hp:3 * Hp] + r * gh[:, 2 * Hp:3 * Hp])
        h = (1.0 - z) * n + z * h
        hseq_ref[:, k, :] = h

    h_scr[...] = h


def _gru_recurrence(gi, h0, whh_g, bhh_g, *, time_tile=8, tb_cap=128):
    Bp, Ap, G3 = gi.shape
    Hp = h0.shape[1]
    tB = _pick_tile(Bp, 8, tb_cap)
    TA = time_tile
    return pl.pallas_call(
        _gru_recurrence_kernel,
        out_shape=jax.ShapeDtypeStruct((Bp, Ap, Hp), jnp.float32),
        grid=(Bp // tB, Ap // TA),
        in_specs=[
            pl.BlockSpec((tB, Hp), lambda b, t: (b, 0)),
            pl.BlockSpec((tB, TA, G3), lambda b, t: (b, t, 0)),
            pl.BlockSpec((Hp, G3), lambda b, t: (0, 0)),
            pl.BlockSpec((1, G3), lambda b, t: (0, 0)),
        ],
        out_specs=pl.BlockSpec((tB, TA, Hp), lambda b, t: (b, t, 0)),
        scratch_shapes=[pltpu.VMEM((tB, Hp), jnp.float32)],
        compiler_params=pltpu.CompilerParams(
            dimension_semantics=("parallel", "arbitrary"),
            vmem_limit_bytes=32 * 1024 * 1024),
    )(h0, gi, whh_g, bhh_g)


# ----------------------------------------------------------------------------- forward
def gru4rec_forward(x, hidden, params):
    """x: (B, A) int32 item ids; hidden: (1, B, H) f32.
    Returns (out, hidden_next): out (B, A, num_items+1), hidden_next (1, B, H)."""
    emb_table = params["emb"]                         # (num_items+1, E)
    wih, whh = params["wih"], params["whh"]           # (3H, E), (3H, H)
    bih, bhh = params["bih"], params["bhh"]           # (3H,), (3H,)
    wlin, blin = params["wlin"], params["blin"]       # (O, H), (O,)

    B, A = x.shape
    E = emb_table.shape[1]
    H = whh.shape[1]
    O = wlin.shape[0]

    TA = 8                                            # time tile (sublane aligned)
    Bp = _round_up(B, 8)
    Ap = _round_up(A, TA)
    Hp = _round_up(H, 128)
    Op = _round_up(O, 128)

    # Gate-blocked, lane-padded weights (gate slices become lane-aligned).
    wih_g = _pad_gate_weight(wih, H, Hp)              # (E, 3Hp)
    whh_g = _pad_gate_weight(whh, H, Hp, kp=Hp)       # (Hp, 3Hp)
    bih_g = _pad_gate_bias(bih, H, Hp)                # (1, 3Hp)
    bhh_g = _pad_gate_bias(bhh, H, Hp)                # (1, 3Hp)
    wlin_p = jnp.pad(wlin.T, ((0, Hp - H), (0, Op - O)))   # (Hp, Op) lane-dense
    blin_p = jnp.pad(blin, (0, Op - O)).reshape(1, Op)

    # Embedding gather (batch-major) + batch/time padding.
    emb_x = jnp.take(emb_table, x, axis=0)                           # (B, A, E)
    emb_x = jnp.pad(emb_x, ((0, Bp - B), (0, Ap - A), (0, 0)))       # (Bp, Ap, E)

    # Phase 1: input projection hoisted out of the recurrence (one big matmul).
    gi = _matmul_bias(emb_x.reshape(Bp * Ap, E), wih_g, bih_g)
    gi = gi.reshape(Bp, Ap, 3 * Hp)

    # Phase 2: serial GRU recurrence, streamed over (batch, time) tiles.
    h0 = jnp.pad(hidden[0].astype(jnp.float32), ((0, Bp - B), (0, Hp - H)))
    hseq = _gru_recurrence(gi, h0, whh_g, bhh_g, time_tile=TA)       # (Bp, Ap, Hp)

    # Phase 3: output projection, tiled rows x lane-dense vocab tiles.
    scores = _matmul_bias(hseq.reshape(Bp * Ap, Hp), wlin_p, blin_p)
    scores = scores.reshape(Bp, Ap, Op)

    out = scores[:B, :A, :O]                          # (B, A, O) batch-major
    h_next = hseq[:B, A - 1, :H][None]                # (1, B, H) at the real last step
    return out, h_next


# ----------------------------------------------------------------------------- reference
def gru4rec_reference(x, hidden, params):
    """Pure-JAX reference mirroring PyTorch nn.GRU + nn.Linear semantics."""
    emb_x = jnp.take(params["emb"], x, axis=0)        # (B, A, E)
    wih, whh, bih, bhh = params["wih"], params["whh"], params["bih"], params["bhh"]
    H = whh.shape[1]
    h = hidden[0]
    outs = []
    for t in range(x.shape[1]):
        x_t = emb_x[:, t, :]
        gi = x_t @ wih.T + bih
        gh = h @ whh.T + bhh
        r = jax.nn.sigmoid(gi[:, :H] + gh[:, :H])
        z = jax.nn.sigmoid(gi[:, H:2 * H] + gh[:, H:2 * H])
        n = jnp.tanh(gi[:, 2 * H:] + r * gh[:, 2 * H:])
        h = (1.0 - z) * n + z * h
        outs.append(h)
    rnn_x = jnp.stack(outs, axis=1)                   # (B, A, H)
    out = rnn_x @ params["wlin"].T + params["blin"]
    return out, h[None]


def init_params(key, num_items, hidden_size, num_components, pad_token):
    """uniform(-0.01, 0.01) init matching init_weights() (use_correct_weight_init
    = False); embedding row pad_token zeroed."""
    initrange = 0.01
    ks = jax.random.split(key, 7)
    O = num_items + 1
    emb = jax.random.uniform(ks[0], (O, num_components), jnp.float32,
                             -initrange, initrange)
    emb = emb.at[pad_token].set(0.0)
    wih = jax.random.uniform(ks[1], (3 * hidden_size, num_components), jnp.float32,
                             -initrange, initrange)
    whh = jax.random.uniform(ks[2], (3 * hidden_size, hidden_size), jnp.float32,
                             -initrange, initrange)
    bih = jax.random.uniform(ks[3], (3 * hidden_size,), jnp.float32,
                             -initrange, initrange)
    bhh = jax.random.uniform(ks[4], (3 * hidden_size,), jnp.float32,
                             -initrange, initrange)
    wlin = jax.random.uniform(ks[5], (O, hidden_size), jnp.float32,
                              -initrange, initrange)
    blin = jax.random.uniform(ks[6], (O,), jnp.float32, -initrange, initrange)
    return dict(emb=emb, wih=wih, whh=whh, bih=bih, bhh=bhh, wlin=wlin, blin=blin)


if __name__ == "__main__":
    num_items = 100
    hidden_size = 32
    num_components = 32
    pad_token = num_items                 # index num_items is the pad row
    B, A = 4, 8

    key = jax.random.PRNGKey(0)
    k_param, k_x = jax.random.split(key)
    params = init_params(k_param, num_items, hidden_size, num_components, pad_token)

    # item ids in [0, num_items) -> no pad tokens present (see TODO above).
    x = jax.random.randint(k_x, (B, A), 0, num_items, dtype=jnp.int32)
    hidden = jnp.zeros((1, B, hidden_size), jnp.float32)   # init_hidden(batch)

    fwd = jax.jit(gru4rec_forward)
    out, h_next = fwd(x, hidden, params)
    out = jax.block_until_ready(out)
    h_next = jax.block_until_ready(h_next)

    out_ref, h_ref = gru4rec_reference(x, hidden, params)
    assert out.shape == (B, A, num_items + 1)
    assert h_next.shape == (1, B, hidden_size)
    assert jnp.allclose(out, out_ref, atol=1e-5, rtol=1e-4), \
        float(jnp.max(jnp.abs(out - out_ref)))
    assert jnp.allclose(h_next, h_ref, atol=1e-5, rtol=1e-4), \
        float(jnp.max(jnp.abs(h_next - h_ref)))

    print("KERNEL_OK")
</pallas_src>

<mosaic_0001>
module attributes {stable_mosaic.version = 11 : i64} {
  func.func @_matmul_bias_kernel(%arg0: i32, %arg1: i32, %arg2: memref<64x128xf32, #tpu.memory_space<vmem>>, %arg3: memref<128x128xf32, #tpu.memory_space<vmem>>, %arg4: memref<1x128xf32, #tpu.memory_space<vmem>>, %arg5: memref<64x128xf32, #tpu.memory_space<vmem>>) attributes {dimension_semantics = [#tpu.dimension_semantics<parallel>, #tpu.dimension_semantics<parallel>], iteration_bounds = array<i64: 1, 1>, scalar_prefetch = 0 : i64, scratch_operands = 0 : i64, tpu.core_type = #tpu.core_type<tc>, window_params = [{transform_indices = @transform_0, window_bounds = array<i64: 64, 128>}, {transform_indices = @transform_1, window_bounds = array<i64: 128, 128>}, {transform_indices = @transform_2, window_bounds = array<i64: 1, 128>}, {transform_indices = @transform_3, window_bounds = array<i64: 64, 128>}]} {
    %c0 = arith.constant 0 : index
    %c0_0 = arith.constant 0 : index
    %0 = vector.load %arg2[%c0, %c0_0] : memref<64x128xf32, #tpu.memory_space<vmem>>, vector<64x128xf32>
    %c0_1 = arith.constant 0 : index
    %c0_2 = arith.constant 0 : index
    %1 = vector.load %arg3[%c0_1, %c0_2] : memref<128x128xf32, #tpu.memory_space<vmem>>, vector<128x128xf32>
    %cst = arith.constant dense<0.000000e+00> : vector<64x128xf32>
    %2 = tpu.matmul %0, %1, %cst {dimension_numbers = #tpu.dot_dimension_numbers<[1], [0], [0], [1], [0, 0, 1, 1], [], []>} : vector<64x128xf32>, vector<128x128xf32>, vector<64x128xf32> -> vector<64x128xf32>
    %c0_3 = arith.constant 0 : index
    %c0_4 = arith.constant 0 : index
    %3 = vector.load %arg4[%c0_3, %c0_4] : memref<1x128xf32, #tpu.memory_space<vmem>>, vector<1x128xf32>
    %4 = vector.broadcast %3 : vector<1x128xf32> to vector<64x128xf32>
    %5 = arith.addf %2, %4 : vector<64x128xf32>
    %c0_5 = arith.constant 0 : index
    %c0_6 = arith.constant 0 : index
    %6 = vector.load %arg5[%c0_5, %c0_6] : memref<64x128xf32, #tpu.memory_space<vmem>>, vector<64x128xf32>
    tpu.vector_store %arg5[%c0_5, %c0_6], %5 {strides = array<i32>} : memref<64x128xf32, #tpu.memory_space<vmem>>, vector<64x128xf32>,
    return
  }
  func.func @transform_0(%arg0: i32, %arg1: i32) -> (i32, i32) {
    %c0_i32 = arith.constant 0 : i32
    %c0_i32_0 = arith.constant 0 : i32
    return %arg0, %c0_i32 : i32, i32
  }
  func.func @transform_1(%arg0: i32, %arg1: i32) -> (i32, i32) {
    %c0_i32 = arith.constant 0 : i32
    %c0_i32_0 = arith.constant 0 : i32
    return %c0_i32, %arg1 : i32, i32
  }
  func.func @transform_2(%arg0: i32, %arg1: i32) -> (i32, i32) {
    %c0_i32 = arith.constant 0 : i32
    %c0_i32_0 = arith.constant 0 : i32
    return %c0_i32, %arg1 : i32, i32
  }
  func.func @transform_3(%arg0: i32, %arg1: i32) -> (i32, i32) {
    %c0_i32 = arith.constant 0 : i32
    return %arg0, %arg1 : i32, i32
  }
}

module attributes {stable_mosaic.version = 11 : i64} {
  func.func @_matmul_bias_kernel(%arg0: i32, %arg1: i32, %arg2: memref<64x32xf32, #tpu.memory_space<vmem>>, %arg3: memref<32x384xf32, #tpu.memory_space<vmem>>, %arg4: memref<1x384xf32, #tpu.memory_space<vmem>>, %arg5: memref<64x384xf32, #tpu.memory_space<vmem>>) attributes {dimension_semantics = [#tpu.dimension_semantics<parallel>, #tpu.dimension_semantics<parallel>], iteration_bounds = array<i64: 1, 1>, scalar_prefetch = 0 : i64, scratch_operands = 0 : i64, tpu.core_type = #tpu.core_type<tc>, window_params = [{transform_indices = @transform_0, window_bounds = array<i64: 64, 32>}, {transform_indices = @transform_1, window_bounds = array<i64: 32, 384>}, {transform_indices = @transform_2, window_bounds = array<i64: 1, 384>}, {transform_indices = @transform_3, window_bounds = array<i64: 64, 384>}]} {
    %c0 = arith.constant 0 : index
    %c0_0 = arith.constant 0 : index
    %0 = vector.load %arg2[%c0, %c0_0] : memref<64x32xf32, #tpu.memory_space<vmem>>, vector<64x32xf32>
    %c0_1 = arith.constant 0 : index
    %c0_2 = arith.constant 0 : index
    %1 = vector.load %arg3[%c0_1, %c0_2] : memref<32x384xf32, #tpu.memory_space<vmem>>, vector<32x384xf32>
    %cst = arith.constant dense<0.000000e+00> : vector<64x384xf32>
    %2 = tpu.matmul %0, %1, %cst {dimension_numbers = #tpu.dot_dimension_numbers<[1], [0], [0], [1], [0, 0, 1, 1], [], []>} : vector<64x32xf32>, vector<32x384xf32>, vector<64x384xf32> -> vector<64x384xf32>
    %c0_3 = arith.constant 0 : index
    %c0_4 = arith.constant 0 : index
    %3 = vector.load %arg4[%c0_3, %c0_4] : memref<1x384xf32, #tpu.memory_space<vmem>>, vector<1x384xf32>
    %4 = vector.broadcast %3 : vector<1x384xf32> to vector<64x384xf32>
    %5 = arith.addf %2, %4 : vector<64x384xf32>
    %c0_5 = arith.constant 0 : index
    %c0_6 = arith.constant 0 : index
    %6 = vector.load %arg5[%c0_5, %c0_6] : memref<64x384xf32, #tpu.memory_space<vmem>>, vector<64x384xf32>
    tpu.vector_store %arg5[%c0_5, %c0_6], %5 {strides = array<i32>} : memref<64x384xf32, #tpu.memory_space<vmem>>, vector<64x384xf32>,
    return
  }
  func.func @transform_0(%arg0: i32, %arg1: i32) -> (i32, i32) {
    %c0_i32 = arith.constant 0 : i32
    %c0_i32_0 = arith.constant 0 : i32
    return %arg0, %c0_i32 : i32, i32
  }
  func.func @transform_1(%arg0: i32, %arg1: i32) -> (i32, i32) {
    %c0_i32 = arith.constant 0 : i32
    %c0_i32_0 = arith.constant 0 : i32
    return %c0_i32, %arg1 : i32, i32
  }
  func.func @transform_2(%arg0: i32, %arg1: i32) -> (i32, i32) {
    %c0_i32 = arith.constant 0 : i32
    %c0_i32_0 = arith.constant 0 : i32
    return %c0_i32, %arg1 : i32, i32
  }
  func.func @transform_3(%arg0: i32, %arg1: i32) -> (i32, i32) {
    %c0_i32 = arith.constant 0 : i32
    return %arg0, %arg1 : i32, i32
  }
}

module attributes {stable_mosaic.version = 11 : i64} {
  func.func @_gru_recurrence_kernel(%arg0: i32, %arg1: i32, %arg2: memref<8x128xf32, #tpu.memory_space<vmem>>, %arg3: memref<8x8x384xf32, #tpu.memory_space<vmem>>, %arg4: memref<128x384xf32, #tpu.memory_space<vmem>>, %arg5: memref<1x384xf32, #tpu.memory_space<vmem>>, %arg6: memref<8x8x128xf32, #tpu.memory_space<vmem>>, %arg7: memref<8x128xf32, #tpu.memory_space<vmem>>) attributes {dimension_semantics = [#tpu.dimension_semantics<parallel>, #tpu.dimension_semantics<arbitrary>], iteration_bounds = array<i64: 1, 1>, scalar_prefetch = 0 : i64, scratch_operands = 1 : i64, tpu.core_type = #tpu.core_type<tc>, window_params = [{transform_indices = @transform_0, window_bounds = array<i64: 8, 128>}, {transform_indices = @transform_1, window_bounds = array<i64: 8, 8, 384>}, {pipeline_mode = #tpu.pipeline_mode<synchronous>, transform_indices = @transform_2, window_bounds = array<i64: 128, 384>}, {pipeline_mode = #tpu.pipeline_mode<synchronous>, transform_indices = @transform_3, window_bounds = array<i64: 1, 384>}, {transform_indices = @transform_4, window_bounds = array<i64: 8, 8, 128>}]} {
    %c0_i32 = arith.constant 0 : i32
    %0 = arith.cmpi eq, %arg1, %c0_i32 : i32
    %1 = arith.extui %0 : i1 to i32
    %c0_i32_0 = arith.constant 0 : i32
    %2 = arith.cmpi ne, %1, %c0_i32_0 : i32
    scf.if %2 {
      %c0_80 = arith.constant 0 : index
      %c0_81 = arith.constant 0 : index
      %273 = vector.load %arg2[%c0_80, %c0_81] : memref<8x128xf32, #tpu.memory_space<vmem>>, vector<8x128xf32>
      %c0_82 = arith.constant 0 : index
      %c0_83 = arith.constant 0 : index
      %274 = vector.load %arg7[%c0_82, %c0_83] : memref<8x128xf32, #tpu.memory_space<vmem>>, vector<8x128xf32>
      tpu.vector_store %arg7[%c0_82, %c0_83], %273 {strides = array<i32>} : memref<8x128xf32, #tpu.memory_space<vmem>>, vector<8x128xf32>,
    } else {
    }
    %c0 = arith.constant 0 : index
    %c0_1 = arith.constant 0 : index
    %3 = vector.load %arg7[%c0, %c0_1] : memref<8x128xf32, #tpu.memory_space<vmem>>, vector<8x128xf32>
    %c0_2 = arith.constant 0 : index
    %c0_3 = arith.constant 0 : index
    %4 = vector.load %arg4[%c0_2, %c0_3] : memref<128x384xf32, #tpu.memory_space<vmem>>, vector<128x384xf32>
    %c0_4 = arith.constant 0 : index
    %c0_5 = arith.constant 0 : index
    %5 = vector.load %arg5[%c0_4, %c0_5] : memref<1x384xf32, #tpu.memory_space<vmem>>, vector<1x384xf32>
    %6 = vector.shape_cast %5 : vector<1x384xf32> to vector<1x384xf32>
    %7 = vector.broadcast %6 : vector<1x384xf32> to vector<8x384xf32>
    %c0_6 = arith.constant 0 : index
    %c0_7 = arith.constant 0 : index
    %c0_8 = arith.constant 0 : index
    %8 = vector.load %arg3[%c0_6, %c0_7, %c0_8] : memref<8x8x384xf32, #tpu.memory_space<vmem>>, vector<8x1x384xf32>
    %9 = vector.shape_cast %8 : vector<8x1x384xf32> to vector<8x384xf32>
    %cst = arith.constant dense<0.000000e+00> : vector<8x384xf32>
    %10 = tpu.matmul %3, %4, %cst {dimension_numbers = #tpu.dot_dimension_numbers<[1], [0], [0], [1], [0, 0, 1, 1], [], []>} : vector<8x128xf32>, vector<128x384xf32>, vector<8x384xf32> -> vector<8x384xf32>
    %11 = arith.addf %10, %7 : vector<8x384xf32>
    %12 = vector.extract_strided_slice %9 {offsets = [0, 0], sizes = [8, 128], strides = [1, 1]} : vector<8x384xf32> to vector<8x128xf32>
    %13 = vector.extract_strided_slice %11 {offsets = [0, 0], sizes = [8, 128], strides = [1, 1]} : vector<8x384xf32> to vector<8x128xf32>
    %14 = arith.addf %12, %13 : vector<8x128xf32>
    %15 = arith.negf %14 : vector<8x128xf32>
    %16 = math.exp %15 : vector<8x128xf32>
    %cst_9 = arith.constant 1.000000e+00 : f32
    %17 = vector.broadcast %cst_9 : f32 to vector<8x128xf32>
    %18 = arith.addf %17, %16 : vector<8x128xf32>
    %19 = arith.divf %17, %18 : vector<8x128xf32>
    %20 = vector.extract_strided_slice %9 {offsets = [0, 128], sizes = [8, 128], strides = [1, 1]} : vector<8x384xf32> to vector<8x128xf32>
    %21 = vector.extract_strided_slice %11 {offsets = [0, 128], sizes = [8, 128], strides = [1, 1]} : vector<8x384xf32> to vector<8x128xf32>
    %22 = arith.addf %20, %21 : vector<8x128xf32>
    %23 = arith.negf %22 : vector<8x128xf32>
    %24 = math.exp %23 : vector<8x128xf32>
    %cst_10 = arith.constant 1.000000e+00 : f32
    %25 = vector.broadcast %cst_10 : f32 to vector<8x128xf32>
    %26 = arith.addf %25, %24 : vector<8x128xf32>
    %27 = arith.divf %25, %26 : vector<8x128xf32>
    %28 = vector.extract_strided_slice %9 {offsets = [0, 256], sizes = [8, 128], strides = [1, 1]} : vector<8x384xf32> to vector<8x128xf32>
    %29 = vector.extract_strided_slice %11 {offsets = [0, 256], sizes = [8, 128], strides = [1, 1]} : vector<8x384xf32> to vector<8x128xf32>
    %30 = arith.mulf %19, %29 : vector<8x128xf32>
    %31 = arith.addf %28, %30 : vector<8x128xf32>
    %32 = math.tanh %31 : vector<8x128xf32>
    %cst_11 = arith.constant 1.000000e+00 : f32
    %33 = vector.broadcast %cst_11 : f32 to vector<8x128xf32>
    %34 = arith.subf %33, %27 : vector<8x128xf32>
    %35 = arith.mulf %34, %32 : vector<8x128xf32>
    %36 = arith.mulf %27, %3 : vector<8x128xf32>
    %37 = arith.addf %35, %36 : vector<8x128xf32>
    %c0_12 = arith.constant 0 : index
    %c0_13 = arith.constant 0 : index
    %c0_14 = arith.constant 0 : index
    %38 = vector.load %arg6[%c0_12, %c0_13, %c0_14] : memref<8x8x128xf32, #tpu.memory_space<vmem>>, vector<8x1x128xf32>
    %39 = vector.shape_cast %38 : vector<8x1x128xf32> to vector<8x128xf32>
    %40 = vector.shape_cast %37 : vector<8x128xf32> to vector<8x1x128xf32>
    tpu.vector_store %arg6[%c0_12, %c0_13, %c0_14], %40 {strides = array<i32>} : memref<8x8x128xf32, #tpu.memory_space<vmem>>, vector<8x1x128xf32>,
    %c0_15 = arith.constant 0 : index
    %c1 = arith.constant 1 : index
    %c0_16 = arith.constant 0 : index
    %41 = vector.load %arg3[%c0_15, %c1, %c0_16] : memref<8x8x384xf32, #tpu.memory_space<vmem>>, vector<8x1x384xf32>
    %42 = vector.shape_cast %41 : vector<8x1x384xf32> to vector<8x384xf32>
    %cst_17 = arith.constant dense<0.000000e+00> : vector<8x384xf32>
    %43 = tpu.matmul %37, %4, %cst_17 {dimension_numbers = #tpu.dot_dimension_numbers<[1], [0], [0], [1], [0, 0, 1, 1], [], []>} : vector<8x128xf32>, vector<128x384xf32>, vector<8x384xf32> -> vector<8x384xf32>
    %44 = arith.addf %43, %7 : vector<8x384xf32>
    %45 = vector.extract_strided_slice %42 {offsets = [0, 0], sizes = [8, 128], strides = [1, 1]} : vector<8x384xf32> to vector<8x128xf32>
    %46 = vector.extract_strided_slice %44 {offsets = [0, 0], sizes = [8, 128], strides = [1, 1]} : vector<8x384xf32> to vector<8x128xf32>
    %47 = arith.addf %45, %46 : vector<8x128xf32>
    %48 = arith.negf %47 : vector<8x128xf32>
    %49 = math.exp %48 : vector<8x128xf32>
    %cst_18 = arith.constant 1.000000e+00 : f32
    %50 = vector.broadcast %cst_18 : f32 to vector<8x128xf32>
    %51 = arith.addf %50, %49 : vector<8x128xf32>
    %52 = arith.divf %50, %51 : vector<8x128xf32>
    %53 = vector.extract_strided_slice %42 {offsets = [0, 128], sizes = [8, 128], strides = [1, 1]} : vector<8x384xf32> to vector<8x128xf32>
    %54 = vector.extract_strided_slice %44 {offsets = [0, 128], sizes = [8, 128], strides = [1, 1]} : vector<8x384xf32> to vector<8x128xf32>
    %55 = arith.addf %53, %54 : vector<8x128xf32>
    %56 = arith.negf %55 : vector<8x128xf32>
    %57 = math.exp %56 : vector<8x128xf32>
    %cst_19 = arith.constant 1.000000e+00 : f32
    %58 = vector.broadcast %cst_19 : f32 to vector<8x128xf32>
    %59 = arith.addf %58, %57 : vector<8x128xf32>
    %60 = arith.divf %58, %59 : vector<8x128xf32>
    %61 = vector.extract_strided_slice %42 {offsets = [0, 256], sizes = [8, 128], strides = [1, 1]} : vector<8x384xf32> to vector<8x128xf32>
    %62 = vector.extract_strided_slice %44 {offsets = [0, 256], sizes = [8, 128], strides = [1, 1]} : vector<8x384xf32> to vector<8x128xf32>
    %63 = arith.mulf %52, %62 : vector<8x128xf32>
    %64 = arith.addf %61, %63 : vector<8x128xf32>
    %65 = math.tanh %64 : vector<8x128xf32>
    %cst_20 = arith.constant 1.000000e+00 : f32
    %66 = vector.broadcast %cst_20 : f32 to vector<8x128xf32>
    %67 = arith.subf %66, %60 : vector<8x128xf32>
    %68 = arith.mulf %67, %65 : vector<8x128xf32>
    %69 = arith.mulf %60, %37 : vector<8x128xf32>
    %70 = arith.addf %68, %69 : vector<8x128xf32>
    %c0_21 = arith.constant 0 : index
    %c1_22 = arith.constant 1 : index
    %c0_23 = arith.constant 0 : index
    %71 = vector.load %arg6[%c0_21, %c1_22, %c0_23] : memref<8x8x128xf32, #tpu.memory_space<vmem>>, vector<8x1x128xf32>
    %72 = vector.shape_cast %71 : vector<8x1x128xf32> to vector<8x128xf32>
    %73 = vector.shape_cast %70 : vector<8x128xf32> to vector<8x1x128xf32>
    tpu.vector_store %arg6[%c0_21, %c1_22, %c0_23], %73 {strides = array<i32>} : memref<8x8x128xf32, #tpu.memory_space<vmem>>, vector<8x1x128xf32>,
    %c0_24 = arith.constant 0 : index
    %c2 = arith.constant 2 : index
    %c0_25 = arith.constant 0 : index
    %74 = vector.load %arg3[%c0_24, %c2, %c0_25] : memref<8x8x384xf32, #tpu.memory_space<vmem>>, vector<8x1x384xf32>
    %75 = vector.shape_cast %74 : vector<8x1x384xf32> to vector<8x384xf32>
    %cst_26 = arith.constant dense<0.000000e+00> : vector<8x384xf32>
    %76 = tpu.matmul %70, %4, %cst_26 {dimension_numbers = #tpu.dot_dimension_numbers<[1], [0], [0], [1], [0, 0, 1, 1], [], []>} : vector<8x128xf32>, vector<128x384xf32>, vector<8x384xf32> -> vector<8x384xf32>
    %77 = arith.addf %76, %7 : vector<8x384xf32>
    %78 = vector.extract_strided_slice %75 {offsets = [0, 0], sizes = [8, 128], strides = [1, 1]} : vector<8x384xf32> to vector<8x128xf32>
    %79 = vector.extract_strided_slice %77 {offsets = [0, 0], sizes = [8, 128], strides = [1, 1]} : vector<8x384xf32> to vector<8x128xf32>
    %80 = arith.addf %78, %79 : vector<8x128xf32>
    %81 = arith.negf %80 : vector<8x128xf32>
    %82 = math.exp %81 : vector<8x128xf32>
    %cst_27 = arith.constant 1.000000e+00 : f32
    %83 = vector.broadcast %cst_27 : f32 to vector<8x128xf32>
    %84 = arith.addf %83, %82 : vector<8x128xf32>
    %85 = arith.divf %83, %84 : vector<8x128xf32>
    %86 = vector.extract_strided_slice %75 {offsets = [0, 128], sizes = [8, 128], strides = [1, 1]} : vector<8x384xf32> to vector<8x128xf32>
    %87 = vector.extract_strided_slice %77 {offsets = [0, 128], sizes = [8, 128], strides = [1, 1]} : vector<8x384xf32> to vector<8x128xf32>
    %88 = arith.addf %86, %87 : vector<8x128xf32>
    %89 = arith.negf %88 : vector<8x128xf32>
    %90 = math.exp %89 : vector<8x128xf32>
    %cst_28 = arith.constant 1.000000e+00 : f32
    %91 = vector.broadcast %cst_28 : f32 to vector<8x128xf32>
    %92 = arith.addf %91, %90 : vector<8x128xf32>
    %93 = arith.divf %91, %92 : vector<8x128xf32>
    %94 = vector.extract_strided_slice %75 {offsets = [0, 256], sizes = [8, 128], strides = [1, 1]} : vector<8x384xf32> to vector<8x128xf32>
    %95 = vector.extract_strided_slice %77 {offsets = [0, 256], sizes = [8, 128], strides = [1, 1]} : vector<8x384xf32> to vector<8x128xf32>
    %96 = arith.mulf %85, %95 : vector<8x128xf32>
    %97 = arith.addf %94, %96 : vector<8x128xf32>
    %98 = math.tanh %97 : vector<8x128xf32>
    %cst_29 = arith.constant 1.000000e+00 : f32
    %99 = vector.broadcast %cst_29 : f32 to vector<8x128xf32>
    %100 = arith.subf %99, %93 : vector<8x128xf32>
    %101 = arith.mulf %100, %98 : vector<8x128xf32>
    %102 = arith.mulf %93, %70 : vector<8x128xf32>
    %103 = arith.addf %101, %102 : vector<8x128xf32>
    %c0_30 = arith.constant 0 : index
    %c2_31 = arith.constant 2 : index
    %c0_32 = arith.constant 0 : index
    %104 = vector.load %arg6[%c0_30, %c2_31, %c0_32] : memref<8x8x128xf32, #tpu.memory_space<vmem>>, vector<8x1x128xf32>
    %105 = vector.shape_cast %104 : vector<8x1x128xf32> to vector<8x128xf32>
    %106 = vector.shape_cast %103 : vector<8x128xf32> to vector<8x1x128xf32>
    tpu.vector_store %arg6[%c0_30, %c2_31, %c0_32], %106 {strides = array<i32>} : memref<8x8x128xf32, #tpu.memory_space<vmem>>, vector<8x1x128xf32>,
    %c0_33 = arith.constant 0 : index
    %c3 = arith.constant 3 : index
    %c0_34 = arith.constant 0 : index
    %107 = vector.load %arg3[%c0_33, %c3, %c0_34] : memref<8x8x384xf32, #tpu.memory_space<vmem>>, vector<8x1x384xf32>
    %108 = vector.shape_cast %107 : vector<8x1x384xf32> to vector<8x384xf32>
    %cst_35 = arith.constant dense<0.000000e+00> : vector<8x384xf32>
    %109 = tpu.matmul %103, %4, %cst_35 {dimension_numbers = #tpu.dot_dimension_numbers<[1], [0], [0], [1], [0, 0, 1, 1], [], []>} : vector<8x128xf32>, vector<128x384xf32>, vector<8x384xf32> -> vector<8x384xf32>
    %110 = arith.addf %109, %7 : vector<8x384xf32>
    %111 = vector.extract_strided_slice %108 {offsets = [0, 0], sizes = [8, 128], strides = [1, 1]} : vector<8x384xf32> to vector<8x128xf32>
    %112 = vector.extract_strided_slice %110 {offsets = [0, 0], sizes = [8, 128], strides = [1, 1]} : vector<8x384xf32> to vector<8x128xf32>
    %113 = arith.addf %111, %112 : vector<8x128xf32>
    %114 = arith.negf %113 : vector<8x128xf32>
    %115 = math.exp %114 : vector<8x128xf32>
    %cst_36 = arith.constant 1.000000e+00 : f32
    %116 = vector.broadcast %cst_36 : f32 to vector<8x128xf32>
    %117 = arith.addf %116, %115 : vector<8x128xf32>
    %118 = arith.divf %116, %117 : vector<8x128xf32>
    %119 = vector.extract_strided_slice %108 {offsets = [0, 128], sizes = [8, 128], strides = [1, 1]} : vector<8x384xf32> to vector<8x128xf32>
    %120 = vector.extract_strided_slice %110 {offsets = [0, 128], sizes = [8, 128], strides = [1, 1]} : vector<8x384xf32> to vector<8x128xf32>
    %121 = arith.addf %119, %120 : vector<8x128xf32>
    %122 = arith.negf %121 : vector<8x128xf32>
    %123 = math.exp %122 : vector<8x128xf32>
    %cst_37 = arith.constant 1.000000e+00 : f32
    %124 = vector.broadcast %cst_37 : f32 to vector<8x128xf32>
    %125 = arith.addf %124, %123 : vector<8x128xf32>
    %126 = arith.divf %124, %125 : vector<8x128xf32>
    %127 = vector.extract_strided_slice %108 {offsets = [0, 256], sizes = [8, 128], strides = [1, 1]} : vector<8x384xf32> to vector<8x128xf32>
    %128 = vector.extract_strided_slice %110 {offsets = [0, 256], sizes = [8, 128], strides = [1, 1]} : vector<8x384xf32> to vector<8x128xf32>
    %129 = arith.mulf %118, %128 : vector<8x128xf32>
    %130 = arith.addf %127, %129 : vector<8x128xf32>
    %131 = math.tanh %130 : vector<8x128xf32>
    %cst_38 = arith.constant 1.000000e+00 : f32
    %132 = vector.broadcast %cst_38 : f32 to vector<8x128xf32>
    %133 = arith.subf %132, %126 : vector<8x128xf32>
    %134 = arith.mulf %133, %131 : vector<8x128xf32>
    %135 = arith.mulf %126, %103 : vector<8x128xf32>
    %136 = arith.addf %134, %135 : vector<8x128xf32>
    %c0_39 = arith.constant 0 : index
    %c3_40 = arith.constant 3 : index
    %c0_41 = arith.constant 0 : index
    %137 = vector.load %arg6[%c0_39, %c3_40, %c0_41] : memref<8x8x128xf32, #tpu.memory_space<vmem>>, vector<8x1x128xf32>
    %138 = vector.shape_cast %137 : vector<8x1x128xf32> to vector<8x128xf32>
    %139 = vector.shape_cast %136 : vector<8x128xf32> to vector<8x1x128xf32>
    tpu.vector_store %arg6[%c0_39, %c3_40, %c0_41], %139 {strides = array<i32>} : memref<8x8x128xf32, #tpu.memory_space<vmem>>, vector<8x1x128xf32>,
    %c0_42 = arith.constant 0 : index
    %c4 = arith.constant 4 : index
    %c0_43 = arith.constant 0 : index
    %140 = vector.load %arg3[%c0_42, %c4, %c0_43] : memref<8x8x384xf32, #tpu.memory_space<vmem>>, vector<8x1x384xf32>
    %141 = vector.shape_cast %140 : vector<8x1x384xf32> to vector<8x384xf32>
    %cst_44 = arith.constant dense<0.000000e+00> : vector<8x384xf32>
    %142 = tpu.matmul %136, %4, %cst_44 {dimension_numbers = #tpu.dot_dimension_numbers<[1], [0], [0], [1], [0, 0, 1, 1], [], []>} : vector<8x128xf32>, vector<128x384xf32>, vector<8x384xf32> -> vector<8x384xf32>
    %143 = arith.addf %142, %7 : vector<8x384xf32>
    %144 = vector.extract_strided_slice %141 {offsets = [0, 0], sizes = [8, 128], strides = [1, 1]} : vector<8x384xf32> to vector<8x128xf32>
    %145 = vector.extract_strided_slice %143 {offsets = [0, 0], sizes = [8, 128], strides = [1, 1]} : vector<8x384xf32> to vector<8x128xf32>
    %146 = arith.addf %144, %145 : vector<8x128xf32>
    %147 = arith.negf %146 : vector<8x128xf32>
    %148 = math.exp %147 : vector<8x128xf32>
    %cst_45 = arith.constant 1.000000e+00 : f32
    %149 = vector.broadcast %cst_45 : f32 to vector<8x128xf32>
    %150 = arith.addf %149, %148 : vector<8x128xf32>
    %151 = arith.divf %149, %150 : vector<8x128xf32>
    %152 = vector.extract_strided_slice %141 {offsets = [0, 128], sizes = [8, 128], strides = [1, 1]} : vector<8x384xf32> to vector<8x128xf32>
    %153 = vector.extract_strided_slice %143 {offsets = [0, 128], sizes = [8, 128], strides = [1, 1]} : vector<8x384xf32> to vector<8x128xf32>
    %154 = arith.addf %152, %153 : vector<8x128xf32>
    %155 = arith.negf %154 : vector<8x128xf32>
    %156 = math.exp %155 : vector<8x128xf32>
    %cst_46 = arith.constant 1.000000e+00 : f32
    %157 = vector.broadcast %cst_46 : f32 to vector<8x128xf32>
    %158 = arith.addf %157, %156 : vector<8x128xf32>
    %159 = arith.divf %157, %158 : vector<8x128xf32>
    %160 = vector.extract_strided_slice %141 {offsets = [0, 256], sizes = [8, 128], strides = [1, 1]} : vector<8x384xf32> to vector<8x128xf32>
    %161 = vector.extract_strided_slice %143 {offsets = [0, 256], sizes = [8, 128], strides = [1, 1]} : vector<8x384xf32> to vector<8x128xf32>
    %162 = arith.mulf %151, %161 : vector<8x128xf32>
    %163 = arith.addf %160, %162 : vector<8x128xf32>
    %164 = math.tanh %163 : vector<8x128xf32>
    %cst_47 = arith.constant 1.000000e+00 : f32
    %165 = vector.broadcast %cst_47 : f32 to vector<8x128xf32>
    %166 = arith.subf %165, %159 : vector<8x128xf32>
    %167 = arith.mulf %166, %164 : vector<8x128xf32>
    %168 = arith.mulf %159, %136 : vector<8x128xf32>
    %169 = arith.addf %167, %168 : vector<8x128xf32>
    %c0_48 = arith.constant 0 : index
    %c4_49 = arith.constant 4 : index
    %c0_50 = arith.constant 0 : index
    %170 = vector.load %arg6[%c0_48, %c4_49, %c0_50] : memref<8x8x128xf32, #tpu.memory_space<vmem>>, vector<8x1x128xf32>
    %171 = vector.shape_cast %170 : vector<8x1x128xf32> to vector<8x128xf32>
    %172 = vector.shape_cast %169 : vector<8x128xf32> to vector<8x1x128xf32>
    tpu.vector_store %arg6[%c0_48, %c4_49, %c0_50], %172 {strides = array<i32>} : memref<8x8x128xf32, #tpu.memory_space<vmem>>, vector<8x1x128xf32>,
    %c0_51 = arith.constant 0 : index
    %c5 = arith.constant 5 : index
    %c0_52 = arith.constant 0 : index
    %173 = vector.load %arg3[%c0_51, %c5, %c0_52] : memref<8x8x384xf32, #tpu.memory_space<vmem>>, vector<8x1x384xf32>
    %174 = vector.shape_cast %173 : vector<8x1x384xf32> to vector<8x384xf32>
    %cst_53 = arith.constant dense<0.000000e+00> : vector<8x384xf32>
    %175 = tpu.matmul %169, %4, %cst_53 {dimension_numbers = #tpu.dot_dimension_numbers<[1], [0], [0], [1], [0, 0, 1, 1], [], []>} : vector<8x128xf32>, vector<128x384xf32>, vector<8x384xf32> -> vector<8x384xf32>
    %176 = arith.addf %175, %7 : vector<8x384xf32>
    %177 = vector.extract_strided_slice %174 {offsets = [0, 0], sizes = [8, 128], strides = [1, 1]} : vector<8x384xf32> to vector<8x128xf32>
    %178 = vector.extract_strided_slice %176 {offsets = [0, 0], sizes = [8, 128], strides = [1, 1]} : vector<8x384xf32> to vector<8x128xf32>
    %179 = arith.addf %177, %178 : vector<8x128xf32>
    %180 = arith.negf %179 : vector<8x128xf32>
    %181 = math.exp %180 : vector<8x128xf32>
    %cst_54 = arith.constant 1.000000e+00 : f32
    %182 = vector.broadcast %cst_54 : f32 to vector<8x128xf32>
    %183 = arith.addf %182, %181 : vector<8x128xf32>
    %184 = arith.divf %182, %183 : vector<8x128xf32>
    %185 = vector.extract_strided_slice %174 {offsets = [0, 128], sizes = [8, 128], strides = [1, 1]} : vector<8x384xf32> to vector<8x128xf32>
    %186 = vector.extract_strided_slice %176 {offsets = [0, 128], sizes = [8, 128], strides = [1, 1]} : vector<8x384xf32> to vector<8x128xf32>
    %187 = arith.addf %185, %186 : vector<8x128xf32>
    %188 = arith.negf %187 : vector<8x128xf32>
    %189 = math.exp %188 : vector<8x128xf32>
    %cst_55 = arith.constant 1.000000e+00 : f32
    %190 = vector.broadcast %cst_55 : f32 to vector<8x128xf32>
    %191 = arith.addf %190, %189 : vector<8x128xf32>
    %192 = arith.divf %190, %191 : vector<8x128xf32>
    %193 = vector.extract_strided_slice %174 {offsets = [0, 256], sizes = [8, 128], strides = [1, 1]} : vector<8x384xf32> to vector<8x128xf32>
    %194 = vector.extract_strided_slice %176 {offsets = [0, 256], sizes = [8, 128], strides = [1, 1]} : vector<8x384xf32> to vector<8x128xf32>
    %195 = arith.mulf %184, %194 : vector<8x128xf32>
    %196 = arith.addf %193, %195 : vector<8x128xf32>
    %197 = math.tanh %196 : vector<8x128xf32>
    %cst_56 = arith.constant 1.000000e+00 : f32
    %198 = vector.broadcast %cst_56 : f32 to vector<8x128xf32>
    %199 = arith.subf %198, %192 : vector<8x128xf32>
    %200 = arith.mulf %199, %197 : vector<8x128xf32>
    %201 = arith.mulf %192, %169 : vector<8x128xf32>
    %202 = arith.addf %200, %201 : vector<8x128xf32>
    %c0_57 = arith.constant 0 : index
    %c5_58 = arith.constant 5 : index
    %c0_59 = arith.constant 0 : index
    %203 = vector.load %arg6[%c0_57, %c5_58, %c0_59] : memref<8x8x128xf32, #tpu.memory_space<vmem>>, vector<8x1x128xf32>
    %204 = vector.shape_cast %203 : vector<8x1x128xf32> to vector<8x128xf32>
    %205 = vector.shape_cast %202 : vector<8x128xf32> to vector<8x1x128xf32>
    tpu.vector_store %arg6[%c0_57, %c5_58, %c0_59], %205 {strides = array<i32>} : memref<8x8x128xf32, #tpu.memory_space<vmem>>, vector<8x1x128xf32>,
    %c0_60 = arith.constant 0 : index
    %c6 = arith.constant 6 : index
    %c0_61 = arith.constant 0 : index
    %206 = vector.load %arg3[%c0_60, %c6, %c0_61] : memref<8x8x384xf32, #tpu.memory_space<vmem>>, vector<8x1x384xf32>
    %207 = vector.shape_cast %206 : vector<8x1x384xf32> to vector<8x384xf32>
    %cst_62 = arith.constant dense<0.000000e+00> : vector<8x384xf32>
    %208 = tpu.matmul %202, %4, %cst_62 {dimension_numbers = #tpu.dot_dimension_numbers<[1], [0], [0], [1], [0, 0, 1, 1], [], []>} : vector<8x128xf32>, vector<128x384xf32>, vector<8x384xf32> -> vector<8x384xf32>
    %209 = arith.addf %208, %7 : vector<8x384xf32>
    %210 = vector.extract_strided_slice %207 {offsets = [0, 0], sizes = [8, 128], strides = [1, 1]} : vector<8x384xf32> to vector<8x128xf32>
    %211 = vector.extract_strided_slice %209 {offsets = [0, 0], sizes = [8, 128], strides = [1, 1]} : vector<8x384xf32> to vector<8x128xf32>
    %212 = arith.addf %210, %211 : vector<8x128xf32>
    %213 = arith.negf %212 : vector<8x128xf32>
    %214 = math.exp %213 : vector<8x128xf32>
    %cst_63 = arith.constant 1.000000e+00 : f32
    %215 = vector.broadcast %cst_63 : f32 to vector<8x128xf32>
    %216 = arith.addf %215, %214 : vector<8x128xf32>
    %217 = arith.divf %215, %216 : vector<8x128xf32>
    %218 = vector.extract_strided_slice %207 {offsets = [0, 128], sizes = [8, 128], strides = [1, 1]} : vector<8x384xf32> to vector<8x128xf32>
    %219 = vector.extract_strided_slice %209 {offsets = [0, 128], sizes = [8, 128], strides = [1, 1]} : vector<8x384xf32> to vector<8x128xf32>
    %220 = arith.addf %218, %219 : vector<8x128xf32>
    %221 = arith.negf %220 : vector<8x128xf32>
    %222 = math.exp %221 : vector<8x128xf32>
    %cst_64 = arith.constant 1.000000e+00 : f32
    %223 = vector.broadcast %cst_64 : f32 to vector<8x128xf32>
    %224 = arith.addf %223, %222 : vector<8x128xf32>
    %225 = arith.divf %223, %224 : vector<8x128xf32>
    %226 = vector.extract_strided_slice %207 {offsets = [0, 256], sizes = [8, 128], strides = [1, 1]} : vector<8x384xf32> to vector<8x128xf32>
    %227 = vector.extract_strided_slice %209 {offsets = [0, 256], sizes = [8, 128], strides = [1, 1]} : vector<8x384xf32> to vector<8x128xf32>
    %228 = arith.mulf %217, %227 : vector<8x128xf32>
    %229 = arith.addf %226, %228 : vector<8x128xf32>
    %230 = math.tanh %229 : vector<8x128xf32>
    %cst_65 = arith.constant 1.000000e+00 : f32
    %231 = vector.broadcast %cst_65 : f32 to vector<8x128xf32>
    %232 = arith.subf %231, %225 : vector<8x128xf32>
    %233 = arith.mulf %232, %230 : vector<8x128xf32>
    %234 = arith.mulf %225, %202 : vector<8x128xf32>
    %235 = arith.addf %233, %234 : vector<8x128xf32>
    %c0_66 = arith.constant 0 : index
    %c6_67 = arith.constant 6 : index
    %c0_68 = arith.constant 0 : index
    %236 = vector.load %arg6[%c0_66, %c6_67, %c0_68] : memref<8x8x128xf32, #tpu.memory_space<vmem>>, vector<8x1x128xf32>
    %237 = vector.shape_cast %236 : vector<8x1x128xf32> to vector<8x128xf32>
    %238 = vector.shape_cast %235 : vector<8x128xf32> to vector<8x1x128xf32>
    tpu.vector_store %arg6[%c0_66, %c6_67, %c0_68], %238 {strides = array<i32>} : memref<8x8x128xf32, #tpu.memory_space<vmem>>, vector<8x1x128xf32>,
    %c0_69 = arith.constant 0 : index
    %c7 = arith.constant 7 : index
    %c0_70 = arith.constant 0 : index
    %239 = vector.load %arg3[%c0_69, %c7, %c0_70] : memref<8x8x384xf32, #tpu.memory_space<vmem>>, vector<8x1x384xf32>
    %240 = vector.shape_cast %239 : vector<8x1x384xf32> to vector<8x384xf32>
    %cst_71 = arith.constant dense<0.000000e+00> : vector<8x384xf32>
    %241 = tpu.matmul %235, %4, %cst_71 {dimension_numbers = #tpu.dot_dimension_numbers<[1], [0], [0], [1], [0, 0, 1, 1], [], []>} : vector<8x128xf32>, vector<128x384xf32>, vector<8x384xf32> -> vector<8x384xf32>
    %242 = arith.addf %241, %7 : vector<8x384xf32>
    %243 = vector.extract_strided_slice %240 {offsets = [0, 0], sizes = [8, 128], strides = [1, 1]} : vector<8x384xf32> to vector<8x128xf32>
    %244 = vector.extract_strided_slice %242 {offsets = [0, 0], sizes = [8, 128], strides = [1, 1]} : vector<8x384xf32> to vector<8x128xf32>
    %245 = arith.addf %243, %244 : vector<8x128xf32>
    %246 = arith.negf %245 : vector<8x128xf32>
    %247 = math.exp %246 : vector<8x128xf32>
    %cst_72 = arith.constant 1.000000e+00 : f32
    %248 = vector.broadcast %cst_72 : f32 to vector<8x128xf32>
    %249 = arith.addf %248, %247 : vector<8x128xf32>
    %250 = arith.divf %248, %249 : vector<8x128xf32>
    %251 = vector.extract_strided_slice %240 {offsets = [0, 128], sizes = [8, 128], strides = [1, 1]} : vector<8x384xf32> to vector<8x128xf32>
    %252 = vector.extract_strided_slice %242 {offsets = [0, 128], sizes = [8, 128], strides = [1, 1]} : vector<8x384xf32> to vector<8x128xf32>
    %253 = arith.addf %251, %252 : vector<8x128xf32>
    %254 = arith.negf %253 : vector<8x128xf32>
    %255 = math.exp %254 : vector<8x128xf32>
    %cst_73 = arith.constant 1.000000e+00 : f32
    %256 = vector.broadcast %cst_73 : f32 to vector<8x128xf32>
    %257 = arith.addf %256, %255 : vector<8x128xf32>
    %258 = arith.divf %256, %257 : vector<8x128xf32>
    %259 = vector.extract_strided_slice %240 {offsets = [0, 256], sizes = [8, 128], strides = [1, 1]} : vector<8x384xf32> to vector<8x128xf32>
    %260 = vector.extract_strided_slice %242 {offsets = [0, 256], sizes = [8, 128], strides = [1, 1]} : vector<8x384xf32> to vector<8x128xf32>
    %261 = arith.mulf %250, %260 : vector<8x128xf32>
    %262 = arith.addf %259, %261 : vector<8x128xf32>
    %263 = math.tanh %262 : vector<8x128xf32>
    %cst_74 = arith.constant 1.000000e+00 : f32
    %264 = vector.broadcast %cst_74 : f32 to vector<8x128xf32>
    %265 = arith.subf %264, %258 : vector<8x128xf32>
    %266 = arith.mulf %265, %263 : vector<8x128xf32>
    %267 = arith.mulf %258, %235 : vector<8x128xf32>
    %268 = arith.addf %266, %267 : vector<8x128xf32>
    %c0_75 = arith.constant 0 : index
    %c7_76 = arith.constant 7 : index
    %c0_77 = arith.constant 0 : index
    %269 = vector.load %arg6[%c0_75, %c7_76, %c0_77] : memref<8x8x128xf32, #tpu.memory_space<vmem>>, vector<8x1x128xf32>
    %270 = vector.shape_cast %269 : vector<8x1x128xf32> to vector<8x128xf32>
    %271 = vector.shape_cast %268 : vector<8x128xf32> to vector<8x1x128xf32>
    tpu.vector_store %arg6[%c0_75, %c7_76, %c0_77], %271 {strides = array<i32>} : memref<8x8x128xf32, #tpu.memory_space<vmem>>, vector<8x1x128xf32>,
    %c0_78 = arith.constant 0 : index
    %c0_79 = arith.constant 0 : index
    %272 = vector.load %arg7[%c0_78, %c0_79] : memref<8x128xf32, #tpu.memory_space<vmem>>, vector<8x128xf32>
    tpu.vector_store %arg7[%c0_78, %c0_79], %268 {strides = array<i32>} : memref<8x128xf32, #tpu.memory_space<vmem>>, vector<8x128xf32>,
    return
  }
  func.func @transform_0(%arg0: i32, %arg1: i32) -> (i32, i32) {
    %c0_i32 = arith.constant 0 : i32
    %c0_i32_0 = arith.constant 0 : i32
    return %arg0, %c0_i32 : i32, i32
  }
  func.func @transform_1(%arg0: i32, %arg1: i32) -> (i32, i32, i32) {
    %c0_i32 = arith.constant 0 : i32
    %c0_i32_0 = arith.constant 0 : i32
    return %arg0, %arg1, %c0_i32 : i32, i32, i32
  }
  func.func @transform_2(%arg0: i32, %arg1: i32) -> (i32, i32) {
    %c0_i32 = arith.constant 0 : i32
    %c0_i32_0 = arith.constant 0 : i32
    %c0_i32_1 = arith.constant 0 : i32
    return %c0_i32, %c0_i32_0 : i32, i32
  }
  func.func @transform_3(%arg0: i32, %arg1: i32) -> (i32, i32) {
    %c0_i32 = arith.constant 0 : i32
    %c0_i32_0 = arith.constant 0 : i32
    %c0_i32_1 = arith.constant 0 : i32
    return %c0_i32, %c0_i32_0 : i32, i32
  }
  func.func @transform_4(%arg0: i32, %arg1: i32) -> (i32, i32, i32) {
    %c0_i32 = arith.constant 0 : i32
    %c0_i32_0 = arith.constant 0 : i32
    return %arg0, %arg1, %c0_i32 : i32, i32, i32
  }
}

</mosaic_0001>

<llo_original>
// kernel: gru4rec_forward.3
$region0: #{gru4rec_forward.3}
  #allocation0 [shape = 'u32[]', space=smem, size = 0x4, offset = 0x4, fixed_abs, tag = 'smem constant byte address 0x4 - core index']
  #allocation1 [shape = 'u32[72,128]{1,0:T(1,128)}', space=vmem, size = 0x9000, scoped, tag = 'internal scratch']
  %s0 = inlined_call_operand.vmem [shape: f32[64,32], index: 0, kind: input, shape index: {}]
  %s1 = inlined_call_operand.vmem [shape: f32[32,384], index: 1, kind: input, shape index: {}]
  %s2 = inlined_call_operand.vmem [shape: f32[1,384], index: 2, kind: input, shape index: {}]
  %s3 = inlined_call_operand.vmem [shape: f32[64,384], index: 3, kind: output, shape index: {}]
  %s4 = sld [smem:[#allocation0]]
  $region22: #{gru4rec_forward.3} parent=0
    _
  %s6 = ssub.s32 1, %s4
  %s7 = scalar_select 0, %s6, %s4
  // Predicated region
  $region2: #{gru4rec_forward.3} parent=0 // pred_check
    _
  $region3: #{gru4rec_forward.3} parent=0 // pred_check_branch
    %9 = sbr.rel (0) target = $region5
  $region4: #{gru4rec_forward.3} parent=0 // pred_region
    _
  $region5: #{gru4rec_forward.3} parent=0 // pred_fallthru
    _
  // Predicated region
  $region6: #{gru4rec_forward.3} parent=0 // pred_check
    _
  $region7: #{gru4rec_forward.3} parent=0 // pred_check_branch
    %11 = sbr.rel (0) target = $region9
  $region8: #{gru4rec_forward.3} parent=0 // pred_region
    _
  $region9: #{gru4rec_forward.3} parent=0 // pred_fallthru
    _
  // Predicated region
  $region10: #{gru4rec_forward.3} parent=0 // pred_check
    _
  $region11: #{gru4rec_forward.3} parent=0 // pred_check_branch
    %13 = sbr.rel (0) target = $region13
  $region12: #{gru4rec_forward.3} parent=0 // pred_region
    _
  $region13: #{gru4rec_forward.3} parent=0 // pred_fallthru
    _
  %v14 = vld [vmem:[%s0] sm:$0xff]
  %v15 = vld [vmem:[%s0 + $0x8] sm:$0xff]
  %v16 = vld [vmem:[%s0 + $0x10] sm:$0xff]
  %v17 = vld [vmem:[%s0 + $0x18] sm:$0xff]
  %v18 = vld [vmem:[%s0 + $0x20] sm:$0xff]
  %v19 = vld [vmem:[%s0 + $0x28] sm:$0xff]
  %v20 = vld [vmem:[%s0 + $0x30] sm:$0xff]
  %v21 = vld [vmem:[%s0 + $0x38] sm:$0xff]
  %v22 = vld [vmem:[%s1] sm:$0xff]
  %v23 = vld [vmem:[%s1 + $0x8] sm:$0xff]
  %v24 = vld [vmem:[%s1 + $0x10] sm:$0xff]
  %v25 = vld [vmem:[%s1 + $0x18] sm:$0xff]
  %v26 = vld [vmem:[%s1 + $0x20] sm:$0xff]
  %v27 = vld [vmem:[%s1 + $0x28] sm:$0xff]
  %v28 = vld [vmem:[%s1 + $0x30] sm:$0xff]
  %v29 = vld [vmem:[%s1 + $0x38] sm:$0xff]
  %v30 = vld [vmem:[%s1 + $0x40] sm:$0xff]
  %v31 = vld [vmem:[%s1 + $0x48] sm:$0xff]
  %v32 = vld [vmem:[%s1 + $0x50] sm:$0xff]
  %v33 = vld [vmem:[%s1 + $0x58] sm:$0xff]
  %v34 = vld [vmem:[%s2] sm:$0x7]
  %v36 = vperm.slane %v34, 0
  %v37 = vperm.slane %v34, 1
  %v38 = vperm.slane %v34, 2
  %vm42 = vcmask 261120
  %v44 = vsel %vm42, %v14, 0
  %v47 = vsel %vm42, %v15, 0
  %v50 = vsel %vm42, %v16, 0
  %v53 = vsel %vm42, %v17, 0
  %v56 = vsel %vm42, %v18, 0
  %v59 = vsel %vm42, %v19, 0
  %v62 = vsel %vm42, %v20, 0
  %v65 = vsel %vm42, %v21, 0
  %67 = vmatpush.msra.mxu0 0.0
  %68 = vmatpush.msra.mxu0 0.0
  %69 = vmatpush.msra.mxu0 0.0
  %70 = vmatpush.msra.mxu0 0.0
  %71 = vmatpush.msra.mxu0 0.0
  %72 = vmatpush.msra.mxu0 0.0
  %73 = vmatpush.msra.mxu0 0.0
  %74 = vmatpush.msra.mxu0 0.0
  %75 = vmatpush.msra.mxu0 0.0
  %76 = vmatpush.msra.mxu0 0.0
  %77 = vmatpush.msra.mxu0 0.0
  %78 = vmatpush.msra.mxu0 0.0
  %79 = vmatpush.msra.mxu0 %v31
  %80 = vmatpush.msra.mxu0 %v28
  %81 = vmatpush.msra.mxu0 %v25
  %82 = vmatpush.msra.mxu0 %v22
  %83 = vmatmul.f32.gmra.mxu0 %v44
  %v84 = vpop.f32.mrf.mxu0
  %v85 = vadd.f32 %v36, %v84
  %86 = vmatmul.f32.gmra.mxu0 %v47
  %v87 = vpop.f32.mrf.mxu0
  %v88 = vadd.f32 %v36, %v87
  %89 = vmatmul.f32.gmra.mxu0 %v50
  %v90 = vpop.f32.mrf.mxu0
  %v91 = vadd.f32 %v36, %v90
  %92 = vmatmul.f32.gmra.mxu0 %v53
  %v93 = vpop.f32.mrf.mxu0
  %v94 = vadd.f32 %v36, %v93
  %95 = vmatmul.f32.gmra.mxu0 %v56
  %v96 = vpop.f32.mrf.mxu0
  %v97 = vadd.f32 %v36, %v96
  %98 = vmatmul.f32.gmra.mxu0 %v59
  %v99 = vpop.f32.mrf.mxu0
  %v100 = vadd.f32 %v36, %v99
  %101 = vmatmul.f32.gmra.mxu0 %v62
  %v102 = vpop.f32.mrf.mxu0
  %v103 = vadd.f32 %v36, %v102
  %104 = vmatmul.f32.gmra.mxu0 %v65
  %v105 = vpop.f32.mrf.mxu0
  %v106 = vadd.f32 %v36, %v105
  %107 = vdwg.mxu0
  %108 = vmatpush.msra.mxu0 0.0
  %109 = vmatpush.msra.mxu0 0.0
  %110 = vmatpush.msra.mxu0 0.0
  %111 = vmatpush.msra.mxu0 0.0
  %112 = vmatpush.msra.mxu0 0.0
  %113 = vmatpush.msra.mxu0 0.0
  %114 = vmatpush.msra.mxu0 0.0
  %115 = vmatpush.msra.mxu0 0.0
  %116 = vmatpush.msra.mxu0 0.0
  %117 = vmatpush.msra.mxu0 0.0
  %118 = vmatpush.msra.mxu0 0.0
  %119 = vmatpush.msra.mxu0 0.0
  %120 = vmatpush.msra.mxu0 %v32
  %121 = vmatpush.msra.mxu0 %v29
  %122 = vmatpush.msra.mxu0 %v26
  %123 = vmatpush.msra.mxu0 %v23
  %124 = vmatmul.f32.gmra.mxu0 %v44
  %v125 = vpop.f32.mrf.mxu0
  %v126 = vadd.f32 %v37, %v125
  %127 = vmatmul.f32.gmra.mxu0 %v47
  %v128 = vpop.f32.mrf.mxu0
  %v129 = vadd.f32 %v37, %v128
  %130 = vmatmul.f32.gmra.mxu0 %v50
  %v131 = vpop.f32.mrf.mxu0
  %v132 = vadd.f32 %v37, %v131
  %133 = vmatmul.f32.gmra.mxu0 %v53
  %v134 = vpop.f32.mrf.mxu0
  %v135 = vadd.f32 %v37, %v134
  %136 = vmatmul.f32.gmra.mxu0 %v56
  %v137 = vpop.f32.mrf.mxu0
  %v138 = vadd.f32 %v37, %v137
  %139 = vmatmul.f32.gmra.mxu0 %v59
  %v140 = vpop.f32.mrf.mxu0
  %v141 = vadd.f32 %v37, %v140
  %142 = vmatmul.f32.gmra.mxu0 %v62
  %v143 = vpop.f32.mrf.mxu0
  %v144 = vadd.f32 %v37, %v143
  %145 = vmatmul.f32.gmra.mxu0 %v65
  %v146 = vpop.f32.mrf.mxu0
  %v147 = vadd.f32 %v37, %v146
  %148 = vdwg.mxu0
  %149 = vmatpush.msra.mxu0 0.0
  %150 = vmatpush.msra.mxu0 0.0
  %151 = vmatpush.msra.mxu0 0.0
  %152 = vmatpush.msra.mxu0 0.0
  %153 = vmatpush.msra.mxu0 0.0
  %154 = vmatpush.msra.mxu0 0.0
  %155 = vmatpush.msra.mxu0 0.0
  %156 = vmatpush.msra.mxu0 0.0
  %157 = vmatpush.msra.mxu0 0.0
  %158 = vmatpush.msra.mxu0 0.0
  %159 = vmatpush.msra.mxu0 0.0
  %160 = vmatpush.msra.mxu0 0.0
  %161 = vmatpush.msra.mxu0 %v33
  %162 = vmatpush.msra.mxu0 %v30
  %163 = vmatpush.msra.mxu0 %v27
  %164 = vmatpush.msra.mxu0 %v24
  %165 = vmatmul.f32.gmra.mxu0 %v44
  %v166 = vpop.f32.mrf.mxu0
  %v167 = vadd.f32 %v38, %v166
  %168 = vmatmul.f32.gmra.mxu0 %v47
  %v169 = vpop.f32.mrf.mxu0
  %v170 = vadd.f32 %v38, %v169
  %171 = vmatmul.f32.gmra.mxu0 %v50
  %v172 = vpop.f32.mrf.mxu0
  %v173 = vadd.f32 %v38, %v172
  %174 = vmatmul.f32.gmra.mxu0 %v53
  %v175 = vpop.f32.mrf.mxu0
  %v176 = vadd.f32 %v38, %v175
  %177 = vmatmul.f32.gmra.mxu0 %v56
  %v178 = vpop.f32.mrf.mxu0
  %v179 = vadd.f32 %v38, %v178
  %180 = vmatmul.f32.gmra.mxu0 %v59
  %v181 = vpop.f32.mrf.mxu0
  %v182 = vadd.f32 %v38, %v181
  %183 = vmatmul.f32.gmra.mxu0 %v62
  %v184 = vpop.f32.mrf.mxu0
  %v185 = vadd.f32 %v38, %v184
  %186 = vmatmul.f32.gmra.mxu0 %v65
  %v187 = vpop.f32.mrf.mxu0
  %v188 = vadd.f32 %v38, %v187
  %189 = vdwg.mxu0
  %190 = vst [vmem:[%s3] sm:$0xff] %v85
  %191 = vst [vmem:[%s3 + $0x8] sm:$0xff] %v126
  %192 = vst [vmem:[%s3 + $0x10] sm:$0xff] %v167
  %193 = vst [vmem:[%s3 + $0x18] sm:$0xff] %v88
  %194 = vst [vmem:[%s3 + $0x20] sm:$0xff] %v129
  %195 = vst [vmem:[%s3 + $0x28] sm:$0xff] %v170
  %196 = vst [vmem:[%s3 + $0x30] sm:$0xff] %v91
  %197 = vst [vmem:[%s3 + $0x38] sm:$0xff] %v132
  %198 = vst [vmem:[%s3 + $0x40] sm:$0xff] %v173
  %199 = vst [vmem:[%s3 + $0x48] sm:$0xff] %v94
  %200 = vst [vmem:[%s3 + $0x50] sm:$0xff] %v135
  %201 = vst [vmem:[%s3 + $0x58] sm:$0xff] %v176
  %202 = vst [vmem:[%s3 + $0x60] sm:$0xff] %v97
  %203 = vst [vmem:[%s3 + $0x68] sm:$0xff] %v138
  %204 = vst [vmem:[%s3 + $0x70] sm:$0xff] %v179
  %205 = vst [vmem:[%s3 + $0x78] sm:$0xff] %v100
  %206 = vst [vmem:[%s3 + $0x80] sm:$0xff] %v141
  %207 = vst [vmem:[%s3 + $0x88] sm:$0xff] %v182
  %208 = vst [vmem:[%s3 + $0x90] sm:$0xff] %v103
  %209 = vst [vmem:[%s3 + $0x98] sm:$0xff] %v144
  %210 = vst [vmem:[%s3 + $0xa0] sm:$0xff] %v185
  %211 = vst [vmem:[%s3 + $0xa8] sm:$0xff] %v106
  %212 = vst [vmem:[%s3 + $0xb0] sm:$0xff] %v147
  %213 = vst [vmem:[%s3 + $0xb8] sm:$0xff] %v188
  // Predicated region
  $region14: #{gru4rec_forward.3} parent=0 // pred_check
    _
  $region15: #{gru4rec_forward.3} parent=0 // pred_check_branch
    %215 = sbr.rel (0) target = $region17
  $region16: #{gru4rec_forward.3} parent=0 // pred_region
    _
  $region17: #{gru4rec_forward.3} parent=0 // pred_fallthru
    _
  // Predicated region
  $region18: #{gru4rec_forward.3} parent=0 // pred_check
    _
  $region19: #{gru4rec_forward.3} parent=0 // pred_check_branch
    %217 = sbr.rel (0) target = $region21
  $region20: #{gru4rec_forward.3} parent=0 // pred_region
    _
  $region21: #{gru4rec_forward.3} parent=0 // pred_fallthru
    _

// kernel: gru4rec_forward.5
$region0: #{gru4rec_forward.5}
  #allocation0 [shape = 'u32[]', space=smem, size = 0x4, offset = 0x4, fixed_abs, tag = 'smem constant byte address 0x4 - core index']
  #allocation1 [shape = 'u32[72,128]{1,0:T(1,128)}', space=vmem, size = 0x9000, scoped, tag = 'internal scratch']
  %s0 = inlined_call_operand.vmem [shape: f32[64,128], index: 0, kind: input, shape index: {}]
  %s1 = inlined_call_operand.vmem [shape: f32[128,128], index: 1, kind: input, shape index: {}]
  %s2 = inlined_call_operand.vmem [shape: f32[1,128], index: 2, kind: input, shape index: {}]
  %s3 = inlined_call_operand.vmem [shape: f32[64,128], index: 3, kind: output, shape index: {}]
  %s4 = sld [smem:[#allocation0]]
  $region22: #{gru4rec_forward.5} parent=0
    _
  %s6 = ssub.s32 1, %s4
  %s7 = scalar_select 0, %s6, %s4
  // Predicated region
  $region2: #{gru4rec_forward.5} parent=0 // pred_check
    _
  $region3: #{gru4rec_forward.5} parent=0 // pred_check_branch
    %9 = sbr.rel (0) target = $region5
  $region4: #{gru4rec_forward.5} parent=0 // pred_region
    _
  $region5: #{gru4rec_forward.5} parent=0 // pred_fallthru
    _
  // Predicated region
  $region6: #{gru4rec_forward.5} parent=0 // pred_check
    _
  $region7: #{gru4rec_forward.5} parent=0 // pred_check_branch
    %11 = sbr.rel (0) target = $region9
  $region8: #{gru4rec_forward.5} parent=0 // pred_region
    _
  $region9: #{gru4rec_forward.5} parent=0 // pred_fallthru
    _
  // Predicated region
  $region10: #{gru4rec_forward.5} parent=0 // pred_check
    _
  $region11: #{gru4rec_forward.5} parent=0 // pred_check_branch
    %13 = sbr.rel (0) target = $region13
  $region12: #{gru4rec_forward.5} parent=0 // pred_region
    _
  $region13: #{gru4rec_forward.5} parent=0 // pred_fallthru
    _
  %v14 = vld [vmem:[%s0] sm:$0xff]
  %v15 = vld [vmem:[%s0 + $0x8] sm:$0xff]
  %v16 = vld [vmem:[%s0 + $0x10] sm:$0xff]
  %v17 = vld [vmem:[%s0 + $0x18] sm:$0xff]
  %v18 = vld [vmem:[%s0 + $0x20] sm:$0xff]
  %v19 = vld [vmem:[%s0 + $0x28] sm:$0xff]
  %v20 = vld [vmem:[%s0 + $0x30] sm:$0xff]
  %v21 = vld [vmem:[%s0 + $0x38] sm:$0xff]
  %v22 = vld [vmem:[%s1] sm:$0xff]
  %v23 = vld [vmem:[%s1 + $0x8] sm:$0xff]
  %v24 = vld [vmem:[%s1 + $0x10] sm:$0xff]
  %v25 = vld [vmem:[%s1 + $0x18] sm:$0xff]
  %v26 = vld [vmem:[%s1 + $0x20] sm:$0xff]
  %v27 = vld [vmem:[%s1 + $0x28] sm:$0xff]
  %v28 = vld [vmem:[%s1 + $0x30] sm:$0xff]
  %v29 = vld [vmem:[%s1 + $0x38] sm:$0xff]
  %v30 = vld [vmem:[%s1 + $0x40] sm:$0xff]
  %v31 = vld [vmem:[%s1 + $0x48] sm:$0xff]
  %v32 = vld [vmem:[%s1 + $0x50] sm:$0xff]
  %v33 = vld [vmem:[%s1 + $0x58] sm:$0xff]
  %v34 = vld [vmem:[%s1 + $0x60] sm:$0xff]
  %v35 = vld [vmem:[%s1 + $0x68] sm:$0xff]
  %v36 = vld [vmem:[%s1 + $0x70] sm:$0xff]
  %v37 = vld [vmem:[%s1 + $0x78] sm:$0xff]
  %v38 = vld [vmem:[%s2] sm:$0x1]
  %v40 = vperm.slane %v38, 0
  %42 = vmatpush.msra.mxu0 %v37
  %43 = vmatpush.msra.mxu0 %v36
  %44 = vmatpush.msra.mxu0 %v35
  %45 = vmatpush.msra.mxu0 %v34
  %46 = vmatpush.msra.mxu0 %v33
  %47 = vmatpush.msra.mxu0 %v32
  %48 = vmatpush.msra.mxu0 %v31
  %49 = vmatpush.msra.mxu0 %v30
  %50 = vmatpush.msra.mxu0 %v29
  %51 = vmatpush.msra.mxu0 %v28
  %52 = vmatpush.msra.mxu0 %v27
  %53 = vmatpush.msra.mxu0 %v26
  %54 = vmatpush.msra.mxu0 %v25
  %55 = vmatpush.msra.mxu0 %v24
  %56 = vmatpush.msra.mxu0 %v23
  %57 = vmatpush.msra.mxu0 %v22
  %58 = vmatmul.f32.gmra.mxu0 %v14
  %v59 = vpop.f32.mrf.mxu0
  %v60 = vadd.f32 %v40, %v59
  %61 = vmatmul.f32.gmra.mxu0 %v15
  %v62 = vpop.f32.mrf.mxu0
  %v63 = vadd.f32 %v40, %v62
  %64 = vmatmul.f32.gmra.mxu0 %v16
  %v65 = vpop.f32.mrf.mxu0
  %v66 = vadd.f32 %v40, %v65
  %67 = vmatmul.f32.gmra.mxu0 %v17
  %v68 = vpop.f32.mrf.mxu0
  %v69 = vadd.f32 %v40, %v68
  %70 = vmatmul.f32.gmra.mxu0 %v18
  %v71 = vpop.f32.mrf.mxu0
  %v72 = vadd.f32 %v40, %v71
  %73 = vmatmul.f32.gmra.mxu0 %v19
  %v74 = vpop.f32.mrf.mxu0
  %v75 = vadd.f32 %v40, %v74
  %76 = vmatmul.f32.gmra.mxu0 %v20
  %v77 = vpop.f32.mrf.mxu0
  %v78 = vadd.f32 %v40, %v77
  %79 = vmatmul.f32.gmra.mxu0 %v21
  %v80 = vpop.f32.mrf.mxu0
  %v81 = vadd.f32 %v40, %v80
  %82 = vdwg.mxu0
  %83 = vst [vmem:[%s3] sm:$0xff] %v60
  %84 = vst [vmem:[%s3 + $0x8] sm:$0xff] %v63
  %85 = vst [vmem:[%s3 + $0x10] sm:$0xff] %v66
  %86 = vst [vmem:[%s3 + $0x18] sm:$0xff] %v69
  %87 = vst [vmem:[%s3 + $0x20] sm:$0xff] %v72
  %88 = vst [vmem:[%s3 + $0x28] sm:$0xff] %v75
  %89 = vst [vmem:[%s3 + $0x30] sm:$0xff] %v78
  %90 = vst [vmem:[%s3 + $0x38] sm:$0xff] %v81
  // Predicated region
  $region14: #{gru4rec_forward.5} parent=0 // pred_check
    _
  $region15: #{gru4rec_forward.5} parent=0 // pred_check_branch
    %92 = sbr.rel (0) target = $region17
  $region16: #{gru4rec_forward.5} parent=0 // pred_region
    _
  $region17: #{gru4rec_forward.5} parent=0 // pred_fallthru
    _
  // Predicated region
  $region18: #{gru4rec_forward.5} parent=0 // pred_check
    _
  $region19: #{gru4rec_forward.5} parent=0 // pred_check_branch
    %94 = sbr.rel (0) target = $region21
  $region20: #{gru4rec_forward.5} parent=0 // pred_region
    _
  $region21: #{gru4rec_forward.5} parent=0 // pred_fallthru
    _

// kernel: gru4rec_forward.4
$region0: #{gru4rec_forward.4}
  #allocation0 [shape = 'u32[]', space=smem, size = 0x4, offset = 0x4, fixed_abs, tag = 'smem constant byte address 0x4 - core index']
  #allocation1 [shape = 'u32[72,128]{1,0:T(1,128)}', space=vmem, size = 0x9000, scoped, tag = 'internal scratch']
  #allocation2 [shape = 'f32[8,128]{1,0:T(8,128)}', space=vmem, size = 0x1000, scoped, tag = 'scratch operand']
  %s0 = inlined_call_operand.vmem [shape: f32[8,128], index: 0, kind: input, shape index: {}]
  %s1 = inlined_call_operand.vmem [shape: f32[8,8,384], index: 1, kind: input, shape index: {}]
  %s2 = inlined_call_operand.vmem [shape: f32[128,384], index: 2, kind: input, shape index: {}]
  %s3 = inlined_call_operand.vmem [shape: f32[1,384], index: 3, kind: input, shape index: {}]
  %s4 = inlined_call_operand.vmem [shape: f32[8,8,128], index: 4, kind: output, shape index: {}]
  %s5 = sld [smem:[#allocation0]]
  $region30: #{gru4rec_forward.4} parent=0
    _
  %s7 = ssub.s32 1, %s5
  %s8 = scalar_select 0, %s7, %s5
  // Predicated region
  $region2: #{gru4rec_forward.4} parent=0 // pred_check
    _
  $region3: #{gru4rec_forward.4} parent=0 // pred_check_branch
    %10 = sbr.rel (0) target = $region5
  $region4: #{gru4rec_forward.4} parent=0 // pred_region
    _
  $region5: #{gru4rec_forward.4} parent=0 // pred_fallthru
    _
  // Predicated region
  $region6: #{gru4rec_forward.4} parent=0 // pred_check
    _
  $region7: #{gru4rec_forward.4} parent=0 // pred_check_branch
    %12 = sbr.rel (0) target = $region9
  $region8: #{gru4rec_forward.4} parent=0 // pred_region
    _
  $region9: #{gru4rec_forward.4} parent=0 // pred_fallthru
    _
  // Predicated region
  $region10: #{gru4rec_forward.4} parent=0 // pred_check
    _
  $region11: #{gru4rec_forward.4} parent=0 // pred_check_branch
    %14 = sbr.rel (0) target = $region13
  $region12: #{gru4rec_forward.4} parent=0 // pred_region
    _
  $region13: #{gru4rec_forward.4} parent=0 // pred_fallthru
    _
  // Predicated region
  $region14: #{gru4rec_forward.4} parent=0 // pred_check
    _
  $region15: #{gru4rec_forward.4} parent=0 // pred_check_branch
    %16 = sbr.rel (0) target = $region17
  $region16: #{gru4rec_forward.4} parent=0 // pred_region
    _
  $region17: #{gru4rec_forward.4} parent=0 // pred_fallthru
    _
  %p17 = scmp.eq.s32.totalorder 0, 0
  // Predicated region
  $region18: #{gru4rec_forward.4} parent=0 // pred_check
    %p18 = pneg %p17
  $region19: #{gru4rec_forward.4} parent=0 // pred_check_branch
    %20 = sbr.rel (%p18) target = $region21
  $region20: #{gru4rec_forward.4} parent=0 // pred_region
    %v21 = vld [vmem:[%s0] sm:$0xff]
    %22 = vst [vmem:[#allocation2] sm:$0xff] %v21
  $region21: #{gru4rec_forward.4} parent=0 // pred_fallthru
    _
  %v23 = vld [vmem:[#allocation2] sm:$0xff]
  %v24 = vld [vmem:[%s2] sm:$0xff]
  %v25 = vld [vmem:[%s2 + $0x8] sm:$0xff]
  %v26 = vld [vmem:[%s2 + $0x10] sm:$0xff]
  %v27 = vld [vmem:[%s2 + $0x18] sm:$0xff]
  %v28 = vld [vmem:[%s2 + $0x20] sm:$0xff]
  %v29 = vld [vmem:[%s2 + $0x28] sm:$0xff]
  %v30 = vld [vmem:[%s2 + $0x30] sm:$0xff]
  %v31 = vld [vmem:[%s2 + $0x38] sm:$0xff]
  %v32 = vld [vmem:[%s2 + $0x40] sm:$0xff]
  %v33 = vld [vmem:[%s2 + $0x48] sm:$0xff]
  %v34 = vld [vmem:[%s2 + $0x50] sm:$0xff]
  %v35 = vld [vmem:[%s2 + $0x58] sm:$0xff]
  %v36 = vld [vmem:[%s2 + $0x60] sm:$0xff]
  %v37 = vld [vmem:[%s2 + $0x68] sm:$0xff]
  %v38 = vld [vmem:[%s2 + $0x70] sm:$0xff]
  %v39 = vld [vmem:[%s2 + $0x78] sm:$0xff]
  %v40 = vld [vmem:[%s2 + $0x80] sm:$0xff]
  %v41 = vld [vmem:[%s2 + $0x88] sm:$0xff]
  %v42 = vld [vmem:[%s2 + $0x90] sm:$0xff]
  %v43 = vld [vmem:[%s2 + $0x98] sm:$0xff]
  %v44 = vld [vmem:[%s2 + $0xa0] sm:$0xff]
  %v45 = vld [vmem:[%s2 + $0xa8] sm:$0xff]
  %v46 = vld [vmem:[%s2 + $0xb0] sm:$0xff]
  %v47 = vld [vmem:[%s2 + $0xb8] sm:$0xff]
  %v48 = vld [vmem:[%s2 + $0xc0] sm:$0xff]
  %v49 = vld [vmem:[%s2 + $0xc8] sm:$0xff]
  %v50 = vld [vmem:[%s2 + $0xd0] sm:$0xff]
  %v51 = vld [vmem:[%s2 + $0xd8] sm:$0xff]
  %v52 = vld [vmem:[%s2 + $0xe0] sm:$0xff]
  %v53 = vld [vmem:[%s2 + $0xe8] sm:$0xff]
  %v54 = vld [vmem:[%s2 + $0xf0] sm:$0xff]
  %v55 = vld [vmem:[%s2 + $0xf8] sm:$0xff]
  %v56 = vld [vmem:[%s2 + $0x100] sm:$0xff]
  %v57 = vld [vmem:[%s2 + $0x108] sm:$0xff]
  %v58 = vld [vmem:[%s2 + $0x110] sm:$0xff]
  %v59 = vld [vmem:[%s2 + $0x118] sm:$0xff]
  %v60 = vld [vmem:[%s2 + $0x120] sm:$0xff]
  %v61 = vld [vmem:[%s2 + $0x128] sm:$0xff]
  %v62 = vld [vmem:[%s2 + $0x130] sm:$0xff]
  %v63 = vld [vmem:[%s2 + $0x138] sm:$0xff]
  %v64 = vld [vmem:[%s2 + $0x140] sm:$0xff]
  %v65 = vld [vmem:[%s2 + $0x148] sm:$0xff]
  %v66 = vld [vmem:[%s2 + $0x150] sm:$0xff]
  %v67 = vld [vmem:[%s2 + $0x158] sm:$0xff]
  %v68 = vld [vmem:[%s2 + $0x160] sm:$0xff]
  %v69 = vld [vmem:[%s2 + $0x168] sm:$0xff]
  %v70 = vld [vmem:[%s2 + $0x170] sm:$0xff]
  %v71 = vld [vmem:[%s2 + $0x178] sm:$0xff]
  %v72 = vld [vmem:[%s3] sm:$0x7]
  %v74 = vperm.slane %v72, 0
  %v75 = vperm.slane %v72, 1
  %v76 = vperm.slane %v72, 2
  %v80 = vld [vmem:[%s1] ss:$8 sm:$0x7]
  %s81 = scalar_lea.vmem %s1, 24
  %v82 = vld [vmem:[%s81] ss:$8 sm:$0x7]
  %s83 = scalar_lea.vmem %s1, 48
  %v84 = vld [vmem:[%s83] ss:$8 sm:$0x7]
  %s85 = scalar_lea.vmem %s1, 72
  %v86 = vld [vmem:[%s85] ss:$8 sm:$0x7]
  %s87 = scalar_lea.vmem %s1, 96
  %v88 = vld [vmem:[%s87] ss:$8 sm:$0x7]
  %s89 = scalar_lea.vmem %s1, 120
  %v90 = vld [vmem:[%s89] ss:$8 sm:$0x7]
  %s91 = scalar_lea.vmem %s1, 144
  %v92 = vld [vmem:[%s91] ss:$8 sm:$0x7]
  %s93 = scalar_lea.vmem %s1, 168
  %v94 = vld [vmem:[%s93] ss:$8 sm:$0x7]
  %95 = vmatpush.msra.mxu0 %v69
  %96 = vmatpush.msra.mxu0 %v66
  %97 = vmatpush.msra.mxu0 %v63
  %98 = vmatpush.msra.mxu0 %v60
  %99 = vmatpush.msra.mxu0 %v57
  %100 = vmatpush.msra.mxu0 %v54
  %101 = vmatpush.msra.mxu0 %v51
  %102 = vmatpush.msra.mxu0 %v48
  %103 = vmatpush.msra.mxu0 %v45
  %104 = vmatpush.msra.mxu0 %v42
  %105 = vmatpush.msra.mxu0 %v39
  %106 = vmatpush.msra.mxu0 %v36
  %107 = vmatpush.msra.mxu0 %v33
  %108 = vmatpush.msra.mxu0 %v30
  %109 = vmatpush.msra.mxu0 %v27
  %110 = vmatpush.msra.mxu0 %v24
  %111 = vmatmul.f32.gmra.mxu0 %v23
  %v112 = vpop.f32.mrf.mxu0
  %v113 = vadd.f32 %v74, %v112
  %114 = vdwg.mxu0
  %115 = vmatpush.msra.mxu0 %v70
  %116 = vmatpush.msra.mxu0 %v67
  %117 = vmatpush.msra.mxu0 %v64
  %118 = vmatpush.msra.mxu0 %v61
  %119 = vmatpush.msra.mxu0 %v58
  %120 = vmatpush.msra.mxu0 %v55
  %121 = vmatpush.msra.mxu0 %v52
  %122 = vmatpush.msra.mxu0 %v49
  %123 = vmatpush.msra.mxu0 %v46
  %124 = vmatpush.msra.mxu0 %v43
  %125 = vmatpush.msra.mxu0 %v40
  %126 = vmatpush.msra.mxu0 %v37
  %127 = vmatpush.msra.mxu0 %v34
  %128 = vmatpush.msra.mxu0 %v31
  %129 = vmatpush.msra.mxu0 %v28
  %130 = vmatpush.msra.mxu0 %v25
  %131 = vmatmul.f32.gmra.mxu0 %v23
  %v132 = vpop.f32.mrf.mxu0
  %v133 = vadd.f32 %v75, %v132
  %134 = vdwg.mxu0
  %135 = vmatpush.msra.mxu0 %v71
  %136 = vmatpush.msra.mxu0 %v68
  %137 = vmatpush.msra.mxu0 %v65
  %138 = vmatpush.msra.mxu0 %v62
  %139 = vmatpush.msra.mxu0 %v59
  %140 = vmatpush.msra.mxu0 %v56
  %141 = vmatpush.msra.mxu0 %v53
  %142 = vmatpush.msra.mxu0 %v50
  %143 = vmatpush.msra.mxu0 %v47
  %144 = vmatpush.msra.mxu0 %v44
  %145 = vmatpush.msra.mxu0 %v41
  %146 = vmatpush.msra.mxu0 %v38
  %147 = vmatpush.msra.mxu0 %v35
  %148 = vmatpush.msra.mxu0 %v32
  %149 = vmatpush.msra.mxu0 %v29
  %150 = vmatpush.msra.mxu0 %v26
  %151 = vmatmul.f32.gmra.mxu0 %v23
  %v152 = vpop.f32.mrf.mxu0
  %v153 = vadd.f32 %v76, %v152
  %154 = vdwg.mxu0
  %v156 = vrot.slane %v113, 1
  %v157 = vrot.slane %v113, 2
  %v158 = vrot.slane %v113, 3
  %v159 = vrot.slane %v113, 4
  %v160 = vrot.slane %v113, 5
  %v161 = vrot.slane %v113, 6
  %v162 = vrot.slane %v113, 7
  %v170 = vadd.f32 %v80, %v113
  %v171 = vadd.f32 %v82, %v156
  %v172 = vadd.f32 %v84, %v157
  %v173 = vadd.f32 %v86, %v158
  %v174 = vadd.f32 %v88, %v159
  %v175 = vadd.f32 %v90, %v160
  %v176 = vadd.f32 %v92, %v161
  %v177 = vadd.f32 %v94, %v162
  %v178 = vxor.u32 %v170, 2147483648
  %v179 = vxor.u32 %v171, 2147483648
  %v180 = vxor.u32 %v172, 2147483648
  %v181 = vxor.u32 %v173, 2147483648
  %v182 = vxor.u32 %v174, 2147483648
  %v183 = vxor.u32 %v175, 2147483648
  %v184 = vxor.u32 %v176, 2147483648
  %v185 = vxor.u32 %v177, 2147483648
  %v186 = vmul.f32 %v178, 1.442695
  %v187 = vpow.pop %v186
  %v188 = vmul.f32 %v179, 1.442695
  %v189 = vpow.pop %v188
  %v190 = vmul.f32 %v180, 1.442695
  %v191 = vpow.pop %v190
  %v192 = vmul.f32 %v181, 1.442695
  %v193 = vpow.pop %v192
  %v194 = vmul.f32 %v182, 1.442695
  %v195 = vpow.pop %v194
  %v196 = vmul.f32 %v183, 1.442695
  %v197 = vpow.pop %v196
  %v198 = vmul.f32 %v184, 1.442695
  %v199 = vpow.pop %v198
  %v200 = vmul.f32 %v185, 1.442695
  %v201 = vpow.pop %v200
  %v202 = vadd.f32 %v187, 1.0
  %v203 = vadd.f32 %v189, 1.0
  %v204 = vadd.f32 %v191, 1.0
  %v205 = vadd.f32 %v193, 1.0
  %v206 = vadd.f32 %v195, 1.0
  %v207 = vadd.f32 %v197, 1.0
  %v208 = vadd.f32 %v199, 1.0
  %v209 = vadd.f32 %v201, 1.0
  %v210 = vrcp.pop %v202
  %v211 = vmul.f32 %v202, %v210
  %v212 = vsub.f32 1.0, %v211
  %v213 = vmul.f32 %v210, %v212
  %v214 = vadd.f32 %v210, %v213
  %vm215 = vweird.f32 %v202
  %vm216 = vweird.f32 %v210
  %vm217 = vmor %vm215, %vm216
  %v218 = vsel %vm217, %v210, %v214
  %v219 = vand.u32 2147483647, %v202
  %vm220 = vcmp.eq.f32.partialorder %v219, 8.507059e+37
  %v221 = vand.u32 %v202, 2147483648
  %v222 = vor.u32 1.1754944e-38, %v221
  %v223 = vsel %vm220, %v222, %v218
  %v224 = vmul.f32 1.0, %v223
  %v225 = vrcp.pop %v203
  %v226 = vmul.f32 %v203, %v225
  %v227 = vsub.f32 1.0, %v226
  %v228 = vmul.f32 %v225, %v227
  %v229 = vadd.f32 %v225, %v228
  %vm230 = vweird.f32 %v203
  %vm231 = vweird.f32 %v225
  %vm232 = vmor %vm230, %vm231
  %v233 = vsel %vm232, %v225, %v229
  %v234 = vand.u32 2147483647, %v203
  %vm235 = vcmp.eq.f32.partialorder %v234, 8.507059e+37
  %v236 = vand.u32 %v203, 2147483648
  %v237 = vor.u32 1.1754944e-38, %v236
  %v238 = vsel %vm235, %v237, %v233
  %v239 = vmul.f32 1.0, %v238
  %v240 = vrcp.pop %v204
  %v241 = vmul.f32 %v204, %v240
  %v242 = vsub.f32 1.0, %v241
  %v243 = vmul.f32 %v240, %v242
  %v244 = vadd.f32 %v240, %v243
  %vm245 = vweird.f32 %v204
  %vm246 = vweird.f32 %v240
  %vm247 = vmor %vm245, %vm246
  %v248 = vsel %vm247, %v240, %v244
  %v249 = vand.u32 2147483647, %v204
  %vm250 = vcmp.eq.f32.partialorder %v249, 8.507059e+37
  %v251 = vand.u32 %v204, 2147483648
  %v252 = vor.u32 1.1754944e-38, %v251
  %v253 = vsel %vm250, %v252, %v248
  %v254 = vmul.f32 1.0, %v253
  %v255 = vrcp.pop %v205
  %v256 = vmul.f32 %v205, %v255
  %v257 = vsub.f32 1.0, %v256
  %v258 = vmul.f32 %v255, %v257
  %v259 = vadd.f32 %v255, %v258
  %vm260 = vweird.f32 %v205
  %vm261 = vweird.f32 %v255
  %vm262 = vmor %vm260, %vm261
  %v263 = vsel %vm262, %v255, %v259
  %v264 = vand.u32 2147483647, %v205
  %vm265 = vcmp.eq.f32.partialorder %v264, 8.507059e+37
  %v266 = vand.u32 %v205, 2147483648
  %v267 = vor.u32 1.1754944e-38, %v266
  %v268 = vsel %vm265, %v267, %v263
  %v269 = vmul.f32 1.0, %v268
  %v270 = vrcp.pop %v206
  %v271 = vmul.f32 %v206, %v270
  %v272 = vsub.f32 1.0, %v271
  %v273 = vmul.f32 %v270, %v272
  %v274 = vadd.f32 %v270, %v273
  %vm275 = vweird.f32 %v206
  %vm276 = vweird.f32 %v270
  %vm277 = vmor %vm275, %vm276
  %v278 = vsel %vm277, %v270, %v274
  %v279 = vand.u32 2147483647, %v206
  %vm280 = vcmp.eq.f32.partialorder %v279, 8.507059e+37
  %v281 = vand.u32 %v206, 2147483648
  %v282 = vor.u32 1.1754944e-38, %v281
  %v283 = vsel %vm280, %v282, %v278
  %v284 = vmul.f32 1.0, %v283
  %v285 = vrcp.pop %v207
  %v286 = vmul.f32 %v207, %v285
  %v287 = vsub.f32 1.0, %v286
  %v288 = vmul.f32 %v285, %v287
  %v289 = vadd.f32 %v285, %v288
  %vm290 = vweird.f32 %v207
  %vm291 = vweird.f32 %v285
  %vm292 = vmor %vm290, %vm291
  %v293 = vsel %vm292, %v285, %v289
  %v294 = vand.u32 2147483647, %v207
  %vm295 = vcmp.eq.f32.partialorder %v294, 8.507059e+37
  %v296 = vand.u32 %v207, 2147483648
  %v297 = vor.u32 1.1754944e-38, %v296
  %v298 = vsel %vm295, %v297, %v293
  %v299 = vmul.f32 1.0, %v298
  %v300 = vrcp.pop %v208
  %v301 = vmul.f32 %v208, %v300
  %v302 = vsub.f32 1.0, %v301
  %v303 = vmul.f32 %v300, %v302
  %v304 = vadd.f32 %v300, %v303
  %vm305 = vweird.f32 %v208
  %vm306 = vweird.f32 %v300
  %vm307 = vmor %vm305, %vm306
  %v308 = vsel %vm307, %v300, %v304
  %v309 = vand.u32 2147483647, %v208
  %vm310 = vcmp.eq.f32.partialorder %v309, 8.507059e+37
  %v311 = vand.u32 %v208, 2147483648
  %v312 = vor.u32 1.1754944e-38, %v311
  %v313 = vsel %vm310, %v312, %v308
  %v314 = vmul.f32 1.0, %v313
  %v315 = vrcp.pop %v209
  %v316 = vmul.f32 %v209, %v315
  %v317 = vsub.f32 1.0, %v316
  %v318 = vmul.f32 %v315, %v317
  %v319 = vadd.f32 %v315, %v318
  %vm320 = vweird.f32 %v209
  %vm321 = vweird.f32 %v315
  %vm322 = vmor %vm320, %vm321
  %v323 = vsel %vm322, %v315, %v319
  %v324 = vand.u32 2147483647, %v209
  %vm325 = vcmp.eq.f32.partialorder %v324, 8.507059e+37
  %v326 = vand.u32 %v209, 2147483648
  %v327 = vor.u32 1.1754944e-38, %v326
  %v328 = vsel %vm325, %v327, %v323
  %v329 = vmul.f32 1.0, %v328
  %v338 = vrot.slane %v80, 1
  %v339 = vrot.slane %v82, 1
  %v340 = vrot.slane %v84, 1
  %v341 = vrot.slane %v86, 1
  %v342 = vrot.slane %v88, 1
  %v343 = vrot.slane %v90, 1
  %v344 = vrot.slane %v92, 1
  %v345 = vrot.slane %v94, 1
  %v355 = vrot.slane %v133, 1
  %v356 = vrot.slane %v133, 2
  %v357 = vrot.slane %v133, 3
  %v358 = vrot.slane %v133, 4
  %v359 = vrot.slane %v133, 5
  %v360 = vrot.slane %v133, 6
  %v361 = vrot.slane %v133, 7
  %v369 = vadd.f32 %v338, %v133
  %v370 = vadd.f32 %v339, %v355
  %v371 = vadd.f32 %v340, %v356
  %v372 = vadd.f32 %v341, %v357
  %v373 = vadd.f32 %v342, %v358
  %v374 = vadd.f32 %v343, %v359
  %v375 = vadd.f32 %v344, %v360
  %v376 = vadd.f32 %v345, %v361
  %v377 = vxor.u32 %v369, 2147483648
  %v378 = vxor.u32 %v370, 2147483648
  %v379 = vxor.u32 %v371, 2147483648
  %v380 = vxor.u32 %v372, 2147483648
  %v381 = vxor.u32 %v373, 2147483648
  %v382 = vxor.u32 %v374, 2147483648
  %v383 = vxor.u32 %v375, 2147483648
  %v384 = vxor.u32 %v376, 2147483648
  %v385 = vmul.f32 %v377, 1.442695
  %v386 = vpow.pop %v385
  %v387 = vmul.f32 %v378, 1.442695
  %v388 = vpow.pop %v387
  %v389 = vmul.f32 %v379, 1.442695
  %v390 = vpow.pop %v389
  %v391 = vmul.f32 %v380, 1.442695
  %v392 = vpow.pop %v391
  %v393 = vmul.f32 %v381, 1.442695
  %v394 = vpow.pop %v393
  %v395 = vmul.f32 %v382, 1.442695
  %v396 = vpow.pop %v395
  %v397 = vmul.f32 %v383, 1.442695
  %v398 = vpow.pop %v397
  %v399 = vmul.f32 %v384, 1.442695
  %v400 = vpow.pop %v399
  %v401 = vadd.f32 %v386, 1.0
  %v402 = vadd.f32 %v388, 1.0
  %v403 = vadd.f32 %v390, 1.0
  %v404 = vadd.f32 %v392, 1.0
  %v405 = vadd.f32 %v394, 1.0
  %v406 = vadd.f32 %v396, 1.0
  %v407 = vadd.f32 %v398, 1.0
  %v408 = vadd.f32 %v400, 1.0
  %v409 = vrcp.pop %v401
  %v410 = vmul.f32 %v401, %v409
  %v411 = vsub.f32 1.0, %v410
  %v412 = vmul.f32 %v409, %v411
  %v413 = vadd.f32 %v409, %v412
  %vm414 = vweird.f32 %v401
  %vm415 = vweird.f32 %v409
  %vm416 = vmor %vm414, %vm415
  %v417 = vsel %vm416, %v409, %v413
  %v418 = vand.u32 2147483647, %v401
  %vm419 = vcmp.eq.f32.partialorder %v418, 8.507059e+37
  %v420 = vand.u32 %v401, 2147483648
  %v421 = vor.u32 1.1754944e-38, %v420
  %v422 = vsel %vm419, %v421, %v417
  %v423 = vmul.f32 1.0, %v422
  %v424 = vrcp.pop %v402
  %v425 = vmul.f32 %v402, %v424
  %v426 = vsub.f32 1.0, %v425
  %v427 = vmul.f32 %v424, %v426
  %v428 = vadd.f32 %v424, %v427
  %vm429 = vweird.f32 %v402
  %vm430 = vweird.f32 %v424
  %vm431 = vmor %vm429, %vm430
  %v432 = vsel %vm431, %v424, %v428
  %v433 = vand.u32 2147483647, %v402
  %vm434 = vcmp.eq.f32.partialorder %v433, 8.507059e+37
  %v435 = vand.u32 %v402, 2147483648
  %v436 = vor.u32 1.1754944e-38, %v435
  %v437 = vsel %vm434, %v436, %v432
  %v438 = vmul.f32 1.0, %v437
  %v439 = vrcp.pop %v403
  %v440 = vmul.f32 %v403, %v439
  %v441 = vsub.f32 1.0, %v440
  %v442 = vmul.f32 %v439, %v441
  %v443 = vadd.f32 %v439, %v442
  %vm444 = vweird.f32 %v403
  %vm445 = vweird.f32 %v439
  %vm446 = vmor %vm444, %vm445
  %v447 = vsel %vm446, %v439, %v443
  %v448 = vand.u32 2147483647, %v403
  %vm449 = vcmp.eq.f32.partialorder %v448, 8.507059e+37
  %v450 = vand.u32 %v403, 2147483648
  %v451 = vor.u32 1.1754944e-38, %v450
  %v452 = vsel %vm449, %v451, %v447
  %v453 = vmul.f32 1.0, %v452
  %v454 = vrcp.pop %v404
  %v455 = vmul.f32 %v404, %v454
  %v456 = vsub.f32 1.0, %v455
  %v457 = vmul.f32 %v454, %v456
  %v458 = vadd.f32 %v454, %v457
  %vm459 = vweird.f32 %v404
  %vm460 = vweird.f32 %v454
  %vm461 = vmor %vm459, %vm460
  %v462 = vsel %vm461, %v454, %v458
  %v463 = vand.u32 2147483647, %v404
  %vm464 = vcmp.eq.f32.partialorder %v463, 8.507059e+37
  %v465 = vand.u32 %v404, 2147483648
  %v466 = vor.u32 1.1754944e-38, %v465
  %v467 = vsel %vm464, %v466, %v462
  %v468 = vmul.f32 1.0, %v467
  %v469 = vrcp.pop %v405
  %v470 = vmul.f32 %v405, %v469
  %v471 = vsub.f32 1.0, %v470
  %v472 = vmul.f32 %v469, %v471
  %v473 = vadd.f32 %v469, %v472
  %vm474 = vweird.f32 %v405
  %vm475 = vweird.f32 %v469
  %vm476 = vmor %vm474, %vm475
  %v477 = vsel %vm476, %v469, %v473
  %v478 = vand.u32 2147483647, %v405
  %vm479 = vcmp.eq.f32.partialorder %v478, 8.507059e+37
  %v480 = vand.u32 %v405, 2147483648
  %v481 = vor.u32 1.1754944e-38, %v480
  %v482 = vsel %vm479, %v481, %v477
  %v483 = vmul.f32 1.0, %v482
  %v484 = vrcp.pop %v406
  %v485 = vmul.f32 %v406, %v484
  %v486 = vsub.f32 1.0, %v485
  %v487 = vmul.f32 %v484, %v486
  %v488 = vadd.f32 %v484, %v487
  %vm489 = vweird.f32 %v406
  %vm490 = vweird.f32 %v484
  %vm491 = vmor %vm489, %vm490
  %v492 = vsel %vm491, %v484, %v488
  %v493 = vand.u32 2147483647, %v406
  %vm494 = vcmp.eq.f32.partialorder %v493, 8.507059e+37
  %v495 = vand.u32 %v406, 2147483648
  %v496 = vor.u32 1.1754944e-38, %v495
  %v497 = vsel %vm494, %v496, %v492
  %v498 = vmul.f32 1.0, %v497
  %v499 = vrcp.pop %v407
  %v500 = vmul.f32 %v407, %v499
  %v501 = vsub.f32 1.0, %v500
  %v502 = vmul.f32 %v499, %v501
  %v503 = vadd.f32 %v499, %v502
  %vm504 = vweird.f32 %v407
  %vm505 = vweird.f32 %v499
  %vm506 = vmor %vm504, %vm505
  %v507 = vsel %vm506, %v499, %v503
  %v508 = vand.u32 2147483647, %v407
  %vm509 = vcmp.eq.f32.partialorder %v508, 8.507059e+37
  %v510 = vand.u32 %v407, 2147483648
  %v511 = vor.u32 1.1754944e-38, %v510
  %v512 = vsel %vm509, %v511, %v507
  %v513 = vmul.f32 1.0, %v512
  %v514 = vrcp.pop %v408
  %v515 = vmul.f32 %v408, %v514
  %v516 = vsub.f32 1.0, %v515
  %v517 = vmul.f32 %v514, %v516
  %v518 = vadd.f32 %v514, %v517
  %vm519 = vweird.f32 %v408
  %vm520 = vweird.f32 %v514
  %vm521 = vmor %vm519, %vm520
  %v522 = vsel %vm521, %v514, %v518
  %v523 = vand.u32 2147483647, %v408
  %vm524 = vcmp.eq.f32.partialorder %v523, 8.507059e+37
  %v525 = vand.u32 %v408, 2147483648
  %v526 = vor.u32 1.1754944e-38, %v525
  %v527 = vsel %vm524, %v526, %v522
  %v528 = vmul.f32 1.0, %v527
  %v530 = vrot.slane %v153, 1
  %v531 = vrot.slane %v153, 2
  %v532 = vrot.slane %v153, 3
  %v533 = vrot.slane %v153, 4
  %v534 = vrot.slane %v153, 5
  %v535 = vrot.slane %v153, 6
  %v536 = vrot.slane %v153, 7
  %v544 = vmul.f32 %v224, %v153
  %v545 = vmul.f32 %v239, %v530
  %v546 = vmul.f32 %v254, %v531
  %v547 = vmul.f32 %v269, %v532
  %v548 = vmul.f32 %v284, %v533
  %v549 = vmul.f32 %v299, %v534
  %v550 = vmul.f32 %v314, %v535
  %v551 = vmul.f32 %v329, %v536
  %v552 = vrot.slane %v80, 2
  %v553 = vrot.slane %v82, 2
  %v554 = vrot.slane %v84, 2
  %v555 = vrot.slane %v86, 2
  %v556 = vrot.slane %v88, 2
  %v557 = vrot.slane %v90, 2
  %v558 = vrot.slane %v92, 2
  %v559 = vrot.slane %v94, 2
  %v568 = vadd.f32 %v552, %v544
  %v569 = vadd.f32 %v553, %v545
  %v570 = vadd.f32 %v554, %v546
  %v571 = vadd.f32 %v555, %v547
  %v572 = vadd.f32 %v556, %v548
  %v573 = vadd.f32 %v557, %v549
  %v574 = vadd.f32 %v558, %v550
  %v575 = vadd.f32 %v559, %v551
  %v576 = vtanh.pop %v568
  %v577 = vtanh.pop %v569
  %v578 = vtanh.pop %v570
  %v579 = vtanh.pop %v571
  %v580 = vtanh.pop %v572
  %v581 = vtanh.pop %v573
  %v582 = vtanh.pop %v574
  %v583 = vtanh.pop %v575
  %v584 = vsub.f32 1.0, %v423
  %v585 = vsub.f32 1.0, %v438
  %v586 = vsub.f32 1.0, %v453
  %v587 = vsub.f32 1.0, %v468
  %v588 = vsub.f32 1.0, %v483
  %v589 = vsub.f32 1.0, %v498
  %v590 = vsub.f32 1.0, %v513
  %v591 = vsub.f32 1.0, %v528
  %v592 = vmul.f32 %v584, %v576
  %v593 = vmul.f32 %v585, %v577
  %v594 = vmul.f32 %v586, %v578
  %v595 = vmul.f32 %v587, %v579
  %v596 = vmul.f32 %v588, %v580
  %v597 = vmul.f32 %v589, %v581
  %v598 = vmul.f32 %v590, %v582
  %v599 = vmul.f32 %v591, %v583
  %v601 = vrot.slane %v23, 1
  %v602 = vrot.slane %v23, 2
  %v603 = vrot.slane %v23, 3
  %v604 = vrot.slane %v23, 4
  %v605 = vrot.slane %v23, 5
  %v606 = vrot.slane %v23, 6
  %v607 = vrot.slane %v23, 7
  %v615 = vmul.f32 %v423, %v23
  %v616 = vmul.f32 %v438, %v601
  %v617 = vmul.f32 %v453, %v602
  %v618 = vmul.f32 %v468, %v603
  %v619 = vmul.f32 %v483, %v604
  %v620 = vmul.f32 %v498, %v605
  %v621 = vmul.f32 %v513, %v606
  %v622 = vmul.f32 %v528, %v607
  %v623 = vadd.f32 %v592, %v615
  %v624 = vadd.f32 %v593, %v616
  %v625 = vadd.f32 %v594, %v617
  %v626 = vadd.f32 %v595, %v618
  %v627 = vadd.f32 %v596, %v619
  %v628 = vadd.f32 %v597, %v620
  %v629 = vadd.f32 %v598, %v621
  %v630 = vadd.f32 %v599, %v622
  %631 = vst [vmem:[%s4] sm:$0x1] %v623
  %632 = vst [vmem:[%s4 + $0x8] sm:$0x1] %v624
  %633 = vst [vmem:[%s4 + $0x10] sm:$0x1] %v625
  %634 = vst [vmem:[%s4 + $0x18] sm:$0x1] %v626
  %635 = vst [vmem:[%s4 + $0x20] sm:$0x1] %v627
  %636 = vst [vmem:[%s4 + $0x28] sm:$0x1] %v628
  %637 = vst [vmem:[%s4 + $0x30] sm:$0x1] %v629
  %638 = vst [vmem:[%s4 + $0x38] sm:$0x1] %v630
  %s639 = scalar_lea.vmem %s1, 1
  %v640 = vld [vmem:[%s639] ss:$8 sm:$0x7]
  %s641 = scalar_lea.vmem %s1, 25
  %v642 = vld [vmem:[%s641] ss:$8 sm:$0x7]
  %s643 = scalar_lea.vmem %s1, 49
  %v644 = vld [vmem:[%s643] ss:$8 sm:$0x7]
  %s645 = scalar_lea.vmem %s1, 73
  %v646 = vld [vmem:[%s645] ss:$8 sm:$0x7]
  %s647 = scalar_lea.vmem %s1, 97
  %v648 = vld [vmem:[%s647] ss:$8 sm:$0x7]
  %s649 = scalar_lea.vmem %s1, 121
  %v650 = vld [vmem:[%s649] ss:$8 sm:$0x7]
  %s651 = scalar_lea.vmem %s1, 145
  %v652 = vld [vmem:[%s651] ss:$8 sm:$0x7]
  %s653 = scalar_lea.vmem %s1, 169
  %v654 = vld [vmem:[%s653] ss:$8 sm:$0x7]
  %663 = vst [vmem:[#allocation1] ss:$9 sm:$0xff] %v623
  %s664 = scalar_lea.vmem [#allocation1], 1
  %665 = vst [vmem:[%s664] ss:$9 sm:$0xff] %v624
  %s666 = scalar_lea.vmem [#allocation1], 2
  %667 = vst [vmem:[%s666] ss:$9 sm:$0xff] %v625
  %s668 = scalar_lea.vmem [#allocation1], 3
  %669 = vst [vmem:[%s668] ss:$9 sm:$0xff] %v626
  %s670 = scalar_lea.vmem [#allocation1], 4
  %671 = vst [vmem:[%s670] ss:$9 sm:$0xff] %v627
  %s672 = scalar_lea.vmem [#allocation1], 5
  %673 = vst [vmem:[%s672] ss:$9 sm:$0xff] %v628
  %s674 = scalar_lea.vmem [#allocation1], 6
  %675 = vst [vmem:[%s674] ss:$9 sm:$0xff] %v629
  %s676 = scalar_lea.vmem [#allocation1], 7
  %677 = vst [vmem:[%s676] ss:$9 sm:$0xff] %v630
  %v678 = vld [vmem:[#allocation1] sm:$0xff]
  %680 = vmatpush.msra.mxu0 %v69
  %681 = vmatpush.msra.mxu0 %v66
  %682 = vmatpush.msra.mxu0 %v63
  %683 = vmatpush.msra.mxu0 %v60
  %684 = vmatpush.msra.mxu0 %v57
  %685 = vmatpush.msra.mxu0 %v54
  %686 = vmatpush.msra.mxu0 %v51
  %687 = vmatpush.msra.mxu0 %v48
  %688 = vmatpush.msra.mxu0 %v45
  %689 = vmatpush.msra.mxu0 %v42
  %690 = vmatpush.msra.mxu0 %v39
  %691 = vmatpush.msra.mxu0 %v36
  %692 = vmatpush.msra.mxu0 %v33
  %693 = vmatpush.msra.mxu0 %v30
  %694 = vmatpush.msra.mxu0 %v27
  %695 = vmatpush.msra.mxu0 %v24
  %696 = vmatmul.f32.gmra.mxu0 %v678
  %v697 = vpop.f32.mrf.mxu0
  %v698 = vadd.f32 %v74, %v697
  %699 = vdwg.mxu0
  %700 = vmatpush.msra.mxu0 %v70
  %701 = vmatpush.msra.mxu0 %v67
  %702 = vmatpush.msra.mxu0 %v64
  %703 = vmatpush.msra.mxu0 %v61
  %704 = vmatpush.msra.mxu0 %v58
  %705 = vmatpush.msra.mxu0 %v55
  %706 = vmatpush.msra.mxu0 %v52
  %707 = vmatpush.msra.mxu0 %v49
  %708 = vmatpush.msra.mxu0 %v46
  %709 = vmatpush.msra.mxu0 %v43
  %710 = vmatpush.msra.mxu0 %v40
  %711 = vmatpush.msra.mxu0 %v37
  %712 = vmatpush.msra.mxu0 %v34
  %713 = vmatpush.msra.mxu0 %v31
  %714 = vmatpush.msra.mxu0 %v28
  %715 = vmatpush.msra.mxu0 %v25
  %716 = vmatmul.f32.gmra.mxu0 %v678
  %v717 = vpop.f32.mrf.mxu0
  %v718 = vadd.f32 %v75, %v717
  %719 = vdwg.mxu0
  %720 = vmatpush.msra.mxu0 %v71
  %721 = vmatpush.msra.mxu0 %v68
  %722 = vmatpush.msra.mxu0 %v65
  %723 = vmatpush.msra.mxu0 %v62
  %724 = vmatpush.msra.mxu0 %v59
  %725 = vmatpush.msra.mxu0 %v56
  %726 = vmatpush.msra.mxu0 %v53
  %727 = vmatpush.msra.mxu0 %v50
  %728 = vmatpush.msra.mxu0 %v47
  %729 = vmatpush.msra.mxu0 %v44
  %730 = vmatpush.msra.mxu0 %v41
  %731 = vmatpush.msra.mxu0 %v38
  %732 = vmatpush.msra.mxu0 %v35
  %733 = vmatpush.msra.mxu0 %v32
  %734 = vmatpush.msra.mxu0 %v29
  %735 = vmatpush.msra.mxu0 %v26
  %736 = vmatmul.f32.gmra.mxu0 %v678
  %v737 = vpop.f32.mrf.mxu0
  %v738 = vadd.f32 %v76, %v737
  %739 = vdwg.mxu0
  %v741 = vrot.slane %v698, 1
  %v742 = vrot.slane %v698, 2
  %v743 = vrot.slane %v698, 3
  %v744 = vrot.slane %v698, 4
  %v745 = vrot.slane %v698, 5
  %v746 = vrot.slane %v698, 6
  %v747 = vrot.slane %v698, 7
  %v755 = vadd.f32 %v640, %v698
  %v756 = vadd.f32 %v642, %v741
  %v757 = vadd.f32 %v644, %v742
  %v758 = vadd.f32 %v646, %v743
  %v759 = vadd.f32 %v648, %v744
  %v760 = vadd.f32 %v650, %v745
  %v761 = vadd.f32 %v652, %v746
  %v762 = vadd.f32 %v654, %v747
  %v763 = vxor.u32 %v755, 2147483648
  %v764 = vxor.u32 %v756, 2147483648
  %v765 = vxor.u32 %v757, 2147483648
  %v766 = vxor.u32 %v758, 2147483648
  %v767 = vxor.u32 %v759, 2147483648
  %v768 = vxor.u32 %v760, 2147483648
  %v769 = vxor.u32 %v761, 2147483648
  %v770 = vxor.u32 %v762, 2147483648
  %v771 = vmul.f32 %v763, 1.442695
  %v772 = vpow.pop %v771
  %v773 = vmul.f32 %v764, 1.442695
  %v774 = vpow.pop %v773
  %v775 = vmul.f32 %v765, 1.442695
  %v776 = vpow.pop %v775
  %v777 = vmul.f32 %v766, 1.442695
  %v778 = vpow.pop %v777
  %v779 = vmul.f32 %v767, 1.442695
  %v780 = vpow.pop %v779
  %v781 = vmul.f32 %v768, 1.442695
  %v782 = vpow.pop %v781
  %v783 = vmul.f32 %v769, 1.442695
  %v784 = vpow.pop %v783
  %v785 = vmul.f32 %v770, 1.442695
  %v786 = vpow.pop %v785
  %v787 = vadd.f32 %v772, 1.0
  %v788 = vadd.f32 %v774, 1.0
  %v789 = vadd.f32 %v776, 1.0
  %v790 = vadd.f32 %v778, 1.0
  %v791 = vadd.f32 %v780, 1.0
  %v792 = vadd.f32 %v782, 1.0
  %v793 = vadd.f32 %v784, 1.0
  %v794 = vadd.f32 %v786, 1.0
  %v795 = vrcp.pop %v787
  %v796 = vmul.f32 %v787, %v795
  %v797 = vsub.f32 1.0, %v796
  %v798 = vmul.f32 %v795, %v797
  %v799 = vadd.f32 %v795, %v798
  %vm800 = vweird.f32 %v787
  %vm801 = vweird.f32 %v795
  %vm802 = vmor %vm800, %vm801
  %v803 = vsel %vm802, %v795, %v799
  %v804 = vand.u32 2147483647, %v787
  %vm805 = vcmp.eq.f32.partialorder %v804, 8.507059e+37
  %v806 = vand.u32 %v787, 2147483648
  %v807 = vor.u32 1.1754944e-38, %v806
  %v808 = vsel %vm805, %v807, %v803
  %v809 = vmul.f32 1.0, %v808
  %v810 = vrcp.pop %v788
  %v811 = vmul.f32 %v788, %v810
  %v812 = vsub.f32 1.0, %v811
  %v813 = vmul.f32 %v810, %v812
  %v814 = vadd.f32 %v810, %v813
  %vm815 = vweird.f32 %v788
  %vm816 = vweird.f32 %v810
  %vm817 = vmor %vm815, %vm816
  %v818 = vsel %vm817, %v810, %v814
  %v819 = vand.u32 2147483647, %v788
  %vm820 = vcmp.eq.f32.partialorder %v819, 8.507059e+37
  %v821 = vand.u32 %v788, 2147483648
  %v822 = vor.u32 1.1754944e-38, %v821
  %v823 = vsel %vm820, %v822, %v818
  %v824 = vmul.f32 1.0, %v823
  %v825 = vrcp.pop %v789
  %v826 = vmul.f32 %v789, %v825
  %v827 = vsub.f32 1.0, %v826
  %v828 = vmul.f32 %v825, %v827
  %v829 = vadd.f32 %v825, %v828
  %vm830 = vweird.f32 %v789
  %vm831 = vweird.f32 %v825
  %vm832 = vmor %vm830, %vm831
  %v833 = vsel %vm832, %v825, %v829
  %v834 = vand.u32 2147483647, %v789
  %vm835 = vcmp.eq.f32.partialorder %v834, 8.507059e+37
  %v836 = vand.u32 %v789, 2147483648
  %v837 = vor.u32 1.1754944e-38, %v836
  %v838 = vsel %vm835, %v837, %v833
  %v839 = vmul.f32 1.0, %v838
  %v840 = vrcp.pop %v790
  %v841 = vmul.f32 %v790, %v840
  %v842 = vsub.f32 1.0, %v841
  %v843 = vmul.f32 %v840, %v842
  %v844 = vadd.f32 %v840, %v843
  %vm845 = vweird.f32 %v790
  %vm846 = vweird.f32 %v840
  %vm847 = vmor %vm845, %vm846
  %v848 = vsel %vm847, %v840, %v844
  %v849 = vand.u32 2147483647, %v790
  %vm850 = vcmp.eq.f32.partialorder %v849, 8.507059e+37
  %v851 = vand.u32 %v790, 2147483648
  %v852 = vor.u32 1.1754944e-38, %v851
  %v853 = vsel %vm850, %v852, %v848
  %v854 = vmul.f32 1.0, %v853
  %v855 = vrcp.pop %v791
  %v856 = vmul.f32 %v791, %v855
  %v857 = vsub.f32 1.0, %v856
  %v858 = vmul.f32 %v855, %v857
  %v859 = vadd.f32 %v855, %v858
  %vm860 = vweird.f32 %v791
  %vm861 = vweird.f32 %v855
  %vm862 = vmor %vm860, %vm861
  %v863 = vsel %vm862, %v855, %v859
  %v864 = vand.u32 2147483647, %v791
  %vm865 = vcmp.eq.f32.partialorder %v864, 8.507059e+37
  %v866 = vand.u32 %v791, 2147483648
  %v867 = vor.u32 1.1754944e-38, %v866
  %v868 = vsel %vm865, %v867, %v863
  %v869 = vmul.f32 1.0, %v868
  %v870 = vrcp.pop %v792
  %v871 = vmul.f32 %v792, %v870
  %v872 = vsub.f32 1.0, %v871
  %v873 = vmul.f32 %v870, %v872
  %v874 = vadd.f32 %v870, %v873
  %vm875 = vweird.f32 %v792
  %vm876 = vweird.f32 %v870
  %vm877 = vmor %vm875, %vm876
  %v878 = vsel %vm877, %v870, %v874
  %v879 = vand.u32 2147483647, %v792
  %vm880 = vcmp.eq.f32.partialorder %v879, 8.507059e+37
  %v881 = vand.u32 %v792, 2147483648
  %v882 = vor.u32 1.1754944e-38, %v881
  %v883 = vsel %vm880, %v882, %v878
  %v884 = vmul.f32 1.0, %v883
  %v885 = vrcp.pop %v793
  %v886 = vmul.f32 %v793, %v885
  %v887 = vsub.f32 1.0, %v886
  %v888 = vmul.f32 %v885, %v887
  %v889 = vadd.f32 %v885, %v888
  %vm890 = vweird.f32 %v793
  %vm891 = vweird.f32 %v885
  %vm892 = vmor %vm890, %vm891
  %v893 = vsel %vm892, %v885, %v889
  %v894 = vand.u32 2147483647, %v793
  %vm895 = vcmp.eq.f32.partialorder %v894, 8.507059e+37
  %v896 = vand.u32 %v793, 2147483648
  %v897 = vor.u32 1.1754944e-38, %v896
  %v898 = vsel %vm895, %v897, %v893
  %v899 = vmul.f32 1.0, %v898
  %v900 = vrcp.pop %v794
  %v901 = vmul.f32 %v794, %v900
  %v902 = vsub.f32 1.0, %v901
  %v903 = vmul.f32 %v900, %v902
  %v904 = vadd.f32 %v900, %v903
  %vm905 = vweird.f32 %v794
  %vm906 = vweird.f32 %v900
  %vm907 = vmor %vm905, %vm906
  %v908 = vsel %vm907, %v900, %v904
  %v909 = vand.u32 2147483647, %v794
  %vm910 = vcmp.eq.f32.partialorder %v909, 8.507059e+37
  %v911 = vand.u32 %v794, 2147483648
  %v912 = vor.u32 1.1754944e-38, %v911
  %v913 = vsel %vm910, %v912, %v908
  %v914 = vmul.f32 1.0, %v913
  %v923 = vrot.slane %v640, 1
  %v924 = vrot.slane %v642, 1
  %v925 = vrot.slane %v644, 1
  %v926 = vrot.slane %v646, 1
  %v927 = vrot.slane %v648, 1
  %v928 = vrot.slane %v650, 1
  %v929 = vrot.slane %v652, 1
  %v930 = vrot.slane %v654, 1
  %v940 = vrot.slane %v718, 1
  %v941 = vrot.slane %v718, 2
  %v942 = vrot.slane %v718, 3
  %v943 = vrot.slane %v718, 4
  %v944 = vrot.slane %v718, 5
  %v945 = vrot.slane %v718, 6
  %v946 = vrot.slane %v718, 7
  %v954 = vadd.f32 %v923, %v718
  %v955 = vadd.f32 %v924, %v940
  %v956 = vadd.f32 %v925, %v941
  %v957 = vadd.f32 %v926, %v942
  %v958 = vadd.f32 %v927, %v943
  %v959 = vadd.f32 %v928, %v944
  %v960 = vadd.f32 %v929, %v945
  %v961 = vadd.f32 %v930, %v946
  %v962 = vxor.u32 %v954, 2147483648
  %v963 = vxor.u32 %v955, 2147483648
  %v964 = vxor.u32 %v956, 2147483648
  %v965 = vxor.u32 %v957, 2147483648
  %v966 = vxor.u32 %v958, 2147483648
  %v967 = vxor.u32 %v959, 2147483648
  %v968 = vxor.u32 %v960, 2147483648
  %v969 = vxor.u32 %v961, 2147483648
  %v970 = vmul.f32 %v962, 1.442695
  %v971 = vpow.pop %v970
  %v972 = vmul.f32 %v963, 1.442695
  %v973 = vpow.pop %v972
  %v974 = vmul.f32 %v964, 1.442695
  %v975 = vpow.pop %v974
  %v976 = vmul.f32 %v965, 1.442695
  %v977 = vpow.pop %v976
  %v978 = vmul.f32 %v966, 1.442695
  %v979 = vpow.pop %v978
  %v980 = vmul.f32 %v967, 1.442695
  %v981 = vpow.pop %v980
  %v982 = vmul.f32 %v968, 1.442695
  %v983 = vpow.pop %v982
  %v984 = vmul.f32 %v969, 1.442695
  %v985 = vpow.pop %v984
  %v986 = vadd.f32 %v971, 1.0
  %v987 = vadd.f32 %v973, 1.0
  %v988 = vadd.f32 %v975, 1.0
  %v989 = vadd.f32 %v977, 1.0
  %v990 = vadd.f32 %v979, 1.0
  %v991 = vadd.f32 %v981, 1.0
  %v992 = vadd.f32 %v983, 1.0
  %v993 = vadd.f32 %v985, 1.0
  %v994 = vrcp.pop %v986
  %v995 = vmul.f32 %v986, %v994
  %v996 = vsub.f32 1.0, %v995
  %v997 = vmul.f32 %v994, %v996
  %v998 = vadd.f32 %v994, %v997
  %vm999 = vweird.f32 %v986
  %vm1000 = vweird.f32 %v994
  %vm1001 = vmor %vm999, %vm1000
  %v1002 = vsel %vm1001, %v994, %v998
  %v1003 = vand.u32 2147483647, %v986
  %vm1004 = vcmp.eq.f32.partialorder %v1003, 8.507059e+37
  %v1005 = vand.u32 %v986, 2147483648
  %v1006 = vor.u32 1.1754944e-38, %v1005
  %v1007 = vsel %vm1004, %v1006, %v1002
  %v1008 = vmul.f32 1.0, %v1007
  %v1009 = vrcp.pop %v987
  %v1010 = vmul.f32 %v987, %v1009
  %v1011 = vsub.f32 1.0, %v1010
  %v1012 = vmul.f32 %v1009, %v1011
  %v1013 = vadd.f32 %v1009, %v1012
  %vm1014 = vweird.f32 %v987
  %vm1015 = vweird.f32 %v1009
  %vm1016 = vmor %vm1014, %vm1015
  %v1017 = vsel %vm1016, %v1009, %v1013
  %v1018 = vand.u32 2147483647, %v987
  %vm1019 = vcmp.eq.f32.partialorder %v1018, 8.507059e+37
  %v1020 = vand.u32 %v987, 2147483648
  %v1021 = vor.u32 1.1754944e-38, %v1020
  %v1022 = vsel %vm1019, %v1021, %v1017
  %v1023 = vmul.f32 1.0, %v1022
  %v1024 = vrcp.pop %v988
  %v1025 = vmul.f32 %v988, %v1024
  %v1026 = vsub.f32 1.0, %v1025
  %v1027 = vmul.f32 %v1024, %v1026
  %v1028 = vadd.f32 %v1024, %v1027
  %vm1029 = vweird.f32 %v988
  %vm1030 = vweird.f32 %v1024
  %vm1031 = vmor %vm1029, %vm1030
  %v1032 = vsel %vm1031, %v1024, %v1028
  %v1033 = vand.u32 2147483647, %v988
  %vm1034 = vcmp.eq.f32.partialorder %v1033, 8.507059e+37
  %v1035 = vand.u32 %v988, 2147483648
  %v1036 = vor.u32 1.1754944e-38, %v1035
  %v1037 = vsel %vm1034, %v1036, %v1032
  %v1038 = vmul.f32 1.0, %v1037
  %v1039 = vrcp.pop %v989
  %v1040 = vmul.f32 %v989, %v1039
  %v1041 = vsub.f32 1.0, %v1040
  %v1042 = vmul.f32 %v1039, %v1041
  %v1043 = vadd.f32 %v1039, %v1042
  %vm1044 = vweird.f32 %v989
  %vm1045 = vweird.f32 %v1039
  %vm1046 = vmor %vm1044, %vm1045
  %v1047 = vsel %vm1046, %v1039, %v1043
  %v1048 = vand.u32 2147483647, %v989
  %vm1049 = vcmp.eq.f32.partialorder %v1048, 8.507059e+37
  %v1050 = vand.u32 %v989, 2147483648
  %v1051 = vor.u32 1.1754944e-38, %v1050
  %v1052 = vsel %vm1049, %v1051, %v1047
  %v1053 = vmul.f32 1.0, %v1052
  %v1054 = vrcp.pop %v990
  %v1055 = vmul.f32 %v990, %v1054
  %v1056 = vsub.f32 1.0, %v1055
  %v1057 = vmul.f32 %v1054, %v1056
  %v1058 = vadd.f32 %v1054, %v1057
  %vm1059 = vweird.f32 %v990
  %vm1060 = vweird.f32 %v1054
  %vm1061 = vmor %vm1059, %vm1060
  %v1062 = vsel %vm1061, %v1054, %v1058
  %v1063 = vand.u32 2147483647, %v990
  %vm1064 = vcmp.eq.f32.partialorder %v1063, 8.507059e+37
  %v1065 = vand.u32 %v990, 2147483648
  %v1066 = vor.u32 1.1754944e-38, %v1065
  %v1067 = vsel %vm1064, %v1066, %v1062
  %v1068 = vmul.f32 1.0, %v1067
  %v1069 = vrcp.pop %v991
  %v1070 = vmul.f32 %v991, %v1069
  %v1071 = vsub.f32 1.0, %v1070
  %v1072 = vmul.f32 %v1069, %v1071
  %v1073 = vadd.f32 %v1069, %v1072
  %vm1074 = vweird.f32 %v991
  %vm1075 = vweird.f32 %v1069
  %vm1076 = vmor %vm1074, %vm1075
  %v1077 = vsel %vm1076, %v1069, %v1073
  %v1078 = vand.u32 2147483647, %v991
  %vm1079 = vcmp.eq.f32.partialorder %v1078, 8.507059e+37
  %v1080 = vand.u32 %v991, 2147483648
  %v1081 = vor.u32 1.1754944e-38, %v1080
  %v1082 = vsel %vm1079, %v1081, %v1077
  %v1083 = vmul.f32 1.0, %v1082
  %v1084 = vrcp.pop %v992
  %v1085 = vmul.f32 %v992, %v1084
  %v1086 = vsub.f32 1.0, %v1085
  %v1087 = vmul.f32 %v1084, %v1086
  %v1088 = vadd.f32 %v1084, %v1087
  %vm1089 = vweird.f32 %v992
  %vm1090 = vweird.f32 %v1084
  %vm1091 = vmor %vm1089, %vm1090
  %v1092 = vsel %vm1091, %v1084, %v1088
  %v1093 = vand.u32 2147483647, %v992
  %vm1094 = vcmp.eq.f32.partialorder %v1093, 8.507059e+37
  %v1095 = vand.u32 %v992, 2147483648
  %v1096 = vor.u32 1.1754944e-38, %v1095
  %v1097 = vsel %vm1094, %v1096, %v1092
  %v1098 = vmul.f32 1.0, %v1097
  %v1099 = vrcp.pop %v993
  %v1100 = vmul.f32 %v993, %v1099
  %v1101 = vsub.f32 1.0, %v1100
  %v1102 = vmul.f32 %v1099, %v1101
  %v1103 = vadd.f32 %v1099, %v1102
  %vm1104 = vweird.f32 %v993
  %vm1105 = vweird.f32 %v1099
  %vm1106 = vmor %vm1104, %vm1105
  %v1107 = vsel %vm1106, %v1099, %v1103
  %v1108 = vand.u32 2147483647, %v993
  %vm1109 = vcmp.eq.f32.partialorder %v1108, 8.507059e+37
  %v1110 = vand.u32 %v993, 2147483648
  %v1111 = vor.u32 1.1754944e-38, %v1110
  %v1112 = vsel %vm1109, %v1111, %v1107
  %v1113 = vmul.f32 1.0, %v1112
  %v1115 = vrot.slane %v738, 1
  %v1116 = vrot.slane %v738, 2
  %v1117 = vrot.slane %v738, 3
  %v1118 = vrot.slane %v738, 4
  %v1119 = vrot.slane %v738, 5
  %v1120 = vrot.slane %v738, 6
  %v1121 = vrot.slane %v738, 7
  %v1129 = vmul.f32 %v809, %v738
  %v1130 = vmul.f32 %v824, %v1115
  %v1131 = vmul.f32 %v839, %v1116
  %v1132 = vmul.f32 %v854, %v1117
  %v1133 = vmul.f32 %v869, %v1118
  %v1134 = vmul.f32 %v884, %v1119
  %v1135 = vmul.f32 %v899, %v1120
  %v1136 = vmul.f32 %v914, %v1121
  %v1137 = vrot.slane %v640, 2
  %v1138 = vrot.slane %v642, 2
  %v1139 = vrot.slane %v644, 2
  %v1140 = vrot.slane %v646, 2
  %v1141 = vrot.slane %v648, 2
  %v1142 = vrot.slane %v650, 2
  %v1143 = vrot.slane %v652, 2
  %v1144 = vrot.slane %v654, 2
  %v1153 = vadd.f32 %v1137, %v1129
  %v1154 = vadd.f32 %v1138, %v1130
  %v1155 = vadd.f32 %v1139, %v1131
  %v1156 = vadd.f32 %v1140, %v1132
  %v1157 = vadd.f32 %v1141, %v1133
  %v1158 = vadd.f32 %v1142, %v1134
  %v1159 = vadd.f32 %v1143, %v1135
  %v1160 = vadd.f32 %v1144, %v1136
  %v1161 = vtanh.pop %v1153
  %v1162 = vtanh.pop %v1154
  %v1163 = vtanh.pop %v1155
  %v1164 = vtanh.pop %v1156
  %v1165 = vtanh.pop %v1157
  %v1166 = vtanh.pop %v1158
  %v1167 = vtanh.pop %v1159
  %v1168 = vtanh.pop %v1160
  %v1169 = vsub.f32 1.0, %v1008
  %v1170 = vsub.f32 1.0, %v1023
  %v1171 = vsub.f32 1.0, %v1038
  %v1172 = vsub.f32 1.0, %v1053
  %v1173 = vsub.f32 1.0, %v1068
  %v1174 = vsub.f32 1.0, %v1083
  %v1175 = vsub.f32 1.0, %v1098
  %v1176 = vsub.f32 1.0, %v1113
  %v1177 = vmul.f32 %v1169, %v1161
  %v1178 = vmul.f32 %v1170, %v1162
  %v1179 = vmul.f32 %v1171, %v1163
  %v1180 = vmul.f32 %v1172, %v1164
  %v1181 = vmul.f32 %v1173, %v1165
  %v1182 = vmul.f32 %v1174, %v1166
  %v1183 = vmul.f32 %v1175, %v1167
  %v1184 = vmul.f32 %v1176, %v1168
  %v1185 = vmul.f32 %v1008, %v623
  %v1186 = vmul.f32 %v1023, %v624
  %v1187 = vmul.f32 %v1038, %v625
  %v1188 = vmul.f32 %v1053, %v626
  %v1189 = vmul.f32 %v1068, %v627
  %v1190 = vmul.f32 %v1083, %v628
  %v1191 = vmul.f32 %v1098, %v629
  %v1192 = vmul.f32 %v1113, %v630
  %v1193 = vadd.f32 %v1177, %v1185
  %v1194 = vadd.f32 %v1178, %v1186
  %v1195 = vadd.f32 %v1179, %v1187
  %v1196 = vadd.f32 %v1180, %v1188
  %v1197 = vadd.f32 %v1181, %v1189
  %v1198 = vadd.f32 %v1182, %v1190
  %v1199 = vadd.f32 %v1183, %v1191
  %v1200 = vadd.f32 %v1184, %v1192
  %1201 = vst [vmem:[%s4 + $0x1] sm:$0x1] %v1193
  %1202 = vst [vmem:[%s4 + $0x9] sm:$0x1] %v1194
  %1203 = vst [vmem:[%s4 + $0x11] sm:$0x1] %v1195
  %1204 = vst [vmem:[%s4 + $0x19] sm:$0x1] %v1196
  %1205 = vst [vmem:[%s4 + $0x21] sm:$0x1] %v1197
  %1206 = vst [vmem:[%s4 + $0x29] sm:$0x1] %v1198
  %1207 = vst [vmem:[%s4 + $0x31] sm:$0x1] %v1199
  %1208 = vst [vmem:[%s4 + $0x39] sm:$0x1] %v1200
  %s1209 = scalar_lea.vmem %s1, 2
  %v1210 = vld [vmem:[%s1209] ss:$8 sm:$0x7]
  %s1211 = scalar_lea.vmem %s1, 26
  %v1212 = vld [vmem:[%s1211] ss:$8 sm:$0x7]
  %s1213 = scalar_lea.vmem %s1, 50
  %v1214 = vld [vmem:[%s1213] ss:$8 sm:$0x7]
  %s1215 = scalar_lea.vmem %s1, 74
  %v1216 = vld [vmem:[%s1215] ss:$8 sm:$0x7]
  %s1217 = scalar_lea.vmem %s1, 98
  %v1218 = vld [vmem:[%s1217] ss:$8 sm:$0x7]
  %s1219 = scalar_lea.vmem %s1, 122
  %v1220 = vld [vmem:[%s1219] ss:$8 sm:$0x7]
  %s1221 = scalar_lea.vmem %s1, 146
  %v1222 = vld [vmem:[%s1221] ss:$8 sm:$0x7]
  %s1223 = scalar_lea.vmem %s1, 170
  %v1224 = vld [vmem:[%s1223] ss:$8 sm:$0x7]
  %1233 = vst [vmem:[#allocation1] ss:$9 sm:$0xff] %v1193
  %s1234 = scalar_lea.vmem [#allocation1], 1
  %1235 = vst [vmem:[%s1234] ss:$9 sm:$0xff] %v1194
  %s1236 = scalar_lea.vmem [#allocation1], 2
  %1237 = vst [vmem:[%s1236] ss:$9 sm:$0xff] %v1195
  %s1238 = scalar_lea.vmem [#allocation1], 3
  %1239 = vst [vmem:[%s1238] ss:$9 sm:$0xff] %v1196
  %s1240 = scalar_lea.vmem [#allocation1], 4
  %1241 = vst [vmem:[%s1240] ss:$9 sm:$0xff] %v1197
  %s1242 = scalar_lea.vmem [#allocation1], 5
  %1243 = vst [vmem:[%s1242] ss:$9 sm:$0xff] %v1198
  %s1244 = scalar_lea.vmem [#allocation1], 6
  %1245 = vst [vmem:[%s1244] ss:$9 sm:$0xff] %v1199
  %s1246 = scalar_lea.vmem [#allocation1], 7
  %1247 = vst [vmem:[%s1246] ss:$9 sm:$0xff] %v1200
  %v1248 = vld [vmem:[#allocation1] sm:$0xff]
  %1250 = vmatpush.msra.mxu0 %v69
  %1251 = vmatpush.msra.mxu0 %v66
  %1252 = vmatpush.msra.mxu0 %v63
  %1253 = vmatpush.msra.mxu0 %v60
  %1254 = vmatpush.msra.mxu0 %v57
  %1255 = vmatpush.msra.mxu0 %v54
  %1256 = vmatpush.msra.mxu0 %v51
  %1257 = vmatpush.msra.mxu0 %v48
  %1258 = vmatpush.msra.mxu0 %v45
  %1259 = vmatpush.msra.mxu0 %v42
  %1260 = vmatpush.msra.mxu0 %v39
  %1261 = vmatpush.msra.mxu0 %v36
  %1262 = vmatpush.msra.mxu0 %v33
  %1263 = vmatpush.msra.mxu0 %v30
  %1264 = vmatpush.msra.mxu0 %v27
  %1265 = vmatpush.msra.mxu0 %v24
  %1266 = vmatmul.f32.gmra.mxu0 %v1248
  %v1267 = vpop.f32.mrf.mxu0
  %v1268 = vadd.f32 %v74, %v1267
  %1269 = vdwg.mxu0
  %1270 = vmatpush.msra.mxu0 %v70
  %1271 = vmatpush.msra.mxu0 %v67
  %1272 = vmatpush.msra.mxu0 %v64
  %1273 = vmatpush.msra.mxu0 %v61
  %1274 = vmatpush.msra.mxu0 %v58
  %1275 = vmatpush.msra.mxu0 %v55
  %1276 = vmatpush.msra.mxu0 %v52
  %1277 = vmatpush.msra.mxu0 %v49
  %1278 = vmatpush.msra.mxu0 %v46
  %1279 = vmatpush.msra.mxu0 %v43
  %1280 = vmatpush.msra.mxu0 %v40
  %1281 = vmatpush.msra.mxu0 %v37
  %1282 = vmatpush.msra.mxu0 %v34
  %1283 = vmatpush.msra.mxu0 %v31
  %1284 = vmatpush.msra.mxu0 %v28
  %1285 = vmatpush.msra.mxu0 %v25
  %1286 = vmatmul.f32.gmra.mxu0 %v1248
  %v1287 = vpop.f32.mrf.mxu0
  %v1288 = vadd.f32 %v75, %v1287
  %1289 = vdwg.mxu0
  %1290 = vmatpush.msra.mxu0 %v71
  %1291 = vmatpush.msra.mxu0 %v68
  %1292 = vmatpush.msra.mxu0 %v65
  %1293 = vmatpush.msra.mxu0 %v62
  %1294 = vmatpush.msra.mxu0 %v59
  %1295 = vmatpush.msra.mxu0 %v56
  %1296 = vmatpush.msra.mxu0 %v53
  %1297 = vmatpush.msra.mxu0 %v50
  %1298 = vmatpush.msra.mxu0 %v47
  %1299 = vmatpush.msra.mxu0 %v44
  %1300 = vmatpush.msra.mxu0 %v41
  %1301 = vmatpush.msra.mxu0 %v38
  %1302 = vmatpush.msra.mxu0 %v35
  %1303 = vmatpush.msra.mxu0 %v32
  %1304 = vmatpush.msra.mxu0 %v29
  %1305 = vmatpush.msra.mxu0 %v26
  %1306 = vmatmul.f32.gmra.mxu0 %v1248
  %v1307 = vpop.f32.mrf.mxu0
  %v1308 = vadd.f32 %v76, %v1307
  %1309 = vdwg.mxu0
  %v1311 = vrot.slane %v1268, 1
  %v1312 = vrot.slane %v1268, 2
  %v1313 = vrot.slane %v1268, 3
  %v1314 = vrot.slane %v1268, 4
  %v1315 = vrot.slane %v1268, 5
  %v1316 = vrot.slane %v1268, 6
  %v1317 = vrot.slane %v1268, 7
  %v1325 = vadd.f32 %v1210, %v1268
  %v1326 = vadd.f32 %v1212, %v1311
  %v1327 = vadd.f32 %v1214, %v1312
  %v1328 = vadd.f32 %v1216, %v1313
  %v1329 = vadd.f32 %v1218, %v1314
  %v1330 = vadd.f32 %v1220, %v1315
  %v1331 = vadd.f32 %v1222, %v1316
  %v1332 = vadd.f32 %v1224, %v1317
  %v1333 = vxor.u32 %v1325, 2147483648
  %v1334 = vxor.u32 %v1326, 2147483648
  %v1335 = vxor.u32 %v1327, 2147483648
  %v1336 = vxor.u32 %v1328, 2147483648
  %v1337 = vxor.u32 %v1329, 2147483648
  %v1338 = vxor.u32 %v1330, 2147483648
  %v1339 = vxor.u32 %v1331, 2147483648
  %v1340 = vxor.u32 %v1332, 2147483648
  %v1341 = vmul.f32 %v1333, 1.442695
  %v1342 = vpow.pop %v1341
  %v1343 = vmul.f32 %v1334, 1.442695
  %v1344 = vpow.pop %v1343
  %v1345 = vmul.f32 %v1335, 1.442695
  %v1346 = vpow.pop %v1345
  %v1347 = vmul.f32 %v1336, 1.442695
  %v1348 = vpow.pop %v1347
  %v1349 = vmul.f32 %v1337, 1.442695
  %v1350 = vpow.pop %v1349
  %v1351 = vmul.f32 %v1338, 1.442695
  %v1352 = vpow.pop %v1351
  %v1353 = vmul.f32 %v1339, 1.442695
  %v1354 = vpow.pop %v1353
  %v1355 = vmul.f32 %v1340, 1.442695
  %v1356 = vpow.pop %v1355
  %v1357 = vadd.f32 %v1342, 1.0
  %v1358 = vadd.f32 %v1344, 1.0
  %v1359 = vadd.f32 %v1346, 1.0
  %v1360 = vadd.f32 %v1348, 1.0
  %v1361 = vadd.f32 %v1350, 1.0
  %v1362 = vadd.f32 %v1352, 1.0
  %v1363 = vadd.f32 %v1354, 1.0
  %v1364 = vadd.f32 %v1356, 1.0
  %v1365 = vrcp.pop %v1357
  %v1366 = vmul.f32 %v1357, %v1365
  %v1367 = vsub.f32 1.0, %v1366
  %v1368 = vmul.f32 %v1365, %v1367
  %v1369 = vadd.f32 %v1365, %v1368
  %vm1370 = vweird.f32 %v1357
  %vm1371 = vweird.f32 %v1365
  %vm1372 = vmor %vm1370, %vm1371
  %v1373 = vsel %vm1372, %v1365, %v1369
  %v1374 = vand.u32 2147483647, %v1357
  %vm1375 = vcmp.eq.f32.partialorder %v1374, 8.507059e+37
  %v1376 = vand.u32 %v1357, 2147483648
  %v1377 = vor.u32 1.1754944e-38, %v1376
  %v1378 = vsel %vm1375, %v1377, %v1373
  %v1379 = vmul.f32 1.0, %v1378
  %v1380 = vrcp.pop %v1358
  %v1381 = vmul.f32 %v1358, %v1380
  %v1382 = vsub.f32 1.0, %v1381
  %v1383 = vmul.f32 %v1380, %v1382
  %v1384 = vadd.f32 %v1380, %v1383
  %vm1385 = vweird.f32 %v1358
  %vm1386 = vweird.f32 %v1380
  %vm1387 = vmor %vm1385, %vm1386
  %v1388 = vsel %vm1387, %v1380, %v1384
  %v1389 = vand.u32 2147483647, %v1358
  %vm1390 = vcmp.eq.f32.partialorder %v1389, 8.507059e+37
  %v1391 = vand.u32 %v1358, 2147483648
  %v1392 = vor.u32 1.1754944e-38, %v1391
  %v1393 = vsel %vm1390, %v1392, %v1388
  %v1394 = vmul.f32 1.0, %v1393
  %v1395 = vrcp.pop %v1359
  %v1396 = vmul.f32 %v1359, %v1395
  %v1397 = vsub.f32 1.0, %v1396
  %v1398 = vmul.f32 %v1395, %v1397
  %v1399 = vadd.f32 %v1395, %v1398
  %vm1400 = vweird.f32 %v1359
  %vm1401 = vweird.f32 %v1395
  %vm1402 = vmor %vm1400, %vm1401
  %v1403 = vsel %vm1402, %v1395, %v1399
  %v1404 = vand.u32 2147483647, %v1359
  %vm1405 = vcmp.eq.f32.partialorder %v1404, 8.507059e+37
  %v1406 = vand.u32 %v1359, 2147483648
  %v1407 = vor.u32 1.1754944e-38, %v1406
  %v1408 = vsel %vm1405, %v1407, %v1403
  %v1409 = vmul.f32 1.0, %v1408
  %v1410 = vrcp.pop %v1360
  %v1411 = vmul.f32 %v1360, %v1410
  %v1412 = vsub.f32 1.0, %v1411
  %v1413 = vmul.f32 %v1410, %v1412
  %v1414 = vadd.f32 %v1410, %v1413
  %vm1415 = vweird.f32 %v1360
  %vm1416 = vweird.f32 %v1410
  %vm1417 = vmor %vm1415, %vm1416
  %v1418 = vsel %vm1417, %v1410, %v1414
  %v1419 = vand.u32 2147483647, %v1360
  %vm1420 = vcmp.eq.f32.partialorder %v1419, 8.507059e+37
  %v1421 = vand.u32 %v1360, 2147483648
  %v1422 = vor.u32 1.1754944e-38, %v1421
  %v1423 = vsel %vm1420, %v1422, %v1418
  %v1424 = vmul.f32 1.0, %v1423
  %v1425 = vrcp.pop %v1361
  %v1426 = vmul.f32 %v1361, %v1425
  %v1427 = vsub.f32 1.0, %v1426
  %v1428 = vmul.f32 %v1425, %v1427
  %v1429 = vadd.f32 %v1425, %v1428
  %vm1430 = vweird.f32 %v1361
  %vm1431 = vweird.f32 %v1425
  %vm1432 = vmor %vm1430, %vm1431
  %v1433 = vsel %vm1432, %v1425, %v1429
  %v1434 = vand.u32 2147483647, %v1361
  %vm1435 = vcmp.eq.f32.partialorder %v1434, 8.507059e+37
  %v1436 = vand.u32 %v1361, 2147483648
  %v1437 = vor.u32 1.1754944e-38, %v1436
  %v1438 = vsel %vm1435, %v1437, %v1433
  %v1439 = vmul.f32 1.0, %v1438
  %v1440 = vrcp.pop %v1362
  %v1441 = vmul.f32 %v1362, %v1440
  %v1442 = vsub.f32 1.0, %v1441
  %v1443 = vmul.f32 %v1440, %v1442
  %v1444 = vadd.f32 %v1440, %v1443
  %vm1445 = vweird.f32 %v1362
  %vm1446 = vweird.f32 %v1440
  %vm1447 = vmor %vm1445, %vm1446
  %v1448 = vsel %vm1447, %v1440, %v1444
  %v1449 = vand.u32 2147483647, %v1362
  %vm1450 = vcmp.eq.f32.partialorder %v1449, 8.507059e+37
  %v1451 = vand.u32 %v1362, 2147483648
  %v1452 = vor.u32 1.1754944e-38, %v1451
  %v1453 = vsel %vm1450, %v1452, %v1448
  %v1454 = vmul.f32 1.0, %v1453
  %v1455 = vrcp.pop %v1363
  %v1456 = vmul.f32 %v1363, %v1455
  %v1457 = vsub.f32 1.0, %v1456
  %v1458 = vmul.f32 %v1455, %v1457
  %v1459 = vadd.f32 %v1455, %v1458
  %vm1460 = vweird.f32 %v1363
  %vm1461 = vweird.f32 %v1455
  %vm1462 = vmor %vm1460, %vm1461
  %v1463 = vsel %vm1462, %v1455, %v1459
  %v1464 = vand.u32 2147483647, %v1363
  %vm1465 = vcmp.eq.f32.partialorder %v1464, 8.507059e+37
  %v1466 = vand.u32 %v1363, 2147483648
  %v1467 = vor.u32 1.1754944e-38, %v1466
  %v1468 = vsel %vm1465, %v1467, %v1463
  %v1469 = vmul.f32 1.0, %v1468
  %v1470 = vrcp.pop %v1364
  %v1471 = vmul.f32 %v1364, %v1470
  %v1472 = vsub.f32 1.0, %v1471
  %v1473 = vmul.f32 %v1470, %v1472
  %v1474 = vadd.f32 %v1470, %v1473
  %vm1475 = vweird.f32 %v1364
  %vm1476 = vweird.f32 %v1470
  %vm1477 = vmor %vm1475, %vm1476
  %v1478 = vsel %vm1477, %v1470, %v1474
  %v1479 = vand.u32 2147483647, %v1364
  %vm1480 = vcmp.eq.f32.partialorder %v1479, 8.507059e+37
  %v1481 = vand.u32 %v1364, 2147483648
  %v1482 = vor.u32 1.1754944e-38, %v1481
  %v1483 = vsel %vm1480, %v1482, %v1478
  %v1484 = vmul.f32 1.0, %v1483
  %v1493 = vrot.slane %v1210, 1
  %v1494 = vrot.slane %v1212, 1
  %v1495 = vrot.slane %v1214, 1
  %v1496 = vrot.slane %v1216, 1
  %v1497 = vrot.slane %v1218, 1
  %v1498 = vrot.slane %v1220, 1
  %v1499 = vrot.slane %v1222, 1
  %v1500 = vrot.slane %v1224, 1
  %v1510 = vrot.slane %v1288, 1
  %v1511 = vrot.slane %v1288, 2
  %v1512 = vrot.slane %v1288, 3
  %v1513 = vrot.slane %v1288, 4
  %v1514 = vrot.slane %v1288, 5
  %v1515 = vrot.slane %v1288, 6
  %v1516 = vrot.slane %v1288, 7
  %v1524 = vadd.f32 %v1493, %v1288
  %v1525 = vadd.f32 %v1494, %v1510
  %v1526 = vadd.f32 %v1495, %v1511
  %v1527 = vadd.f32 %v1496, %v1512
  %v1528 = vadd.f32 %v1497, %v1513
  %v1529 = vadd.f32 %v1498, %v1514
  %v1530 = vadd.f32 %v1499, %v1515
  %v1531 = vadd.f32 %v1500, %v1516
  %v1532 = vxor.u32 %v1524, 2147483648
  %v1533 = vxor.u32 %v1525, 2147483648
  %v1534 = vxor.u32 %v1526, 2147483648
  %v1535 = vxor.u32 %v1527, 2147483648
  %v1536 = vxor.u32 %v1528, 2147483648
  %v1537 = vxor.u32 %v1529, 2147483648
  %v1538 = vxor.u32 %v1530, 2147483648
  %v1539 = vxor.u32 %v1531, 2147483648
  %v1540 = vmul.f32 %v1532, 1.442695
  %v1541 = vpow.pop %v1540
  %v1542 = vmul.f32 %v1533, 1.442695
  %v1543 = vpow.pop %v1542
  %v1544 = vmul.f32 %v1534, 1.442695
  %v1545 = vpow.pop %v1544
  %v1546 = vmul.f32 %v1535, 1.442695
  %v1547 = vpow.pop %v1546
  %v1548 = vmul.f32 %v1536, 1.442695
  %v1549 = vpow.pop %v1548
  %v1550 = vmul.f32 %v1537, 1.442695
  %v1551 = vpow.pop %v1550
  %v1552 = vmul.f32 %v1538, 1.442695
  %v1553 = vpow.pop %v1552
  %v1554 = vmul.f32 %v1539, 1.442695
  %v1555 = vpow.pop %v1554
  %v1556 = vadd.f32 %v1541, 1.0
  %v1557 = vadd.f32 %v1543, 1.0
  %v1558 = vadd.f32 %v1545, 1.0
  %v1559 = vadd.f32 %v1547, 1.0
  %v1560 = vadd.f32 %v1549, 1.0
  %v1561 = vadd.f32 %v1551, 1.0
  %v1562 = vadd.f32 %v1553, 1.0
  %v1563 = vadd.f32 %v1555, 1.0
  %v1564 = vrcp.pop %v1556
  %v1565 = vmul.f32 %v1556, %v1564
  %v1566 = vsub.f32 1.0, %v1565
  %v1567 = vmul.f32 %v1564, %v1566
  %v1568 = vadd.f32 %v1564, %v1567
  %vm1569 = vweird.f32 %v1556
  %vm1570 = vweird.f32 %v1564
  %vm1571 = vmor %vm1569, %vm1570
  %v1572 = vsel %vm1571, %v1564, %v1568
  %v1573 = vand.u32 2147483647, %v1556
  %vm1574 = vcmp.eq.f32.partialorder %v1573, 8.507059e+37
  %v1575 = vand.u32 %v1556, 2147483648
  %v1576 = vor.u32 1.1754944e-38, %v1575
  %v1577 = vsel %vm1574, %v1576, %v1572
  %v1578 = vmul.f32 1.0, %v1577
  %v1579 = vrcp.pop %v1557
  %v1580 = vmul.f32 %v1557, %v1579
  %v1581 = vsub.f32 1.0, %v1580
  %v1582 = vmul.f32 %v1579, %v1581
  %v1583 = vadd.f32 %v1579, %v1582
  %vm1584 = vweird.f32 %v1557
  %vm1585 = vweird.f32 %v1579
  %vm1586 = vmor %vm1584, %vm1585
  %v1587 = vsel %vm1586, %v1579, %v1583
  %v1588 = vand.u32 2147483647, %v1557
  %vm1589 = vcmp.eq.f32.partialorder %v1588, 8.507059e+37
  %v1590 = vand.u32 %v1557, 2147483648
  %v1591 = vor.u32 1.1754944e-38, %v1590
  %v1592 = vsel %vm1589, %v1591, %v1587
  %v1593 = vmul.f32 1.0, %v1592
  %v1594 = vrcp.pop %v1558
  %v1595 = vmul.f32 %v1558, %v1594
  %v1596 = vsub.f32 1.0, %v1595
  %v1597 = vmul.f32 %v1594, %v1596
  %v1598 = vadd.f32 %v1594, %v1597
  %vm1599 = vweird.f32 %v1558
  %vm1600 = vweird.f32 %v1594
  %vm1601 = vmor %vm1599, %vm1600
  %v1602 = vsel %vm1601, %v1594, %v1598
  %v1603 = vand.u32 2147483647, %v1558
  %vm1604 = vcmp.eq.f32.partialorder %v1603, 8.507059e+37
  %v1605 = vand.u32 %v1558, 2147483648
  %v1606 = vor.u32 1.1754944e-38, %v1605
  %v1607 = vsel %vm1604, %v1606, %v1602
  %v1608 = vmul.f32 1.0, %v1607
  %v1609 = vrcp.pop %v1559
  %v1610 = vmul.f32 %v1559, %v1609
  %v1611 = vsub.f32 1.0, %v1610
  %v1612 = vmul.f32 %v1609, %v1611
  %v1613 = vadd.f32 %v1609, %v1612
  %vm1614 = vweird.f32 %v1559
  %vm1615 = vweird.f32 %v1609
  %vm1616 = vmor %vm1614, %vm1615
  %v1617 = vsel %vm1616, %v1609, %v1613
  %v1618 = vand.u32 2147483647, %v1559
  %vm1619 = vcmp.eq.f32.partialorder %v1618, 8.507059e+37
  %v1620 = vand.u32 %v1559, 2147483648
  %v1621 = vor.u32 1.1754944e-38, %v1620
  %v1622 = vsel %vm1619, %v1621, %v1617
  %v1623 = vmul.f32 1.0, %v1622
  %v1624 = vrcp.pop %v1560
  %v1625 = vmul.f32 %v1560, %v1624
  %v1626 = vsub.f32 1.0, %v1625
  %v1627 = vmul.f32 %v1624, %v1626
  %v1628 = vadd.f32 %v1624, %v1627
  %vm1629 = vweird.f32 %v1560
  %vm1630 = vweird.f32 %v1624
  %vm1631 = vmor %vm1629, %vm1630
  %v1632 = vsel %vm1631, %v1624, %v1628
  %v1633 = vand.u32 2147483647, %v1560
  %vm1634 = vcmp.eq.f32.partialorder %v1633, 8.507059e+37
  %v1635 = vand.u32 %v1560, 2147483648
  %v1636 = vor.u32 1.1754944e-38, %v1635
  %v1637 = vsel %vm1634, %v1636, %v1632
  %v1638 = vmul.f32 1.0, %v1637
  %v1639 = vrcp.pop %v1561
  %v1640 = vmul.f32 %v1561, %v1639
  %v1641 = vsub.f32 1.0, %v1640
  %v1642 = vmul.f32 %v1639, %v1641
  %v1643 = vadd.f32 %v1639, %v1642
  %vm1644 = vweird.f32 %v1561
  %vm1645 = vweird.f32 %v1639
  %vm1646 = vmor %vm1644, %vm1645
  %v1647 = vsel %vm1646, %v1639, %v1643
  %v1648 = vand.u32 2147483647, %v1561
  %vm1649 = vcmp.eq.f32.partialorder %v1648, 8.507059e+37
  %v1650 = vand.u32 %v1561, 2147483648
  %v1651 = vor.u32 1.1754944e-38, %v1650
  %v1652 = vsel %vm1649, %v1651, %v1647
  %v1653 = vmul.f32 1.0, %v1652
  %v1654 = vrcp.pop %v1562
  %v1655 = vmul.f32 %v1562, %v1654
  %v1656 = vsub.f32 1.0, %v1655
  %v1657 = vmul.f32 %v1654, %v1656
  %v1658 = vadd.f32 %v1654, %v1657
  %vm1659 = vweird.f32 %v1562
  %vm1660 = vweird.f32 %v1654
  %vm1661 = vmor %vm1659, %vm1660
  %v1662 = vsel %vm1661, %v1654, %v1658
  %v1663 = vand.u32 2147483647, %v1562
  %vm1664 = vcmp.eq.f32.partialorder %v1663, 8.507059e+37
  %v1665 = vand.u32 %v1562, 2147483648
  %v1666 = vor.u32 1.1754944e-38, %v1665
  %v1667 = vsel %vm1664, %v1666, %v1662
  %v1668 = vmul.f32 1.0, %v1667
  %v1669 = vrcp.pop %v1563
  %v1670 = vmul.f32 %v1563, %v1669
  %v1671 = vsub.f32 1.0, %v1670
  %v1672 = vmul.f32 %v1669, %v1671
  %v1673 = vadd.f32 %v1669, %v1672
  %vm1674 = vweird.f32 %v1563
  %vm1675 = vweird.f32 %v1669
  %vm1676 = vmor %vm1674, %vm1675
  %v1677 = vsel %vm1676, %v1669, %v1673
  %v1678 = vand.u32 2147483647, %v1563
  %vm1679 = vcmp.eq.f32.partialorder %v1678, 8.507059e+37
  %v1680 = vand.u32 %v1563, 2147483648
  %v1681 = vor.u32 1.1754944e-38, %v1680
  %v1682 = vsel %vm1679, %v1681, %v1677
  %v1683 = vmul.f32 1.0, %v1682
  %v1685 = vrot.slane %v1308, 1
  %v1686 = vrot.slane %v1308, 2
  %v1687 = vrot.slane %v1308, 3
  %v1688 = vrot.slane %v1308, 4
  %v1689 = vrot.slane %v1308, 5
  %v1690 = vrot.slane %v1308, 6
  %v1691 = vrot.slane %v1308, 7
  %v1699 = vmul.f32 %v1379, %v1308
  %v1700 = vmul.f32 %v1394, %v1685
  %v1701 = vmul.f32 %v1409, %v1686
  %v1702 = vmul.f32 %v1424, %v1687
  %v1703 = vmul.f32 %v1439, %v1688
  %v1704 = vmul.f32 %v1454, %v1689
  %v1705 = vmul.f32 %v1469, %v1690
  %v1706 = vmul.f32 %v1484, %v1691
  %v1707 = vrot.slane %v1210, 2
  %v1708 = vrot.slane %v1212, 2
  %v1709 = vrot.slane %v1214, 2
  %v1710 = vrot.slane %v1216, 2
  %v1711 = vrot.slane %v1218, 2
  %v1712 = vrot.slane %v1220, 2
  %v1713 = vrot.slane %v1222, 2
  %v1714 = vrot.slane %v1224, 2
  %v1723 = vadd.f32 %v1707, %v1699
  %v1724 = vadd.f32 %v1708, %v1700
  %v1725 = vadd.f32 %v1709, %v1701
  %v1726 = vadd.f32 %v1710, %v1702
  %v1727 = vadd.f32 %v1711, %v1703
  %v1728 = vadd.f32 %v1712, %v1704
  %v1729 = vadd.f32 %v1713, %v1705
  %v1730 = vadd.f32 %v1714, %v1706
  %v1731 = vtanh.pop %v1723
  %v1732 = vtanh.pop %v1724
  %v1733 = vtanh.pop %v1725
  %v1734 = vtanh.pop %v1726
  %v1735 = vtanh.pop %v1727
  %v1736 = vtanh.pop %v1728
  %v1737 = vtanh.pop %v1729
  %v1738 = vtanh.pop %v1730
  %v1739 = vsub.f32 1.0, %v1578
  %v1740 = vsub.f32 1.0, %v1593
  %v1741 = vsub.f32 1.0, %v1608
  %v1742 = vsub.f32 1.0, %v1623
  %v1743 = vsub.f32 1.0, %v1638
  %v1744 = vsub.f32 1.0, %v1653
  %v1745 = vsub.f32 1.0, %v1668
  %v1746 = vsub.f32 1.0, %v1683
  %v1747 = vmul.f32 %v1739, %v1731
  %v1748 = vmul.f32 %v1740, %v1732
  %v1749 = vmul.f32 %v1741, %v1733
  %v1750 = vmul.f32 %v1742, %v1734
  %v1751 = vmul.f32 %v1743, %v1735
  %v1752 = vmul.f32 %v1744, %v1736
  %v1753 = vmul.f32 %v1745, %v1737
  %v1754 = vmul.f32 %v1746, %v1738
  %v1755 = vmul.f32 %v1578, %v1193
  %v1756 = vmul.f32 %v1593, %v1194
  %v1757 = vmul.f32 %v1608, %v1195
  %v1758 = vmul.f32 %v1623, %v1196
  %v1759 = vmul.f32 %v1638, %v1197
  %v1760 = vmul.f32 %v1653, %v1198
  %v1761 = vmul.f32 %v1668, %v1199
  %v1762 = vmul.f32 %v1683, %v1200
  %v1763 = vadd.f32 %v1747, %v1755
  %v1764 = vadd.f32 %v1748, %v1756
  %v1765 = vadd.f32 %v1749, %v1757
  %v1766 = vadd.f32 %v1750, %v1758
  %v1767 = vadd.f32 %v1751, %v1759
  %v1768 = vadd.f32 %v1752, %v1760
  %v1769 = vadd.f32 %v1753, %v1761
  %v1770 = vadd.f32 %v1754, %v1762
  %1771 = vst [vmem:[%s4 + $0x2] sm:$0x1] %v1763
  %1772 = vst [vmem:[%s4 + $0xa] sm:$0x1] %v1764
  %1773 = vst [vmem:[%s4 + $0x12] sm:$0x1] %v1765
  %1774 = vst [vmem:[%s4 + $0x1a] sm:$0x1] %v1766
  %1775 = vst [vmem:[%s4 + $0x22] sm:$0x1] %v1767
  %1776 = vst [vmem:[%s4 + $0x2a] sm:$0x1] %v1768
  %1777 = vst [vmem:[%s4 + $0x32] sm:$0x1] %v1769
  %1778 = vst [vmem:[%s4 + $0x3a] sm:$0x1] %v1770
  %s1779 = scalar_lea.vmem %s1, 3
  %v1780 = vld [vmem:[%s1779] ss:$8 sm:$0x7]
  %s1781 = scalar_lea.vmem %s1, 27
  %v1782 = vld [vmem:[%s1781] ss:$8 sm:$0x7]
  %s1783 = scalar_lea.vmem %s1, 51
  %v1784 = vld [vmem:[%s1783] ss:$8 sm:$0x7]
  %s1785 = scalar_lea.vmem %s1, 75
  %v1786 = vld [vmem:[%s1785] ss:$8 sm:$0x7]
  %s1787 = scalar_lea.vmem %s1, 99
  %v1788 = vld [vmem:[%s1787] ss:$8 sm:$0x7]
  %s1789 = scalar_lea.vmem %s1, 123
  %v1790 = vld [vmem:[%s1789] ss:$8 sm:$0x7]
  %s1791 = scalar_lea.vmem %s1, 147
  %v1792 = vld [vmem:[%s1791] ss:$8 sm:$0x7]
  %s1793 = scalar_lea.vmem %s1, 171
  %v1794 = vld [vmem:[%s1793] ss:$8 sm:$0x7]
  %1803 = vst [vmem:[#allocation1] ss:$9 sm:$0xff] %v1763
  %s1804 = scalar_lea.vmem [#allocation1], 1
  %1805 = vst [vmem:[%s1804] ss:$9 sm:$0xff] %v1764
  %s1806 = scalar_lea.vmem [#allocation1], 2
  %1807 = vst [vmem:[%s1806] ss:$9 sm:$0xff] %v1765
  %s1808 = scalar_lea.vmem [#allocation1], 3
  %1809 = vst [vmem:[%s1808] ss:$9 sm:$0xff] %v1766
  %s1810 = scalar_lea.vmem [#allocation1], 4
  %1811 = vst [vmem:[%s1810] ss:$9 sm:$0xff] %v1767
  %s1812 = scalar_lea.vmem [#allocation1], 5
  %1813 = vst [vmem:[%s1812] ss:$9 sm:$0xff] %v1768
  %s1814 = scalar_lea.vmem [#allocation1], 6
  %1815 = vst [vmem:[%s1814] ss:$9 sm:$0xff] %v1769
  %s1816 = scalar_lea.vmem [#allocation1], 7
  %1817 = vst [vmem:[%s1816] ss:$9 sm:$0xff] %v1770
  %v1818 = vld [vmem:[#allocation1] sm:$0xff]
  %1820 = vmatpush.msra.mxu0 %v69
  %1821 = vmatpush.msra.mxu0 %v66
  %1822 = vmatpush.msra.mxu0 %v63
  %1823 = vmatpush.msra.mxu0 %v60
  %1824 = vmatpush.msra.mxu0 %v57
  %1825 = vmatpush.msra.mxu0 %v54
  %1826 = vmatpush.msra.mxu0 %v51
  %1827 = vmatpush.msra.mxu0 %v48
  %1828 = vmatpush.msra.mxu0 %v45
  %1829 = vmatpush.msra.mxu0 %v42
  %1830 = vmatpush.msra.mxu0 %v39
  %1831 = vmatpush.msra.mxu0 %v36
  %1832 = vmatpush.msra.mxu0 %v33
  %1833 = vmatpush.msra.mxu0 %v30
  %1834 = vmatpush.msra.mxu0 %v27
  %1835 = vmatpush.msra.mxu0 %v24
  %1836 = vmatmul.f32.gmra.mxu0 %v1818
  %v1837 = vpop.f32.mrf.mxu0
  %v1838 = vadd.f32 %v74, %v1837
  %1839 = vdwg.mxu0
  %1840 = vmatpush.msra.mxu0 %v70
  %1841 = vmatpush.msra.mxu0 %v67
  %1842 = vmatpush.msra.mxu0 %v64
  %1843 = vmatpush.msra.mxu0 %v61
  %1844 = vmatpush.msra.mxu0 %v58
  %1845 = vmatpush.msra.mxu0 %v55
  %1846 = vmatpush.msra.mxu0 %v52
  %1847 = vmatpush.msra.mxu0 %v49
  %1848 = vmatpush.msra.mxu0 %v46
  %1849 = vmatpush.msra.mxu0 %v43
  %1850 = vmatpush.msra.mxu0 %v40
  %1851 = vmatpush.msra.mxu0 %v37
  %1852 = vmatpush.msra.mxu0 %v34
  %1853 = vmatpush.msra.mxu0 %v31
  %1854 = vmatpush.msra.mxu0 %v28
  %1855 = vmatpush.msra.mxu0 %v25
  %1856 = vmatmul.f32.gmra.mxu0 %v1818
  %v1857 = vpop.f32.mrf.mxu0
  %v1858 = vadd.f32 %v75, %v1857
  %1859 = vdwg.mxu0
  %1860 = vmatpush.msra.mxu0 %v71
  %1861 = vmatpush.msra.mxu0 %v68
  %1862 = vmatpush.msra.mxu0 %v65
  %1863 = vmatpush.msra.mxu0 %v62
  %1864 = vmatpush.msra.mxu0 %v59
  %1865 = vmatpush.msra.mxu0 %v56
  %1866 = vmatpush.msra.mxu0 %v53
  %1867 = vmatpush.msra.mxu0 %v50
  %1868 = vmatpush.msra.mxu0 %v47
  %1869 = vmatpush.msra.mxu0 %v44
  %1870 = vmatpush.msra.mxu0 %v41
  %1871 = vmatpush.msra.mxu0 %v38
  %1872 = vmatpush.msra.mxu0 %v35
  %1873 = vmatpush.msra.mxu0 %v32
  %1874 = vmatpush.msra.mxu0 %v29
  %1875 = vmatpush.msra.mxu0 %v26
  %1876 = vmatmul.f32.gmra.mxu0 %v1818
  %v1877 = vpop.f32.mrf.mxu0
  %v1878 = vadd.f32 %v76, %v1877
  %1879 = vdwg.mxu0
  %v1881 = vrot.slane %v1838, 1
  %v1882 = vrot.slane %v1838, 2
  %v1883 = vrot.slane %v1838, 3
  %v1884 = vrot.slane %v1838, 4
  %v1885 = vrot.slane %v1838, 5
  %v1886 = vrot.slane %v1838, 6
  %v1887 = vrot.slane %v1838, 7
  %v1895 = vadd.f32 %v1780, %v1838
  %v1896 = vadd.f32 %v1782, %v1881
  %v1897 = vadd.f32 %v1784, %v1882
  %v1898 = vadd.f32 %v1786, %v1883
  %v1899 = vadd.f32 %v1788, %v1884
  %v1900 = vadd.f32 %v1790, %v1885
  %v1901 = vadd.f32 %v1792, %v1886
  %v1902 = vadd.f32 %v1794, %v1887
  %v1903 = vxor.u32 %v1895, 2147483648
  %v1904 = vxor.u32 %v1896, 2147483648
  %v1905 = vxor.u32 %v1897, 2147483648
  %v1906 = vxor.u32 %v1898, 2147483648
  %v1907 = vxor.u32 %v1899, 2147483648
  %v1908 = vxor.u32 %v1900, 2147483648
  %v1909 = vxor.u32 %v1901, 2147483648
  %v1910 = vxor.u32 %v1902, 2147483648
  %v1911 = vmul.f32 %v1903, 1.442695
  %v1912 = vpow.pop %v1911
  %v1913 = vmul.f32 %v1904, 1.442695
  %v1914 = vpow.pop %v1913
  %v1915 = vmul.f32 %v1905, 1.442695
  %v1916 = vpow.pop %v1915
  %v1917 = vmul.f32 %v1906, 1.442695
  %v1918 = vpow.pop %v1917
  %v1919 = vmul.f32 %v1907, 1.442695
  %v1920 = vpow.pop %v1919
  %v1921 = vmul.f32 %v1908, 1.442695
  %v1922 = vpow.pop %v1921
  %v1923 = vmul.f32 %v1909, 1.442695
  %v1924 = vpow.pop %v1923
  %v1925 = vmul.f32 %v1910, 1.442695
  %v1926 = vpow.pop %v1925
  %v1927 = vadd.f32 %v1912, 1.0
  %v1928 = vadd.f32 %v1914, 1.0
  %v1929 = vadd.f32 %v1916, 1.0
  %v1930 = vadd.f32 %v1918, 1.0
  %v1931 = vadd.f32 %v1920, 1.0
  %v1932 = vadd.f32 %v1922, 1.0
  %v1933 = vadd.f32 %v1924, 1.0
  %v1934 = vadd.f32 %v1926, 1.0
  %v1935 = vrcp.pop %v1927
  %v1936 = vmul.f32 %v1927, %v1935
  %v1937 = vsub.f32 1.0, %v1936
  %v1938 = vmul.f32 %v1935, %v1937
  %v1939 = vadd.f32 %v1935, %v1938
  %vm1940 = vweird.f32 %v1927
  %vm1941 = vweird.f32 %v1935
  %vm1942 = vmor %vm1940, %vm1941
  %v1943 = vsel %vm1942, %v1935, %v1939
  %v1944 = vand.u32 2147483647, %v1927
  %vm1945 = vcmp.eq.f32.partialorder %v1944, 8.507059e+37
  %v1946 = vand.u32 %v1927, 2147483648
  %v1947 = vor.u32 1.1754944e-38, %v1946
  %v1948 = vsel %vm1945, %v1947, %v1943
  %v1949 = vmul.f32 1.0, %v1948
  %v1950 = vrcp.pop %v1928
  %v1951 = vmul.f32 %v1928, %v1950
  %v1952 = vsub.f32 1.0, %v1951
  %v1953 = vmul.f32 %v1950, %v1952
  %v1954 = vadd.f32 %v1950, %v1953
  %vm1955 = vweird.f32 %v1928
  %vm1956 = vweird.f32 %v1950
  %vm1957 = vmor %vm1955, %vm1956
  %v1958 = vsel %vm1957, %v1950, %v1954
  %v1959 = vand.u32 2147483647, %v1928
  %vm1960 = vcmp.eq.f32.partialorder %v1959, 8.507059e+37
  %v1961 = vand.u32 %v1928, 2147483648
  %v1962 = vor.u32 1.1754944e-38, %v1961
  %v1963 = vsel %vm1960, %v1962, %v1958
  %v1964 = vmul.f32 1.0, %v1963
  %v1965 = vrcp.pop %v1929
  %v1966 = vmul.f32 %v1929, %v1965
  %v1967 = vsub.f32 1.0, %v1966
  %v1968 = vmul.f32 %v1965, %v1967
  %v1969 = vadd.f32 %v1965, %v1968
  %vm1970 = vweird.f32 %v1929
  %vm1971 = vweird.f32 %v1965
  %vm1972 = vmor %vm1970, %vm1971
  %v1973 = vsel %vm1972, %v1965, %v1969
  %v1974 = vand.u32 2147483647, %v1929
  %vm1975 = vcmp.eq.f32.partialorder %v1974, 8.507059e+37
  %v1976 = vand.u32 %v1929, 2147483648
  %v1977 = vor.u32 1.1754944e-38, %v1976
  %v1978 = vsel %vm1975, %v1977, %v1973
  %v1979 = vmul.f32 1.0, %v1978
  %v1980 = vrcp.pop %v1930
  %v1981 = vmul.f32 %v1930, %v1980
  %v1982 = vsub.f32 1.0, %v1981
  %v1983 = vmul.f32 %v1980, %v1982
  %v1984 = vadd.f32 %v1980, %v1983
  %vm1985 = vweird.f32 %v1930
  %vm1986 = vweird.f32 %v1980
  %vm1987 = vmor %vm1985, %vm1986
  %v1988 = vsel %vm1987, %v1980, %v1984
  %v1989 = vand.u32 2147483647, %v1930
  %vm1990 = vcmp.eq.f32.partialorder %v1989, 8.507059e+37
  %v1991 = vand.u32 %v1930, 2147483648
  %v1992 = vor.u32 1.1754944e-38, %v1991
  %v1993 = vsel %vm1990, %v1992, %v1988
  %v1994 = vmul.f32 1.0, %v1993
  %v1995 = vrcp.pop %v1931
  %v1996 = vmul.f32 %v1931, %v1995
  %v1997 = vsub.f32 1.0, %v1996
  %v1998 = vmul.f32 %v1995, %v1997
  %v1999 = vadd.f32 %v1995, %v1998
  %vm2000 = vweird.f32 %v1931
  %vm2001 = vweird.f32 %v1995
  %vm2002 = vmor %vm2000, %vm2001
  %v2003 = vsel %vm2002, %v1995, %v1999
  %v2004 = vand.u32 2147483647, %v1931
  %vm2005 = vcmp.eq.f32.partialorder %v2004, 8.507059e+37
  %v2006 = vand.u32 %v1931, 2147483648
  %v2007 = vor.u32 1.1754944e-38, %v2006
  %v2008 = vsel %vm2005, %v2007, %v2003
  %v2009 = vmul.f32 1.0, %v2008
  %v2010 = vrcp.pop %v1932
  %v2011 = vmul.f32 %v1932, %v2010
  %v2012 = vsub.f32 1.0, %v2011
  %v2013 = vmul.f32 %v2010, %v2012
  %v2014 = vadd.f32 %v2010, %v2013
  %vm2015 = vweird.f32 %v1932
  %vm2016 = vweird.f32 %v2010
  %vm2017 = vmor %vm2015, %vm2016
  %v2018 = vsel %vm2017, %v2010, %v2014
  %v2019 = vand.u32 2147483647, %v1932
  %vm2020 = vcmp.eq.f32.partialorder %v2019, 8.507059e+37
  %v2021 = vand.u32 %v1932, 2147483648
  %v2022 = vor.u32 1.1754944e-38, %v2021
  %v2023 = vsel %vm2020, %v2022, %v2018
  %v2024 = vmul.f32 1.0, %v2023
  %v2025 = vrcp.pop %v1933
  %v2026 = vmul.f32 %v1933, %v2025
  %v2027 = vsub.f32 1.0, %v2026
  %v2028 = vmul.f32 %v2025, %v2027
  %v2029 = vadd.f32 %v2025, %v2028
  %vm2030 = vweird.f32 %v1933
  %vm2031 = vweird.f32 %v2025
  %vm2032 = vmor %vm2030, %vm2031
  %v2033 = vsel %vm2032, %v2025, %v2029
  %v2034 = vand.u32 2147483647, %v1933
  %vm2035 = vcmp.eq.f32.partialorder %v2034, 8.507059e+37
  %v2036 = vand.u32 %v1933, 2147483648
  %v2037 = vor.u32 1.1754944e-38, %v2036
  %v2038 = vsel %vm2035, %v2037, %v2033
  %v2039 = vmul.f32 1.0, %v2038
  %v2040 = vrcp.pop %v1934
  %v2041 = vmul.f32 %v1934, %v2040
  %v2042 = vsub.f32 1.0, %v2041
  %v2043 = vmul.f32 %v2040, %v2042
  %v2044 = vadd.f32 %v2040, %v2043
  %vm2045 = vweird.f32 %v1934
  %vm2046 = vweird.f32 %v2040
  %vm2047 = vmor %vm2045, %vm2046
  %v2048 = vsel %vm2047, %v2040, %v2044
  %v2049 = vand.u32 2147483647, %v1934
  %vm2050 = vcmp.eq.f32.partialorder %v2049, 8.507059e+37
  %v2051 = vand.u32 %v1934, 2147483648
  %v2052 = vor.u32 1.1754944e-38, %v2051
  %v2053 = vsel %vm2050, %v2052, %v2048
  %v2054 = vmul.f32 1.0, %v2053
  %v2063 = vrot.slane %v1780, 1
  %v2064 = vrot.slane %v1782, 1
  %v2065 = vrot.slane %v1784, 1
  %v2066 = vrot.slane %v1786, 1
  %v2067 = vrot.slane %v1788, 1
  %v2068 = vrot.slane %v1790, 1
  %v2069 = vrot.slane %v1792, 1
  %v2070 = vrot.slane %v1794, 1
  %v2080 = vrot.slane %v1858, 1
  %v2081 = vrot.slane %v1858, 2
  %v2082 = vrot.slane %v1858, 3
  %v2083 = vrot.slane %v1858, 4
  %v2084 = vrot.slane %v1858, 5
  %v2085 = vrot.slane %v1858, 6
  %v2086 = vrot.slane %v1858, 7
  %v2094 = vadd.f32 %v2063, %v1858
  %v2095 = vadd.f32 %v2064, %v2080
  %v2096 = vadd.f32 %v2065, %v2081
  %v2097 = vadd.f32 %v2066, %v2082
  %v2098 = vadd.f32 %v2067, %v2083
  %v2099 = vadd.f32 %v2068, %v2084
  %v2100 = vadd.f32 %v2069, %v2085
  %v2101 = vadd.f32 %v2070, %v2086
  %v2102 = vxor.u32 %v2094, 2147483648
  %v2103 = vxor.u32 %v2095, 2147483648
  %v2104 = vxor.u32 %v2096, 2147483648
  %v2105 = vxor.u32 %v2097, 2147483648
  %v2106 = vxor.u32 %v2098, 2147483648
  %v2107 = vxor.u32 %v2099, 2147483648
  %v2108 = vxor.u32 %v2100, 2147483648
  %v2109 = vxor.u32 %v2101, 2147483648
  %v2110 = vmul.f32 %v2102, 1.442695
  %v2111 = vpow.pop %v2110
  %v2112 = vmul.f32 %v2103, 1.442695
  %v2113 = vpow.pop %v2112
  %v2114 = vmul.f32 %v2104, 1.442695
  %v2115 = vpow.pop %v2114
  %v2116 = vmul.f32 %v2105, 1.442695
  %v2117 = vpow.pop %v2116
  %v2118 = vmul.f32 %v2106, 1.442695
  %v2119 = vpow.pop %v2118
  %v2120 = vmul.f32 %v2107, 1.442695
  %v2121 = vpow.pop %v2120
  %v2122 = vmul.f32 %v2108, 1.442695
  %v2123 = vpow.pop %v2122
  %v2124 = vmul.f32 %v2109, 1.442695
  %v2125 = vpow.pop %v2124
  %v2126 = vadd.f32 %v2111, 1.0
  %v2127 = vadd.f32 %v2113, 1.0
  %v2128 = vadd.f32 %v2115, 1.0
  %v2129 = vadd.f32 %v2117, 1.0
  %v2130 = vadd.f32 %v2119, 1.0
  %v2131 = vadd.f32 %v2121, 1.0
  %v2132 = vadd.f32 %v2123, 1.0
  %v2133 = vadd.f32 %v2125, 1.0
  %v2134 = vrcp.pop %v2126
  %v2135 = vmul.f32 %v2126, %v2134
  %v2136 = vsub.f32 1.0, %v2135
  %v2137 = vmul.f32 %v2134, %v2136
  %v2138 = vadd.f32 %v2134, %v2137
  %vm2139 = vweird.f32 %v2126
  %vm2140 = vweird.f32 %v2134
  %vm2141 = vmor %vm2139, %vm2140
  %v2142 = vsel %vm2141, %v2134, %v2138
  %v2143 = vand.u32 2147483647, %v2126
  %vm2144 = vcmp.eq.f32.partialorder %v2143, 8.507059e+37
  %v2145 = vand.u32 %v2126, 2147483648
  %v2146 = vor.u32 1.1754944e-38, %v2145
  %v2147 = vsel %vm2144, %v2146, %v2142
  %v2148 = vmul.f32 1.0, %v2147
  %v2149 = vrcp.pop %v2127
  %v2150 = vmul.f32 %v2127, %v2149
  %v2151 = vsub.f32 1.0, %v2150
  %v2152 = vmul.f32 %v2149, %v2151
  %v2153 = vadd.f32 %v2149, %v2152
  %vm2154 = vweird.f32 %v2127
  %vm2155 = vweird.f32 %v2149
  %vm2156 = vmor %vm2154, %vm2155
  %v2157 = vsel %vm2156, %v2149, %v2153
  %v2158 = vand.u32 2147483647, %v2127
  %vm2159 = vcmp.eq.f32.partialorder %v2158, 8.507059e+37
  %v2160 = vand.u32 %v2127, 2147483648
  %v2161 = vor.u32 1.1754944e-38, %v2160
  %v2162 = vsel %vm2159, %v2161, %v2157
  %v2163 = vmul.f32 1.0, %v2162
  %v2164 = vrcp.pop %v2128
  %v2165 = vmul.f32 %v2128, %v2164
  %v2166 = vsub.f32 1.0, %v2165
  %v2167 = vmul.f32 %v2164, %v2166
  %v2168 = vadd.f32 %v2164, %v2167
  %vm2169 = vweird.f32 %v2128
  %vm2170 = vweird.f32 %v2164
  %vm2171 = vmor %vm2169, %vm2170
  %v2172 = vsel %vm2171, %v2164, %v2168
  %v2173 = vand.u32 2147483647, %v2128
  %vm2174 = vcmp.eq.f32.partialorder %v2173, 8.507059e+37
  %v2175 = vand.u32 %v2128, 2147483648
  %v2176 = vor.u32 1.1754944e-38, %v2175
  %v2177 = vsel %vm2174, %v2176, %v2172
  %v2178 = vmul.f32 1.0, %v2177
  %v2179 = vrcp.pop %v2129
  %v2180 = vmul.f32 %v2129, %v2179
  %v2181 = vsub.f32 1.0, %v2180
  %v2182 = vmul.f32 %v2179, %v2181
  %v2183 = vadd.f32 %v2179, %v2182
  %vm2184 = vweird.f32 %v2129
  %vm2185 = vweird.f32 %v2179
  %vm2186 = vmor %vm2184, %vm2185
  %v2187 = vsel %vm2186, %v2179, %v2183
  %v2188 = vand.u32 2147483647, %v2129
  %vm2189 = vcmp.eq.f32.partialorder %v2188, 8.507059e+37
  %v2190 = vand.u32 %v2129, 2147483648
  %v2191 = vor.u32 1.1754944e-38, %v2190
  %v2192 = vsel %vm2189, %v2191, %v2187
  %v2193 = vmul.f32 1.0, %v2192
  %v2194 = vrcp.pop %v2130
  %v2195 = vmul.f32 %v2130, %v2194
  %v2196 = vsub.f32 1.0, %v2195
  %v2197 = vmul.f32 %v2194, %v2196
  %v2198 = vadd.f32 %v2194, %v2197
  %vm2199 = vweird.f32 %v2130
  %vm2200 = vweird.f32 %v2194
  %vm2201 = vmor %vm2199, %vm2200
  %v2202 = vsel %vm2201, %v2194, %v2198
  %v2203 = vand.u32 2147483647, %v2130
  %vm2204 = vcmp.eq.f32.partialorder %v2203, 8.507059e+37
  %v2205 = vand.u32 %v2130, 2147483648
  %v2206 = vor.u32 1.1754944e-38, %v2205
  %v2207 = vsel %vm2204, %v2206, %v2202
  %v2208 = vmul.f32 1.0, %v2207
  %v2209 = vrcp.pop %v2131
  %v2210 = vmul.f32 %v2131, %v2209
  %v2211 = vsub.f32 1.0, %v2210
  %v2212 = vmul.f32 %v2209, %v2211
  %v2213 = vadd.f32 %v2209, %v2212
  %vm2214 = vweird.f32 %v2131
  %vm2215 = vweird.f32 %v2209
  %vm2216 = vmor %vm2214, %vm2215
  %v2217 = vsel %vm2216, %v2209, %v2213
  %v2218 = vand.u32 2147483647, %v2131
  %vm2219 = vcmp.eq.f32.partialorder %v2218, 8.507059e+37
  %v2220 = vand.u32 %v2131, 2147483648
  %v2221 = vor.u32 1.1754944e-38, %v2220
  %v2222 = vsel %vm2219, %v2221, %v2217
  %v2223 = vmul.f32 1.0, %v2222
  %v2224 = vrcp.pop %v2132
  %v2225 = vmul.f32 %v2132, %v2224
  %v2226 = vsub.f32 1.0, %v2225
  %v2227 = vmul.f32 %v2224, %v2226
  %v2228 = vadd.f32 %v2224, %v2227
  %vm2229 = vweird.f32 %v2132
  %vm2230 = vweird.f32 %v2224
  %vm2231 = vmor %vm2229, %vm2230
  %v2232 = vsel %vm2231, %v2224, %v2228
  %v2233 = vand.u32 2147483647, %v2132
  %vm2234 = vcmp.eq.f32.partialorder %v2233, 8.507059e+37
  %v2235 = vand.u32 %v2132, 2147483648
  %v2236 = vor.u32 1.1754944e-38, %v2235
  %v2237 = vsel %vm2234, %v2236, %v2232
  %v2238 = vmul.f32 1.0, %v2237
  %v2239 = vrcp.pop %v2133
  %v2240 = vmul.f32 %v2133, %v2239
  %v2241 = vsub.f32 1.0, %v2240
  %v2242 = vmul.f32 %v2239, %v2241
  %v2243 = vadd.f32 %v2239, %v2242
  %vm2244 = vweird.f32 %v2133
  %vm2245 = vweird.f32 %v2239
  %vm2246 = vmor %vm2244, %vm2245
  %v2247 = vsel %vm2246, %v2239, %v2243
  %v2248 = vand.u32 2147483647, %v2133
  %vm2249 = vcmp.eq.f32.partialorder %v2248, 8.507059e+37
  %v2250 = vand.u32 %v2133, 2147483648
  %v2251 = vor.u32 1.1754944e-38, %v2250
  %v2252 = vsel %vm2249, %v2251, %v2247
  %v2253 = vmul.f32 1.0, %v2252
  %v2255 = vrot.slane %v1878, 1
  %v2256 = vrot.slane %v1878, 2
  %v2257 = vrot.slane %v1878, 3
  %v2258 = vrot.slane %v1878, 4
  %v2259 = vrot.slane %v1878, 5
  %v2260 = vrot.slane %v1878, 6
  %v2261 = vrot.slane %v1878, 7
  %v2269 = vmul.f32 %v1949, %v1878
  %v2270 = vmul.f32 %v1964, %v2255
  %v2271 = vmul.f32 %v1979, %v2256
  %v2272 = vmul.f32 %v1994, %v2257
  %v2273 = vmul.f32 %v2009, %v2258
  %v2274 = vmul.f32 %v2024, %v2259
  %v2275 = vmul.f32 %v2039, %v2260
  %v2276 = vmul.f32 %v2054, %v2261
  %v2277 = vrot.slane %v1780, 2
  %v2278 = vrot.slane %v1782, 2
  %v2279 = vrot.slane %v1784, 2
  %v2280 = vrot.slane %v1786, 2
  %v2281 = vrot.slane %v1788, 2
  %v2282 = vrot.slane %v1790, 2
  %v2283 = vrot.slane %v1792, 2
  %v2284 = vrot.slane %v1794, 2
  %v2293 = vadd.f32 %v2277, %v2269
  %v2294 = vadd.f32 %v2278, %v2270
  %v2295 = vadd.f32 %v2279, %v2271
  %v2296 = vadd.f32 %v2280, %v2272
  %v2297 = vadd.f32 %v2281, %v2273
  %v2298 = vadd.f32 %v2282, %v2274
  %v2299 = vadd.f32 %v2283, %v2275
  %v2300 = vadd.f32 %v2284, %v2276
  %v2301 = vtanh.pop %v2293
  %v2302 = vtanh.pop %v2294
  %v2303 = vtanh.pop %v2295
  %v2304 = vtanh.pop %v2296
  %v2305 = vtanh.pop %v2297
  %v2306 = vtanh.pop %v2298
  %v2307 = vtanh.pop %v2299
  %v2308 = vtanh.pop %v2300
  %v2309 = vsub.f32 1.0, %v2148
  %v2310 = vsub.f32 1.0, %v2163
  %v2311 = vsub.f32 1.0, %v2178
  %v2312 = vsub.f32 1.0, %v2193
  %v2313 = vsub.f32 1.0, %v2208
  %v2314 = vsub.f32 1.0, %v2223
  %v2315 = vsub.f32 1.0, %v2238
  %v2316 = vsub.f32 1.0, %v2253
  %v2317 = vmul.f32 %v2309, %v2301
  %v2318 = vmul.f32 %v2310, %v2302
  %v2319 = vmul.f32 %v2311, %v2303
  %v2320 = vmul.f32 %v2312, %v2304
  %v2321 = vmul.f32 %v2313, %v2305
  %v2322 = vmul.f32 %v2314, %v2306
  %v2323 = vmul.f32 %v2315, %v2307
  %v2324 = vmul.f32 %v2316, %v2308
  %v2325 = vmul.f32 %v2148, %v1763
  %v2326 = vmul.f32 %v2163, %v1764
  %v2327 = vmul.f32 %v2178, %v1765
  %v2328 = vmul.f32 %v2193, %v1766
  %v2329 = vmul.f32 %v2208, %v1767
  %v2330 = vmul.f32 %v2223, %v1768
  %v2331 = vmul.f32 %v2238, %v1769
  %v2332 = vmul.f32 %v2253, %v1770
  %v2333 = vadd.f32 %v2317, %v2325
  %v2334 = vadd.f32 %v2318, %v2326
  %v2335 = vadd.f32 %v2319, %v2327
  %v2336 = vadd.f32 %v2320, %v2328
  %v2337 = vadd.f32 %v2321, %v2329
  %v2338 = vadd.f32 %v2322, %v2330
  %v2339 = vadd.f32 %v2323, %v2331
  %v2340 = vadd.f32 %v2324, %v2332
  %2341 = vst [vmem:[%s4 + $0x3] sm:$0x1] %v2333
  %2342 = vst [vmem:[%s4 + $0xb] sm:$0x1] %v2334
  %2343 = vst [vmem:[%s4 + $0x13] sm:$0x1] %v2335
  %2344 = vst [vmem:[%s4 + $0x1b] sm:$0x1] %v2336
  %2345 = vst [vmem:[%s4 + $0x23] sm:$0x1] %v2337
  %2346 = vst [vmem:[%s4 + $0x2b] sm:$0x1] %v2338
  %2347 = vst [vmem:[%s4 + $0x33] sm:$0x1] %v2339
  %2348 = vst [vmem:[%s4 + $0x3b] sm:$0x1] %v2340
  %s2349 = scalar_lea.vmem %s1, 4
  %v2350 = vld [vmem:[%s2349] ss:$8 sm:$0x7]
  %s2351 = scalar_lea.vmem %s1, 28
  %v2352 = vld [vmem:[%s2351] ss:$8 sm:$0x7]
  %s2353 = scalar_lea.vmem %s1, 52
  %v2354 = vld [vmem:[%s2353] ss:$8 sm:$0x7]
  %s2355 = scalar_lea.vmem %s1, 76
  %v2356 = vld [vmem:[%s2355] ss:$8 sm:$0x7]
  %s2357 = scalar_lea.vmem %s1, 100
  %v2358 = vld [vmem:[%s2357] ss:$8 sm:$0x7]
  %s2359 = scalar_lea.vmem %s1, 124
  %v2360 = vld [vmem:[%s2359] ss:$8 sm:$0x7]
  %s2361 = scalar_lea.vmem %s1, 148
  %v2362 = vld [vmem:[%s2361] ss:$8 sm:$0x7]
  %s2363 = scalar_lea.vmem %s1, 172
  %v2364 = vld [vmem:[%s2363] ss:$8 sm:$0x7]
  %2373 = vst [vmem:[#allocation1] ss:$9 sm:$0xff] %v2333
  %s2374 = scalar_lea.vmem [#allocation1], 1
  %2375 = vst [vmem:[%s2374] ss:$9 sm:$0xff] %v2334
  %s2376 = scalar_lea.vmem [#allocation1], 2
  %2377 = vst [vmem:[%s2376] ss:$9 sm:$0xff] %v2335
  %s2378 = scalar_lea.vmem [#allocation1], 3
  %2379 = vst [vmem:[%s2378] ss:$9 sm:$0xff] %v2336
  %s2380 = scalar_lea.vmem [#allocation1], 4
  %2381 = vst [vmem:[%s2380] ss:$9 sm:$0xff] %v2337
  %s2382 = scalar_lea.vmem [#allocation1], 5
  %2383 = vst [vmem:[%s2382] ss:$9 sm:$0xff] %v2338
  %s2384 = scalar_lea.vmem [#allocation1], 6
  %2385 = vst [vmem:[%s2384] ss:$9 sm:$0xff] %v2339
  %s2386 = scalar_lea.vmem [#allocation1], 7
  %2387 = vst [vmem:[%s2386] ss:$9 sm:$0xff] %v2340
  %v2388 = vld [vmem:[#allocation1] sm:$0xff]
  %2390 = vmatpush.msra.mxu0 %v69
  %2391 = vmatpush.msra.mxu0 %v66
  %2392 = vmatpush.msra.mxu0 %v63
  %2393 = vmatpush.msra.mxu0 %v60
  %2394 = vmatpush.msra.mxu0 %v57
  %2395 = vmatpush.msra.mxu0 %v54
  %2396 = vmatpush.msra.mxu0 %v51
  %2397 = vmatpush.msra.mxu0 %v48
  %2398 = vmatpush.msra.mxu0 %v45
  %2399 = vmatpush.msra.mxu0 %v42
  %2400 = vmatpush.msra.mxu0 %v39
  %2401 = vmatpush.msra.mxu0 %v36
  %2402 = vmatpush.msra.mxu0 %v33
  %2403 = vmatpush.msra.mxu0 %v30
  %2404 = vmatpush.msra.mxu0 %v27
  %2405 = vmatpush.msra.mxu0 %v24
  %2406 = vmatmul.f32.gmra.mxu0 %v2388
  %v2407 = vpop.f32.mrf.mxu0
  %v2408 = vadd.f32 %v74, %v2407
  %2409 = vdwg.mxu0
  %2410 = vmatpush.msra.mxu0 %v70
  %2411 = vmatpush.msra.mxu0 %v67
  %2412 = vmatpush.msra.mxu0 %v64
  %2413 = vmatpush.msra.mxu0 %v61
  %2414 = vmatpush.msra.mxu0 %v58
  %2415 = vmatpush.msra.mxu0 %v55
  %2416 = vmatpush.msra.mxu0 %v52
  %2417 = vmatpush.msra.mxu0 %v49
  %2418 = vmatpush.msra.mxu0 %v46
  %2419 = vmatpush.msra.mxu0 %v43
  %2420 = vmatpush.msra.mxu0 %v40
  %2421 = vmatpush.msra.mxu0 %v37
  %2422 = vmatpush.msra.mxu0 %v34
  %2423 = vmatpush.msra.mxu0 %v31
  %2424 = vmatpush.msra.mxu0 %v28
  %2425 = vmatpush.msra.mxu0 %v25
  %2426 = vmatmul.f32.gmra.mxu0 %v2388
  %v2427 = vpop.f32.mrf.mxu0
  %v2428 = vadd.f32 %v75, %v2427
  %2429 = vdwg.mxu0
  %2430 = vmatpush.msra.mxu0 %v71
  %2431 = vmatpush.msra.mxu0 %v68
  %2432 = vmatpush.msra.mxu0 %v65
  %2433 = vmatpush.msra.mxu0 %v62
  %2434 = vmatpush.msra.mxu0 %v59
  %2435 = vmatpush.msra.mxu0 %v56
  %2436 = vmatpush.msra.mxu0 %v53
  %2437 = vmatpush.msra.mxu0 %v50
  %2438 = vmatpush.msra.mxu0 %v47
  %2439 = vmatpush.msra.mxu0 %v44
  %2440 = vmatpush.msra.mxu0 %v41
  %2441 = vmatpush.msra.mxu0 %v38
  %2442 = vmatpush.msra.mxu0 %v35
  %2443 = vmatpush.msra.mxu0 %v32
  %2444 = vmatpush.msra.mxu0 %v29
  %2445 = vmatpush.msra.mxu0 %v26
  %2446 = vmatmul.f32.gmra.mxu0 %v2388
  %v2447 = vpop.f32.mrf.mxu0
  %v2448 = vadd.f32 %v76, %v2447
  %2449 = vdwg.mxu0
  %v2451 = vrot.slane %v2408, 1
  %v2452 = vrot.slane %v2408, 2
  %v2453 = vrot.slane %v2408, 3
  %v2454 = vrot.slane %v2408, 4
  %v2455 = vrot.slane %v2408, 5
  %v2456 = vrot.slane %v2408, 6
  %v2457 = vrot.slane %v2408, 7
  %v2465 = vadd.f32 %v2350, %v2408
  %v2466 = vadd.f32 %v2352, %v2451
  %v2467 = vadd.f32 %v2354, %v2452
  %v2468 = vadd.f32 %v2356, %v2453
  %v2469 = vadd.f32 %v2358, %v2454
  %v2470 = vadd.f32 %v2360, %v2455
  %v2471 = vadd.f32 %v2362, %v2456
  %v2472 = vadd.f32 %v2364, %v2457
  %v2473 = vxor.u32 %v2465, 2147483648
  %v2474 = vxor.u32 %v2466, 2147483648
  %v2475 = vxor.u32 %v2467, 2147483648
  %v2476 = vxor.u32 %v2468, 2147483648
  %v2477 = vxor.u32 %v2469, 2147483648
  %v2478 = vxor.u32 %v2470, 2147483648
  %v2479 = vxor.u32 %v2471, 2147483648
  %v2480 = vxor.u32 %v2472, 2147483648
  %v2481 = vmul.f32 %v2473, 1.442695
  %v2482 = vpow.pop %v2481
  %v2483 = vmul.f32 %v2474, 1.442695
  %v2484 = vpow.pop %v2483
  %v2485 = vmul.f32 %v2475, 1.442695
  %v2486 = vpow.pop %v2485
  %v2487 = vmul.f32 %v2476, 1.442695
  %v2488 = vpow.pop %v2487
  %v2489 = vmul.f32 %v2477, 1.442695
  %v2490 = vpow.pop %v2489
  %v2491 = vmul.f32 %v2478, 1.442695
  %v2492 = vpow.pop %v2491
  %v2493 = vmul.f32 %v2479, 1.442695
  %v2494 = vpow.pop %v2493
  %v2495 = vmul.f32 %v2480, 1.442695
  %v2496 = vpow.pop %v2495
  %v2497 = vadd.f32 %v2482, 1.0
  %v2498 = vadd.f32 %v2484, 1.0
  %v2499 = vadd.f32 %v2486, 1.0
  %v2500 = vadd.f32 %v2488, 1.0
  %v2501 = vadd.f32 %v2490, 1.0
  %v2502 = vadd.f32 %v2492, 1.0
  %v2503 = vadd.f32 %v2494, 1.0
  %v2504 = vadd.f32 %v2496, 1.0
  %v2505 = vrcp.pop %v2497
  %v2506 = vmul.f32 %v2497, %v2505
  %v2507 = vsub.f32 1.0, %v2506
  %v2508 = vmul.f32 %v2505, %v2507
  %v2509 = vadd.f32 %v2505, %v2508
  %vm2510 = vweird.f32 %v2497
  %vm2511 = vweird.f32 %v2505
  %vm2512 = vmor %vm2510, %vm2511
  %v2513 = vsel %vm2512, %v2505, %v2509
  %v2514 = vand.u32 2147483647, %v2497
  %vm2515 = vcmp.eq.f32.partialorder %v2514, 8.507059e+37
  %v2516 = vand.u32 %v2497, 2147483648
  %v2517 = vor.u32 1.1754944e-38, %v2516
  %v2518 = vsel %vm2515, %v2517, %v2513
  %v2519 = vmul.f32 1.0, %v2518
  %v2520 = vrcp.pop %v2498
  %v2521 = vmul.f32 %v2498, %v2520
  %v2522 = vsub.f32 1.0, %v2521
  %v2523 = vmul.f32 %v2520, %v2522
  %v2524 = vadd.f32 %v2520, %v2523
  %vm2525 = vweird.f32 %v2498
  %vm2526 = vweird.f32 %v2520
  %vm2527 = vmor %vm2525, %vm2526
  %v2528 = vsel %vm2527, %v2520, %v2524
  %v2529 = vand.u32 2147483647, %v2498
  %vm2530 = vcmp.eq.f32.partialorder %v2529, 8.507059e+37
  %v2531 = vand.u32 %v2498, 2147483648
  %v2532 = vor.u32 1.1754944e-38, %v2531
  %v2533 = vsel %vm2530, %v2532, %v2528
  %v2534 = vmul.f32 1.0, %v2533
  %v2535 = vrcp.pop %v2499
  %v2536 = vmul.f32 %v2499, %v2535
  %v2537 = vsub.f32 1.0, %v2536
  %v2538 = vmul.f32 %v2535, %v2537
  %v2539 = vadd.f32 %v2535, %v2538
  %vm2540 = vweird.f32 %v2499
  %vm2541 = vweird.f32 %v2535
  %vm2542 = vmor %vm2540, %vm2541
  %v2543 = vsel %vm2542, %v2535, %v2539
  %v2544 = vand.u32 2147483647, %v2499
  %vm2545 = vcmp.eq.f32.partialorder %v2544, 8.507059e+37
  %v2546 = vand.u32 %v2499, 2147483648
  %v2547 = vor.u32 1.1754944e-38, %v2546
  %v2548 = vsel %vm2545, %v2547, %v2543
  %v2549 = vmul.f32 1.0, %v2548
  %v2550 = vrcp.pop %v2500
  %v2551 = vmul.f32 %v2500, %v2550
  %v2552 = vsub.f32 1.0, %v2551
  %v2553 = vmul.f32 %v2550, %v2552
  %v2554 = vadd.f32 %v2550, %v2553
  %vm2555 = vweird.f32 %v2500
  %vm2556 = vweird.f32 %v2550
  %vm2557 = vmor %vm2555, %vm2556
  %v2558 = vsel %vm2557, %v2550, %v2554
  %v2559 = vand.u32 2147483647, %v2500
  %vm2560 = vcmp.eq.f32.partialorder %v2559, 8.507059e+37
  %v2561 = vand.u32 %v2500, 2147483648
  %v2562 = vor.u32 1.1754944e-38, %v2561
  %v2563 = vsel %vm2560, %v2562, %v2558
  %v2564 = vmul.f32 1.0, %v2563
  %v2565 = vrcp.pop %v2501
  %v2566 = vmul.f32 %v2501, %v2565
  %v2567 = vsub.f32 1.0, %v2566
  %v2568 = vmul.f32 %v2565, %v2567
  %v2569 = vadd.f32 %v2565, %v2568
  %vm2570 = vweird.f32 %v2501
  %vm2571 = vweird.f32 %v2565
  %vm2572 = vmor %vm2570, %vm2571
  %v2573 = vsel %vm2572, %v2565, %v2569
  %v2574 = vand.u32 2147483647, %v2501
  %vm2575 = vcmp.eq.f32.partialorder %v2574, 8.507059e+37
  %v2576 = vand.u32 %v2501, 2147483648
  %v2577 = vor.u32 1.1754944e-38, %v2576
  %v2578 = vsel %vm2575, %v2577, %v2573
  %v2579 = vmul.f32 1.0, %v2578
  %v2580 = vrcp.pop %v2502
  %v2581 = vmul.f32 %v2502, %v2580
  %v2582 = vsub.f32 1.0, %v2581
  %v2583 = vmul.f32 %v2580, %v2582
  %v2584 = vadd.f32 %v2580, %v2583
  %vm2585 = vweird.f32 %v2502
  %vm2586 = vweird.f32 %v2580
  %vm2587 = vmor %vm2585, %vm2586
  %v2588 = vsel %vm2587, %v2580, %v2584
  %v2589 = vand.u32 2147483647, %v2502
  %vm2590 = vcmp.eq.f32.partialorder %v2589, 8.507059e+37
  %v2591 = vand.u32 %v2502, 2147483648
  %v2592 = vor.u32 1.1754944e-38, %v2591
  %v2593 = vsel %vm2590, %v2592, %v2588
  %v2594 = vmul.f32 1.0, %v2593
  %v2595 = vrcp.pop %v2503
  %v2596 = vmul.f32 %v2503, %v2595
  %v2597 = vsub.f32 1.0, %v2596
  %v2598 = vmul.f32 %v2595, %v2597
  %v2599 = vadd.f32 %v2595, %v2598
  %vm2600 = vweird.f32 %v2503
  %vm2601 = vweird.f32 %v2595
  %vm2602 = vmor %vm2600, %vm2601
  %v2603 = vsel %vm2602, %v2595, %v2599
  %v2604 = vand.u32 2147483647, %v2503
  %vm2605 = vcmp.eq.f32.partialorder %v2604, 8.507059e+37
  %v2606 = vand.u32 %v2503, 2147483648
  %v2607 = vor.u32 1.1754944e-38, %v2606
  %v2608 = vsel %vm2605, %v2607, %v2603
  %v2609 = vmul.f32 1.0, %v2608
  %v2610 = vrcp.pop %v2504
  %v2611 = vmul.f32 %v2504, %v2610
  %v2612 = vsub.f32 1.0, %v2611
  %v2613 = vmul.f32 %v2610, %v2612
  %v2614 = vadd.f32 %v2610, %v2613
  %vm2615 = vweird.f32 %v2504
  %vm2616 = vweird.f32 %v2610
  %vm2617 = vmor %vm2615, %vm2616
  %v2618 = vsel %vm2617, %v2610, %v2614
  %v2619 = vand.u32 2147483647, %v2504
  %vm2620 = vcmp.eq.f32.partialorder %v2619, 8.507059e+37
  %v2621 = vand.u32 %v2504, 2147483648
  %v2622 = vor.u32 1.1754944e-38, %v2621
  %v2623 = vsel %vm2620, %v2622, %v2618
  %v2624 = vmul.f32 1.0, %v2623
  %v2633 = vrot.slane %v2350, 1
  %v2634 = vrot.slane %v2352, 1
  %v2635 = vrot.slane %v2354, 1
  %v2636 = vrot.slane %v2356, 1
  %v2637 = vrot.slane %v2358, 1
  %v2638 = vrot.slane %v2360, 1
  %v2639 = vrot.slane %v2362, 1
  %v2640 = vrot.slane %v2364, 1
  %v2650 = vrot.slane %v2428, 1
  %v2651 = vrot.slane %v2428, 2
  %v2652 = vrot.slane %v2428, 3
  %v2653 = vrot.slane %v2428, 4
  %v2654 = vrot.slane %v2428, 5
  %v2655 = vrot.slane %v2428, 6
  %v2656 = vrot.slane %v2428, 7
  %v2664 = vadd.f32 %v2633, %v2428
  %v2665 = vadd.f32 %v2634, %v2650
  %v2666 = vadd.f32 %v2635, %v2651
  %v2667 = vadd.f32 %v2636, %v2652
  %v2668 = vadd.f32 %v2637, %v2653
  %v2669 = vadd.f32 %v2638, %v2654
  %v2670 = vadd.f32 %v2639, %v2655
  %v2671 = vadd.f32 %v2640, %v2656
  %v2672 = vxor.u32 %v2664, 2147483648
  %v2673 = vxor.u32 %v2665, 2147483648
  %v2674 = vxor.u32 %v2666, 2147483648
  %v2675 = vxor.u32 %v2667, 2147483648
  %v2676 = vxor.u32 %v2668, 2147483648
  %v2677 = vxor.u32 %v2669, 2147483648
  %v2678 = vxor.u32 %v2670, 2147483648
  %v2679 = vxor.u32 %v2671, 2147483648
  %v2680 = vmul.f32 %v2672, 1.442695
  %v2681 = vpow.pop %v2680
  %v2682 = vmul.f32 %v2673, 1.442695
  %v2683 = vpow.pop %v2682
  %v2684 = vmul.f32 %v2674, 1.442695
  %v2685 = vpow.pop %v2684
  %v2686 = vmul.f32 %v2675, 1.442695
  %v2687 = vpow.pop %v2686
  %v2688 = vmul.f32 %v2676, 1.442695
  %v2689 = vpow.pop %v2688
  %v2690 = vmul.f32 %v2677, 1.442695
  %v2691 = vpow.pop %v2690
  %v2692 = vmul.f32 %v2678, 1.442695
  %v2693 = vpow.pop %v2692
  %v2694 = vmul.f32 %v2679, 1.442695
  %v2695 = vpow.pop %v2694
  %v2696 = vadd.f32 %v2681, 1.0
  %v2697 = vadd.f32 %v2683, 1.0
  %v2698 = vadd.f32 %v2685, 1.0
  %v2699 = vadd.f32 %v2687, 1.0
  %v2700 = vadd.f32 %v2689, 1.0
  %v2701 = vadd.f32 %v2691, 1.0
  %v2702 = vadd.f32 %v2693, 1.0
  %v2703 = vadd.f32 %v2695, 1.0
  %v2704 = vrcp.pop %v2696
  %v2705 = vmul.f32 %v2696, %v2704
  %v2706 = vsub.f32 1.0, %v2705
  %v2707 = vmul.f32 %v2704, %v2706
  %v2708 = vadd.f32 %v2704, %v2707
  %vm2709 = vweird.f32 %v2696
  %vm2710 = vweird.f32 %v2704
  %vm2711 = vmor %vm2709, %vm2710
  %v2712 = vsel %vm2711, %v2704, %v2708
  %v2713 = vand.u32 2147483647, %v2696
  %vm2714 = vcmp.eq.f32.partialorder %v2713, 8.507059e+37
  %v2715 = vand.u32 %v2696, 2147483648
  %v2716 = vor.u32 1.1754944e-38, %v2715
  %v2717 = vsel %vm2714, %v2716, %v2712
  %v2718 = vmul.f32 1.0, %v2717
  %v2719 = vrcp.pop %v2697
  %v2720 = vmul.f32 %v2697, %v2719
  %v2721 = vsub.f32 1.0, %v2720
  %v2722 = vmul.f32 %v2719, %v2721
  %v2723 = vadd.f32 %v2719, %v2722
  %vm2724 = vweird.f32 %v2697
  %vm2725 = vweird.f32 %v2719
  %vm2726 = vmor %vm2724, %vm2725
  %v2727 = vsel %vm2726, %v2719, %v2723
  %v2728 = vand.u32 2147483647, %v2697
  %vm2729 = vcmp.eq.f32.partialorder %v2728, 8.507059e+37
  %v2730 = vand.u32 %v2697, 2147483648
  %v2731 = vor.u32 1.1754944e-38, %v2730
  %v2732 = vsel %vm2729, %v2731, %v2727
  %v2733 = vmul.f32 1.0, %v2732
  %v2734 = vrcp.pop %v2698
  %v2735 = vmul.f32 %v2698, %v2734
  %v2736 = vsub.f32 1.0, %v2735
  %v2737 = vmul.f32 %v2734, %v2736
  %v2738 = vadd.f32 %v2734, %v2737
  %vm2739 = vweird.f32 %v2698
  %vm2740 = vweird.f32 %v2734
  %vm2741 = vmor %vm2739, %vm2740
  %v2742 = vsel %vm2741, %v2734, %v2738
  %v2743 = vand.u32 2147483647, %v2698
  %vm2744 = vcmp.eq.f32.partialorder %v2743, 8.507059e+37
  %v2745 = vand.u32 %v2698, 2147483648
  %v2746 = vor.u32 1.1754944e-38, %v2745
  %v2747 = vsel %vm2744, %v2746, %v2742
  %v2748 = vmul.f32 1.0, %v2747
  %v2749 = vrcp.pop %v2699
  %v2750 = vmul.f32 %v2699, %v2749
  %v2751 = vsub.f32 1.0, %v2750
  %v2752 = vmul.f32 %v2749, %v2751
  %v2753 = vadd.f32 %v2749, %v2752
  %vm2754 = vweird.f32 %v2699
  %vm2755 = vweird.f32 %v2749
  %vm2756 = vmor %vm2754, %vm2755
  %v2757 = vsel %vm2756, %v2749, %v2753
  %v2758 = vand.u32 2147483647, %v2699
  %vm2759 = vcmp.eq.f32.partialorder %v2758, 8.507059e+37
  %v2760 = vand.u32 %v2699, 2147483648
  %v2761 = vor.u32 1.1754944e-38, %v2760
  %v2762 = vsel %vm2759, %v2761, %v2757
  %v2763 = vmul.f32 1.0, %v2762
  %v2764 = vrcp.pop %v2700
  %v2765 = vmul.f32 %v2700, %v2764
  %v2766 = vsub.f32 1.0, %v2765
  %v2767 = vmul.f32 %v2764, %v2766
  %v2768 = vadd.f32 %v2764, %v2767
  %vm2769 = vweird.f32 %v2700
  %vm2770 = vweird.f32 %v2764
  %vm2771 = vmor %vm2769, %vm2770
  %v2772 = vsel %vm2771, %v2764, %v2768
  %v2773 = vand.u32 2147483647, %v2700
  %vm2774 = vcmp.eq.f32.partialorder %v2773, 8.507059e+37
  %v2775 = vand.u32 %v2700, 2147483648
  %v2776 = vor.u32 1.1754944e-38, %v2775
  %v2777 = vsel %vm2774, %v2776, %v2772
  %v2778 = vmul.f32 1.0, %v2777
  %v2779 = vrcp.pop %v2701
  %v2780 = vmul.f32 %v2701, %v2779
  %v2781 = vsub.f32 1.0, %v2780
  %v2782 = vmul.f32 %v2779, %v2781
  %v2783 = vadd.f32 %v2779, %v2782
  %vm2784 = vweird.f32 %v2701
  %vm2785 = vweird.f32 %v2779
  %vm2786 = vmor %vm2784, %vm2785
  %v2787 = vsel %vm2786, %v2779, %v2783
  %v2788 = vand.u32 2147483647, %v2701
  %vm2789 = vcmp.eq.f32.partialorder %v2788, 8.507059e+37
  %v2790 = vand.u32 %v2701, 2147483648
  %v2791 = vor.u32 1.1754944e-38, %v2790
  %v2792 = vsel %vm2789, %v2791, %v2787
  %v2793 = vmul.f32 1.0, %v2792
  %v2794 = vrcp.pop %v2702
  %v2795 = vmul.f32 %v2702, %v2794
  %v2796 = vsub.f32 1.0, %v2795
  %v2797 = vmul.f32 %v2794, %v2796
  %v2798 = vadd.f32 %v2794, %v2797
  %vm2799 = vweird.f32 %v2702
  %vm2800 = vweird.f32 %v2794
  %vm2801 = vmor %vm2799, %vm2800
  %v2802 = vsel %vm2801, %v2794, %v2798
  %v2803 = vand.u32 2147483647, %v2702
  %vm2804 = vcmp.eq.f32.partialorder %v2803, 8.507059e+37
  %v2805 = vand.u32 %v2702, 2147483648
  %v2806 = vor.u32 1.1754944e-38, %v2805
  %v2807 = vsel %vm2804, %v2806, %v2802
  %v2808 = vmul.f32 1.0, %v2807
  %v2809 = vrcp.pop %v2703
  %v2810 = vmul.f32 %v2703, %v2809
  %v2811 = vsub.f32 1.0, %v2810
  %v2812 = vmul.f32 %v2809, %v2811
  %v2813 = vadd.f32 %v2809, %v2812
  %vm2814 = vweird.f32 %v2703
  %vm2815 = vweird.f32 %v2809
  %vm2816 = vmor %vm2814, %vm2815
  %v2817 = vsel %vm2816, %v2809, %v2813
  %v2818 = vand.u32 2147483647, %v2703
  %vm2819 = vcmp.eq.f32.partialorder %v2818, 8.507059e+37
  %v2820 = vand.u32 %v2703, 2147483648
  %v2821 = vor.u32 1.1754944e-38, %v2820
  %v2822 = vsel %vm2819, %v2821, %v2817
  %v2823 = vmul.f32 1.0, %v2822
  %v2825 = vrot.slane %v2448, 1
  %v2826 = vrot.slane %v2448, 2
  %v2827 = vrot.slane %v2448, 3
  %v2828 = vrot.slane %v2448, 4
  %v2829 = vrot.slane %v2448, 5
  %v2830 = vrot.slane %v2448, 6
  %v2831 = vrot.slane %v2448, 7
  %v2839 = vmul.f32 %v2519, %v2448
  %v2840 = vmul.f32 %v2534, %v2825
  %v2841 = vmul.f32 %v2549, %v2826
  %v2842 = vmul.f32 %v2564, %v2827
  %v2843 = vmul.f32 %v2579, %v2828
  %v2844 = vmul.f32 %v2594, %v2829
  %v2845 = vmul.f32 %v2609, %v2830
  %v2846 = vmul.f32 %v2624, %v2831
  %v2847 = vrot.slane %v2350, 2
  %v2848 = vrot.slane %v2352, 2
  %v2849 = vrot.slane %v2354, 2
  %v2850 = vrot.slane %v2356, 2
  %v2851 = vrot.slane %v2358, 2
  %v2852 = vrot.slane %v2360, 2
  %v2853 = vrot.slane %v2362, 2
  %v2854 = vrot.slane %v2364, 2
  %v2863 = vadd.f32 %v2847, %v2839
  %v2864 = vadd.f32 %v2848, %v2840
  %v2865 = vadd.f32 %v2849, %v2841
  %v2866 = vadd.f32 %v2850, %v2842
  %v2867 = vadd.f32 %v2851, %v2843
  %v2868 = vadd.f32 %v2852, %v2844
  %v2869 = vadd.f32 %v2853, %v2845
  %v2870 = vadd.f32 %v2854, %v2846
  %v2871 = vtanh.pop %v2863
  %v2872 = vtanh.pop %v2864
  %v2873 = vtanh.pop %v2865
  %v2874 = vtanh.pop %v2866
  %v2875 = vtanh.pop %v2867
  %v2876 = vtanh.pop %v2868
  %v2877 = vtanh.pop %v2869
  %v2878 = vtanh.pop %v2870
  %v2879 = vsub.f32 1.0, %v2718
  %v2880 = vsub.f32 1.0, %v2733
  %v2881 = vsub.f32 1.0, %v2748
  %v2882 = vsub.f32 1.0, %v2763
  %v2883 = vsub.f32 1.0, %v2778
  %v2884 = vsub.f32 1.0, %v2793
  %v2885 = vsub.f32 1.0, %v2808
  %v2886 = vsub.f32 1.0, %v2823
  %v2887 = vmul.f32 %v2879, %v2871
  %v2888 = vmul.f32 %v2880, %v2872
  %v2889 = vmul.f32 %v2881, %v2873
  %v2890 = vmul.f32 %v2882, %v2874
  %v2891 = vmul.f32 %v2883, %v2875
  %v2892 = vmul.f32 %v2884, %v2876
  %v2893 = vmul.f32 %v2885, %v2877
  %v2894 = vmul.f32 %v2886, %v2878
  %v2895 = vmul.f32 %v2718, %v2333
  %v2896 = vmul.f32 %v2733, %v2334
  %v2897 = vmul.f32 %v2748, %v2335
  %v2898 = vmul.f32 %v2763, %v2336
  %v2899 = vmul.f32 %v2778, %v2337
  %v2900 = vmul.f32 %v2793, %v2338
  %v2901 = vmul.f32 %v2808, %v2339
  %v2902 = vmul.f32 %v2823, %v2340
  %v2903 = vadd.f32 %v2887, %v2895
  %v2904 = vadd.f32 %v2888, %v2896
  %v2905 = vadd.f32 %v2889, %v2897
  %v2906 = vadd.f32 %v2890, %v2898
  %v2907 = vadd.f32 %v2891, %v2899
  %v2908 = vadd.f32 %v2892, %v2900
  %v2909 = vadd.f32 %v2893, %v2901
  %v2910 = vadd.f32 %v2894, %v2902
  %2911 = vst [vmem:[%s4 + $0x4] sm:$0x1] %v2903
  %2912 = vst [vmem:[%s4 + $0xc] sm:$0x1] %v2904
  %2913 = vst [vmem:[%s4 + $0x14] sm:$0x1] %v2905
  %2914 = vst [vmem:[%s4 + $0x1c] sm:$0x1] %v2906
  %2915 = vst [vmem:[%s4 + $0x24] sm:$0x1] %v2907
  %2916 = vst [vmem:[%s4 + $0x2c] sm:$0x1] %v2908
  %2917 = vst [vmem:[%s4 + $0x34] sm:$0x1] %v2909
  %2918 = vst [vmem:[%s4 + $0x3c] sm:$0x1] %v2910
  %s2919 = scalar_lea.vmem %s1, 5
  %v2920 = vld [vmem:[%s2919] ss:$8 sm:$0x7]
  %s2921 = scalar_lea.vmem %s1, 29
  %v2922 = vld [vmem:[%s2921] ss:$8 sm:$0x7]
  %s2923 = scalar_lea.vmem %s1, 53
  %v2924 = vld [vmem:[%s2923] ss:$8 sm:$0x7]
  %s2925 = scalar_lea.vmem %s1, 77
  %v2926 = vld [vmem:[%s2925] ss:$8 sm:$0x7]
  %s2927 = scalar_lea.vmem %s1, 101
  %v2928 = vld [vmem:[%s2927] ss:$8 sm:$0x7]
  %s2929 = scalar_lea.vmem %s1, 125
  %v2930 = vld [vmem:[%s2929] ss:$8 sm:$0x7]
  %s2931 = scalar_lea.vmem %s1, 149
  %v2932 = vld [vmem:[%s2931] ss:$8 sm:$0x7]
  %s2933 = scalar_lea.vmem %s1, 173
  %v2934 = vld [vmem:[%s2933] ss:$8 sm:$0x7]
  %2943 = vst [vmem:[#allocation1] ss:$9 sm:$0xff] %v2903
  %s2944 = scalar_lea.vmem [#allocation1], 1
  %2945 = vst [vmem:[%s2944] ss:$9 sm:$0xff] %v2904
  %s2946 = scalar_lea.vmem [#allocation1], 2
  %2947 = vst [vmem:[%s2946] ss:$9 sm:$0xff] %v2905
  %s2948 = scalar_lea.vmem [#allocation1], 3
  %2949 = vst [vmem:[%s2948] ss:$9 sm:$0xff] %v2906
  %s2950 = scalar_lea.vmem [#allocation1], 4
  %2951 = vst [vmem:[%s2950] ss:$9 sm:$0xff] %v2907
  %s2952 = scalar_lea.vmem [#allocation1], 5
  %2953 = vst [vmem:[%s2952] ss:$9 sm:$0xff] %v2908
  %s2954 = scalar_lea.vmem [#allocation1], 6
  %2955 = vst [vmem:[%s2954] ss:$9 sm:$0xff] %v2909
  %s2956 = scalar_lea.vmem [#allocation1], 7
  %2957 = vst [vmem:[%s2956] ss:$9 sm:$0xff] %v2910
  %v2958 = vld [vmem:[#allocation1] sm:$0xff]
  %2960 = vmatpush.msra.mxu0 %v69
  %2961 = vmatpush.msra.mxu0 %v66
  %2962 = vmatpush.msra.mxu0 %v63
  %2963 = vmatpush.msra.mxu0 %v60
  %2964 = vmatpush.msra.mxu0 %v57
  %2965 = vmatpush.msra.mxu0 %v54
  %2966 = vmatpush.msra.mxu0 %v51
  %2967 = vmatpush.msra.mxu0 %v48
  %2968 = vmatpush.msra.mxu0 %v45
  %2969 = vmatpush.msra.mxu0 %v42
  %2970 = vmatpush.msra.mxu0 %v39
  %2971 = vmatpush.msra.mxu0 %v36
  %2972 = vmatpush.msra.mxu0 %v33
  %2973 = vmatpush.msra.mxu0 %v30
  %2974 = vmatpush.msra.mxu0 %v27
  %2975 = vmatpush.msra.mxu0 %v24
  %2976 = vmatmul.f32.gmra.mxu0 %v2958
  %v2977 = vpop.f32.mrf.mxu0
  %v2978 = vadd.f32 %v74, %v2977
  %2979 = vdwg.mxu0
  %2980 = vmatpush.msra.mxu0 %v70
  %2981 = vmatpush.msra.mxu0 %v67
  %2982 = vmatpush.msra.mxu0 %v64
  %2983 = vmatpush.msra.mxu0 %v61
  %2984 = vmatpush.msra.mxu0 %v58
  %2985 = vmatpush.msra.mxu0 %v55
  %2986 = vmatpush.msra.mxu0 %v52
  %2987 = vmatpush.msra.mxu0 %v49
  %2988 = vmatpush.msra.mxu0 %v46
  %2989 = vmatpush.msra.mxu0 %v43
  %2990 = vmatpush.msra.mxu0 %v40
  %2991 = vmatpush.msra.mxu0 %v37
  %2992 = vmatpush.msra.mxu0 %v34
  %2993 = vmatpush.msra.mxu0 %v31
  %2994 = vmatpush.msra.mxu0 %v28
  %2995 = vmatpush.msra.mxu0 %v25
  %2996 = vmatmul.f32.gmra.mxu0 %v2958
  %v2997 = vpop.f32.mrf.mxu0
  %v2998 = vadd.f32 %v75, %v2997
  %2999 = vdwg.mxu0
  %3000 = vmatpush.msra.mxu0 %v71
  %3001 = vmatpush.msra.mxu0 %v68
  %3002 = vmatpush.msra.mxu0 %v65
  %3003 = vmatpush.msra.mxu0 %v62
  %3004 = vmatpush.msra.mxu0 %v59
  %3005 = vmatpush.msra.mxu0 %v56
  %3006 = vmatpush.msra.mxu0 %v53
  %3007 = vmatpush.msra.mxu0 %v50
  %3008 = vmatpush.msra.mxu0 %v47
  %3009 = vmatpush.msra.mxu0 %v44
  %3010 = vmatpush.msra.mxu0 %v41
  %3011 = vmatpush.msra.mxu0 %v38
  %3012 = vmatpush.msra.mxu0 %v35
  %3013 = vmatpush.msra.mxu0 %v32
  %3014 = vmatpush.msra.mxu0 %v29
  %3015 = vmatpush.msra.mxu0 %v26
  %3016 = vmatmul.f32.gmra.mxu0 %v2958
  %v3017 = vpop.f32.mrf.mxu0
  %v3018 = vadd.f32 %v76, %v3017
  %3019 = vdwg.mxu0
  %v3021 = vrot.slane %v2978, 1
  %v3022 = vrot.slane %v2978, 2
  %v3023 = vrot.slane %v2978, 3
  %v3024 = vrot.slane %v2978, 4
  %v3025 = vrot.slane %v2978, 5
  %v3026 = vrot.slane %v2978, 6
  %v3027 = vrot.slane %v2978, 7
  %v3035 = vadd.f32 %v2920, %v2978
  %v3036 = vadd.f32 %v2922, %v3021
  %v3037 = vadd.f32 %v2924, %v3022
  %v3038 = vadd.f32 %v2926, %v3023
  %v3039 = vadd.f32 %v2928, %v3024
  %v3040 = vadd.f32 %v2930, %v3025
  %v3041 = vadd.f32 %v2932, %v3026
  %v3042 = vadd.f32 %v2934, %v3027
  %v3043 = vxor.u32 %v3035, 2147483648
  %v3044 = vxor.u32 %v3036, 2147483648
  %v3045 = vxor.u32 %v3037, 2147483648
  %v3046 = vxor.u32 %v3038, 2147483648
  %v3047 = vxor.u32 %v3039, 2147483648
  %v3048 = vxor.u32 %v3040, 2147483648
  %v3049 = vxor.u32 %v3041, 2147483648
  %v3050 = vxor.u32 %v3042, 2147483648
  %v3051 = vmul.f32 %v3043, 1.442695
  %v3052 = vpow.pop %v3051
  %v3053 = vmul.f32 %v3044, 1.442695
  %v3054 = vpow.pop %v3053
  %v3055 = vmul.f32 %v3045, 1.442695
  %v3056 = vpow.pop %v3055
  %v3057 = vmul.f32 %v3046, 1.442695
  %v3058 = vpow.pop %v3057
  %v3059 = vmul.f32 %v3047, 1.442695
  %v3060 = vpow.pop %v3059
  %v3061 = vmul.f32 %v3048, 1.442695
  %v3062 = vpow.pop %v3061
  %v3063 = vmul.f32 %v3049, 1.442695
  %v3064 = vpow.pop %v3063
  %v3065 = vmul.f32 %v3050, 1.442695
  %v3066 = vpow.pop %v3065
  %v3067 = vadd.f32 %v3052, 1.0
  %v3068 = vadd.f32 %v3054, 1.0
  %v3069 = vadd.f32 %v3056, 1.0
  %v3070 = vadd.f32 %v3058, 1.0
  %v3071 = vadd.f32 %v3060, 1.0
  %v3072 = vadd.f32 %v3062, 1.0
  %v3073 = vadd.f32 %v3064, 1.0
  %v3074 = vadd.f32 %v3066, 1.0
  %v3075 = vrcp.pop %v3067
  %v3076 = vmul.f32 %v3067, %v3075
  %v3077 = vsub.f32 1.0, %v3076
  %v3078 = vmul.f32 %v3075, %v3077
  %v3079 = vadd.f32 %v3075, %v3078
  %vm3080 = vweird.f32 %v3067
  %vm3081 = vweird.f32 %v3075
  %vm3082 = vmor %vm3080, %vm3081
  %v3083 = vsel %vm3082, %v3075, %v3079
  %v3084 = vand.u32 2147483647, %v3067
  %vm3085 = vcmp.eq.f32.partialorder %v3084, 8.507059e+37
  %v3086 = vand.u32 %v3067, 2147483648
  %v3087 = vor.u32 1.1754944e-38, %v3086
  %v3088 = vsel %vm3085, %v3087, %v3083
  %v3089 = vmul.f32 1.0, %v3088
  %v3090 = vrcp.pop %v3068
  %v3091 = vmul.f32 %v3068, %v3090
  %v3092 = vsub.f32 1.0, %v3091
  %v3093 = vmul.f32 %v3090, %v3092
  %v3094 = vadd.f32 %v3090, %v3093
  %vm3095 = vweird.f32 %v3068
  %vm3096 = vweird.f32 %v3090
  %vm3097 = vmor %vm3095, %vm3096
  %v3098 = vsel %vm3097, %v3090, %v3094
  %v3099 = vand.u32 2147483647, %v3068
  %vm3100 = vcmp.eq.f32.partialorder %v3099, 8.507059e+37
  %v3101 = vand.u32 %v3068, 2147483648
  %v3102 = vor.u32 1.1754944e-38, %v3101
  %v3103 = vsel %vm3100, %v3102, %v3098
  %v3104 = vmul.f32 1.0, %v3103
  %v3105 = vrcp.pop %v3069
  %v3106 = vmul.f32 %v3069, %v3105
  %v3107 = vsub.f32 1.0, %v3106
  %v3108 = vmul.f32 %v3105, %v3107
  %v3109 = vadd.f32 %v3105, %v3108
  %vm3110 = vweird.f32 %v3069
  %vm3111 = vweird.f32 %v3105
  %vm3112 = vmor %vm3110, %vm3111
  %v3113 = vsel %vm3112, %v3105, %v3109
  %v3114 = vand.u32 2147483647, %v3069
  %vm3115 = vcmp.eq.f32.partialorder %v3114, 8.507059e+37
  %v3116 = vand.u32 %v3069, 2147483648
  %v3117 = vor.u32 1.1754944e-38, %v3116
  %v3118 = vsel %vm3115, %v3117, %v3113
  %v3119 = vmul.f32 1.0, %v3118
  %v3120 = vrcp.pop %v3070
  %v3121 = vmul.f32 %v3070, %v3120
  %v3122 = vsub.f32 1.0, %v3121
  %v3123 = vmul.f32 %v3120, %v3122
  %v3124 = vadd.f32 %v3120, %v3123
  %vm3125 = vweird.f32 %v3070
  %vm3126 = vweird.f32 %v3120
  %vm3127 = vmor %vm3125, %vm3126
  %v3128 = vsel %vm3127, %v3120, %v3124
  %v3129 = vand.u32 2147483647, %v3070
  %vm3130 = vcmp.eq.f32.partialorder %v3129, 8.507059e+37
  %v3131 = vand.u32 %v3070, 2147483648
  %v3132 = vor.u32 1.1754944e-38, %v3131
  %v3133 = vsel %vm3130, %v3132, %v3128
  %v3134 = vmul.f32 1.0, %v3133
  %v3135 = vrcp.pop %v3071
  %v3136 = vmul.f32 %v3071, %v3135
  %v3137 = vsub.f32 1.0, %v3136
  %v3138 = vmul.f32 %v3135, %v3137
  %v3139 = vadd.f32 %v3135, %v3138
  %vm3140 = vweird.f32 %v3071
  %vm3141 = vweird.f32 %v3135
  %vm3142 = vmor %vm3140, %vm3141
  %v3143 = vsel %vm3142, %v3135, %v3139
  %v3144 = vand.u32 2147483647, %v3071
  %vm3145 = vcmp.eq.f32.partialorder %v3144, 8.507059e+37
  %v3146 = vand.u32 %v3071, 2147483648
  %v3147 = vor.u32 1.1754944e-38, %v3146
  %v3148 = vsel %vm3145, %v3147, %v3143
  %v3149 = vmul.f32 1.0, %v3148
  %v3150 = vrcp.pop %v3072
  %v3151 = vmul.f32 %v3072, %v3150
  %v3152 = vsub.f32 1.0, %v3151
  %v3153 = vmul.f32 %v3150, %v3152
  %v3154 = vadd.f32 %v3150, %v3153
  %vm3155 = vweird.f32 %v3072
  %vm3156 = vweird.f32 %v3150
  %vm3157 = vmor %vm3155, %vm3156
  %v3158 = vsel %vm3157, %v3150, %v3154
  %v3159 = vand.u32 2147483647, %v3072
  %vm3160 = vcmp.eq.f32.partialorder %v3159, 8.507059e+37
  %v3161 = vand.u32 %v3072, 2147483648
  %v3162 = vor.u32 1.1754944e-38, %v3161
  %v3163 = vsel %vm3160, %v3162, %v3158
  %v3164 = vmul.f32 1.0, %v3163
  %v3165 = vrcp.pop %v3073
  %v3166 = vmul.f32 %v3073, %v3165
  %v3167 = vsub.f32 1.0, %v3166
  %v3168 = vmul.f32 %v3165, %v3167
  %v3169 = vadd.f32 %v3165, %v3168
  %vm3170 = vweird.f32 %v3073
  %vm3171 = vweird.f32 %v3165
  %vm3172 = vmor %vm3170, %vm3171
  %v3173 = vsel %vm3172, %v3165, %v3169
  %v3174 = vand.u32 2147483647, %v3073
  %vm3175 = vcmp.eq.f32.partialorder %v3174, 8.507059e+37
  %v3176 = vand.u32 %v3073, 2147483648
  %v3177 = vor.u32 1.1754944e-38, %v3176
  %v3178 = vsel %vm3175, %v3177, %v3173
  %v3179 = vmul.f32 1.0, %v3178
  %v3180 = vrcp.pop %v3074
  %v3181 = vmul.f32 %v3074, %v3180
  %v3182 = vsub.f32 1.0, %v3181
  %v3183 = vmul.f32 %v3180, %v3182
  %v3184 = vadd.f32 %v3180, %v3183
  %vm3185 = vweird.f32 %v3074
  %vm3186 = vweird.f32 %v3180
  %vm3187 = vmor %vm3185, %vm3186
  %v3188 = vsel %vm3187, %v3180, %v3184
  %v3189 = vand.u32 2147483647, %v3074
  %vm3190 = vcmp.eq.f32.partialorder %v3189, 8.507059e+37
  %v3191 = vand.u32 %v3074, 2147483648
  %v3192 = vor.u32 1.1754944e-38, %v3191
  %v3193 = vsel %vm3190, %v3192, %v3188
  %v3194 = vmul.f32 1.0, %v3193
  %v3203 = vrot.slane %v2920, 1
  %v3204 = vrot.slane %v2922, 1
  %v3205 = vrot.slane %v2924, 1
  %v3206 = vrot.slane %v2926, 1
  %v3207 = vrot.slane %v2928, 1
  %v3208 = vrot.slane %v2930, 1
  %v3209 = vrot.slane %v2932, 1
  %v3210 = vrot.slane %v2934, 1
  %v3220 = vrot.slane %v2998, 1
  %v3221 = vrot.slane %v2998, 2
  %v3222 = vrot.slane %v2998, 3
  %v3223 = vrot.slane %v2998, 4
  %v3224 = vrot.slane %v2998, 5
  %v3225 = vrot.slane %v2998, 6
  %v3226 = vrot.slane %v2998, 7
  %v3234 = vadd.f32 %v3203, %v2998
  %v3235 = vadd.f32 %v3204, %v3220
  %v3236 = vadd.f32 %v3205, %v3221
  %v3237 = vadd.f32 %v3206, %v3222
  %v3238 = vadd.f32 %v3207, %v3223
  %v3239 = vadd.f32 %v3208, %v3224
  %v3240 = vadd.f32 %v3209, %v3225
  %v3241 = vadd.f32 %v3210, %v3226
  %v3242 = vxor.u32 %v3234, 2147483648
  %v3243 = vxor.u32 %v3235, 2147483648
  %v3244 = vxor.u32 %v3236, 2147483648
  %v3245 = vxor.u32 %v3237, 2147483648
  %v3246 = vxor.u32 %v3238, 2147483648
  %v3247 = vxor.u32 %v3239, 2147483648
  %v3248 = vxor.u32 %v3240, 2147483648
  %v3249 = vxor.u32 %v3241, 2147483648
  %v3250 = vmul.f32 %v3242, 1.442695
  %v3251 = vpow.pop %v3250
  %v3252 = vmul.f32 %v3243, 1.442695
  %v3253 = vpow.pop %v3252
  %v3254 = vmul.f32 %v3244, 1.442695
  %v3255 = vpow.pop %v3254
  %v3256 = vmul.f32 %v3245, 1.442695
  %v3257 = vpow.pop %v3256
  %v3258 = vmul.f32 %v3246, 1.442695
  %v3259 = vpow.pop %v3258
  %v3260 = vmul.f32 %v3247, 1.442695
  %v3261 = vpow.pop %v3260
  %v3262 = vmul.f32 %v3248, 1.442695
  %v3263 = vpow.pop %v3262
  %v3264 = vmul.f32 %v3249, 1.442695
  %v3265 = vpow.pop %v3264
  %v3266 = vadd.f32 %v3251, 1.0
  %v3267 = vadd.f32 %v3253, 1.0
  %v3268 = vadd.f32 %v3255, 1.0
  %v3269 = vadd.f32 %v3257, 1.0
  %v3270 = vadd.f32 %v3259, 1.0
  %v3271 = vadd.f32 %v3261, 1.0
  %v3272 = vadd.f32 %v3263, 1.0
  %v3273 = vadd.f32 %v3265, 1.0
  %v3274 = vrcp.pop %v3266
  %v3275 = vmul.f32 %v3266, %v3274
  %v3276 = vsub.f32 1.0, %v3275
  %v3277 = vmul.f32 %v3274, %v3276
  %v3278 = vadd.f32 %v3274, %v3277
  %vm3279 = vweird.f32 %v3266
  %vm3280 = vweird.f32 %v3274
  %vm3281 = vmor %vm3279, %vm3280
  %v3282 = vsel %vm3281, %v3274, %v3278
  %v3283 = vand.u32 2147483647, %v3266
  %vm3284 = vcmp.eq.f32.partialorder %v3283, 8.507059e+37
  %v3285 = vand.u32 %v3266, 2147483648
  %v3286 = vor.u32 1.1754944e-38, %v3285
  %v3287 = vsel %vm3284, %v3286, %v3282
  %v3288 = vmul.f32 1.0, %v3287
  %v3289 = vrcp.pop %v3267
  %v3290 = vmul.f32 %v3267, %v3289
  %v3291 = vsub.f32 1.0, %v3290
  %v3292 = vmul.f32 %v3289, %v3291
  %v3293 = vadd.f32 %v3289, %v3292
  %vm3294 = vweird.f32 %v3267
  %vm3295 = vweird.f32 %v3289
  %vm3296 = vmor %vm3294, %vm3295
  %v3297 = vsel %vm3296, %v3289, %v3293
  %v3298 = vand.u32 2147483647, %v3267
  %vm3299 = vcmp.eq.f32.partialorder %v3298, 8.507059e+37
  %v3300 = vand.u32 %v3267, 2147483648
  %v3301 = vor.u32 1.1754944e-38, %v3300
  %v3302 = vsel %vm3299, %v3301, %v3297
  %v3303 = vmul.f32 1.0, %v3302
  %v3304 = vrcp.pop %v3268
  %v3305 = vmul.f32 %v3268, %v3304
  %v3306 = vsub.f32 1.0, %v3305
  %v3307 = vmul.f32 %v3304, %v3306
  %v3308 = vadd.f32 %v3304, %v3307
  %vm3309 = vweird.f32 %v3268
  %vm3310 = vweird.f32 %v3304
  %vm3311 = vmor %vm3309, %vm3310
  %v3312 = vsel %vm3311, %v3304, %v3308
  %v3313 = vand.u32 2147483647, %v3268
  %vm3314 = vcmp.eq.f32.partialorder %v3313, 8.507059e+37
  %v3315 = vand.u32 %v3268, 2147483648
  %v3316 = vor.u32 1.1754944e-38, %v3315
  %v3317 = vsel %vm3314, %v3316, %v3312
  %v3318 = vmul.f32 1.0, %v3317
  %v3319 = vrcp.pop %v3269
  %v3320 = vmul.f32 %v3269, %v3319
  %v3321 = vsub.f32 1.0, %v3320
  %v3322 = vmul.f32 %v3319, %v3321
  %v3323 = vadd.f32 %v3319, %v3322
  %vm3324 = vweird.f32 %v3269
  %vm3325 = vweird.f32 %v3319
  %vm3326 = vmor %vm3324, %vm3325
  %v3327 = vsel %vm3326, %v3319, %v3323
  %v3328 = vand.u32 2147483647, %v3269
  %vm3329 = vcmp.eq.f32.partialorder %v3328, 8.507059e+37
  %v3330 = vand.u32 %v3269, 2147483648
  %v3331 = vor.u32 1.1754944e-38, %v3330
  %v3332 = vsel %vm3329, %v3331, %v3327
  %v3333 = vmul.f32 1.0, %v3332
  %v3334 = vrcp.pop %v3270
  %v3335 = vmul.f32 %v3270, %v3334
  %v3336 = vsub.f32 1.0, %v3335
  %v3337 = vmul.f32 %v3334, %v3336
  %v3338 = vadd.f32 %v3334, %v3337
  %vm3339 = vweird.f32 %v3270
  %vm3340 = vweird.f32 %v3334
  %vm3341 = vmor %vm3339, %vm3340
  %v3342 = vsel %vm3341, %v3334, %v3338
  %v3343 = vand.u32 2147483647, %v3270
  %vm3344 = vcmp.eq.f32.partialorder %v3343, 8.507059e+37
  %v3345 = vand.u32 %v3270, 2147483648
  %v3346 = vor.u32 1.1754944e-38, %v3345
  %v3347 = vsel %vm3344, %v3346, %v3342
  %v3348 = vmul.f32 1.0, %v3347
  %v3349 = vrcp.pop %v3271
  %v3350 = vmul.f32 %v3271, %v3349
  %v3351 = vsub.f32 1.0, %v3350
  %v3352 = vmul.f32 %v3349, %v3351
  %v3353 = vadd.f32 %v3349, %v3352
  %vm3354 = vweird.f32 %v3271
  %vm3355 = vweird.f32 %v3349
  %vm3356 = vmor %vm3354, %vm3355
  %v3357 = vsel %vm3356, %v3349, %v3353
  %v3358 = vand.u32 2147483647, %v3271
  %vm3359 = vcmp.eq.f32.partialorder %v3358, 8.507059e+37
  %v3360 = vand.u32 %v3271, 2147483648
  %v3361 = vor.u32 1.1754944e-38, %v3360
  %v3362 = vsel %vm3359, %v3361, %v3357
  %v3363 = vmul.f32 1.0, %v3362
  %v3364 = vrcp.pop %v3272
  %v3365 = vmul.f32 %v3272, %v3364
  %v3366 = vsub.f32 1.0, %v3365
  %v3367 = vmul.f32 %v3364, %v3366
  %v3368 = vadd.f32 %v3364, %v3367
  %vm3369 = vweird.f32 %v3272
  %vm3370 = vweird.f32 %v3364
  %vm3371 = vmor %vm3369, %vm3370
  %v3372 = vsel %vm3371, %v3364, %v3368
  %v3373 = vand.u32 2147483647, %v3272
  %vm3374 = vcmp.eq.f32.partialorder %v3373, 8.507059e+37
  %v3375 = vand.u32 %v3272, 2147483648
  %v3376 = vor.u32 1.1754944e-38, %v3375
  %v3377 = vsel %vm3374, %v3376, %v3372
  %v3378 = vmul.f32 1.0, %v3377
  %v3379 = vrcp.pop %v3273
  %v3380 = vmul.f32 %v3273, %v3379
  %v3381 = vsub.f32 1.0, %v3380
  %v3382 = vmul.f32 %v3379, %v3381
  %v3383 = vadd.f32 %v3379, %v3382
  %vm3384 = vweird.f32 %v3273
  %vm3385 = vweird.f32 %v3379
  %vm3386 = vmor %vm3384, %vm3385
  %v3387 = vsel %vm3386, %v3379, %v3383
  %v3388 = vand.u32 2147483647, %v3273
  %vm3389 = vcmp.eq.f32.partialorder %v3388, 8.507059e+37
  %v3390 = vand.u32 %v3273, 2147483648
  %v3391 = vor.u32 1.1754944e-38, %v3390
  %v3392 = vsel %vm3389, %v3391, %v3387
  %v3393 = vmul.f32 1.0, %v3392
  %v3395 = vrot.slane %v3018, 1
  %v3396 = vrot.slane %v3018, 2
  %v3397 = vrot.slane %v3018, 3
  %v3398 = vrot.slane %v3018, 4
  %v3399 = vrot.slane %v3018, 5
  %v3400 = vrot.slane %v3018, 6
  %v3401 = vrot.slane %v3018, 7
  %v3409 = vmul.f32 %v3089, %v3018
  %v3410 = vmul.f32 %v3104, %v3395
  %v3411 = vmul.f32 %v3119, %v3396
  %v3412 = vmul.f32 %v3134, %v3397
  %v3413 = vmul.f32 %v3149, %v3398
  %v3414 = vmul.f32 %v3164, %v3399
  %v3415 = vmul.f32 %v3179, %v3400
  %v3416 = vmul.f32 %v3194, %v3401
  %v3417 = vrot.slane %v2920, 2
  %v3418 = vrot.slane %v2922, 2
  %v3419 = vrot.slane %v2924, 2
  %v3420 = vrot.slane %v2926, 2
  %v3421 = vrot.slane %v2928, 2
  %v3422 = vrot.slane %v2930, 2
  %v3423 = vrot.slane %v2932, 2
  %v3424 = vrot.slane %v2934, 2
  %v3433 = vadd.f32 %v3417, %v3409
  %v3434 = vadd.f32 %v3418, %v3410
  %v3435 = vadd.f32 %v3419, %v3411
  %v3436 = vadd.f32 %v3420, %v3412
  %v3437 = vadd.f32 %v3421, %v3413
  %v3438 = vadd.f32 %v3422, %v3414
  %v3439 = vadd.f32 %v3423, %v3415
  %v3440 = vadd.f32 %v3424, %v3416
  %v3441 = vtanh.pop %v3433
  %v3442 = vtanh.pop %v3434
  %v3443 = vtanh.pop %v3435
  %v3444 = vtanh.pop %v3436
  %v3445 = vtanh.pop %v3437
  %v3446 = vtanh.pop %v3438
  %v3447 = vtanh.pop %v3439
  %v3448 = vtanh.pop %v3440
  %v3449 = vsub.f32 1.0, %v3288
  %v3450 = vsub.f32 1.0, %v3303
  %v3451 = vsub.f32 1.0, %v3318
  %v3452 = vsub.f32 1.0, %v3333
  %v3453 = vsub.f32 1.0, %v3348
  %v3454 = vsub.f32 1.0, %v3363
  %v3455 = vsub.f32 1.0, %v3378
  %v3456 = vsub.f32 1.0, %v3393
  %v3457 = vmul.f32 %v3449, %v3441
  %v3458 = vmul.f32 %v3450, %v3442
  %v3459 = vmul.f32 %v3451, %v3443
  %v3460 = vmul.f32 %v3452, %v3444
  %v3461 = vmul.f32 %v3453, %v3445
  %v3462 = vmul.f32 %v3454, %v3446
  %v3463 = vmul.f32 %v3455, %v3447
  %v3464 = vmul.f32 %v3456, %v3448
  %v3465 = vmul.f32 %v3288, %v2903
  %v3466 = vmul.f32 %v3303, %v2904
  %v3467 = vmul.f32 %v3318, %v2905
  %v3468 = vmul.f32 %v3333, %v2906
  %v3469 = vmul.f32 %v3348, %v2907
  %v3470 = vmul.f32 %v3363, %v2908
  %v3471 = vmul.f32 %v3378, %v2909
  %v3472 = vmul.f32 %v3393, %v2910
  %v3473 = vadd.f32 %v3457, %v3465
  %v3474 = vadd.f32 %v3458, %v3466
  %v3475 = vadd.f32 %v3459, %v3467
  %v3476 = vadd.f32 %v3460, %v3468
  %v3477 = vadd.f32 %v3461, %v3469
  %v3478 = vadd.f32 %v3462, %v3470
  %v3479 = vadd.f32 %v3463, %v3471
  %v3480 = vadd.f32 %v3464, %v3472
  %3481 = vst [vmem:[%s4 + $0x5] sm:$0x1] %v3473
  %3482 = vst [vmem:[%s4 + $0xd] sm:$0x1] %v3474
  %3483 = vst [vmem:[%s4 + $0x15] sm:$0x1] %v3475
  %3484 = vst [vmem:[%s4 + $0x1d] sm:$0x1] %v3476
  %3485 = vst [vmem:[%s4 + $0x25] sm:$0x1] %v3477
  %3486 = vst [vmem:[%s4 + $0x2d] sm:$0x1] %v3478
  %3487 = vst [vmem:[%s4 + $0x35] sm:$0x1] %v3479
  %3488 = vst [vmem:[%s4 + $0x3d] sm:$0x1] %v3480
  %s3489 = scalar_lea.vmem %s1, 6
  %v3490 = vld [vmem:[%s3489] ss:$8 sm:$0x7]
  %s3491 = scalar_lea.vmem %s1, 30
  %v3492 = vld [vmem:[%s3491] ss:$8 sm:$0x7]
  %s3493 = scalar_lea.vmem %s1, 54
  %v3494 = vld [vmem:[%s3493] ss:$8 sm:$0x7]
  %s3495 = scalar_lea.vmem %s1, 78
  %v3496 = vld [vmem:[%s3495] ss:$8 sm:$0x7]
  %s3497 = scalar_lea.vmem %s1, 102
  %v3498 = vld [vmem:[%s3497] ss:$8 sm:$0x7]
  %s3499 = scalar_lea.vmem %s1, 126
  %v3500 = vld [vmem:[%s3499] ss:$8 sm:$0x7]
  %s3501 = scalar_lea.vmem %s1, 150
  %v3502 = vld [vmem:[%s3501] ss:$8 sm:$0x7]
  %s3503 = scalar_lea.vmem %s1, 174
  %v3504 = vld [vmem:[%s3503] ss:$8 sm:$0x7]
  %3513 = vst [vmem:[#allocation1] ss:$9 sm:$0xff] %v3473
  %s3514 = scalar_lea.vmem [#allocation1], 1
  %3515 = vst [vmem:[%s3514] ss:$9 sm:$0xff] %v3474
  %s3516 = scalar_lea.vmem [#allocation1], 2
  %3517 = vst [vmem:[%s3516] ss:$9 sm:$0xff] %v3475
  %s3518 = scalar_lea.vmem [#allocation1], 3
  %3519 = vst [vmem:[%s3518] ss:$9 sm:$0xff] %v3476
  %s3520 = scalar_lea.vmem [#allocation1], 4
  %3521 = vst [vmem:[%s3520] ss:$9 sm:$0xff] %v3477
  %s3522 = scalar_lea.vmem [#allocation1], 5
  %3523 = vst [vmem:[%s3522] ss:$9 sm:$0xff] %v3478
  %s3524 = scalar_lea.vmem [#allocation1], 6
  %3525 = vst [vmem:[%s3524] ss:$9 sm:$0xff] %v3479
  %s3526 = scalar_lea.vmem [#allocation1], 7
  %3527 = vst [vmem:[%s3526] ss:$9 sm:$0xff] %v3480
  %v3528 = vld [vmem:[#allocation1] sm:$0xff]
  %3530 = vmatpush.msra.mxu0 %v69
  %3531 = vmatpush.msra.mxu0 %v66
  %3532 = vmatpush.msra.mxu0 %v63
  %3533 = vmatpush.msra.mxu0 %v60
  %3534 = vmatpush.msra.mxu0 %v57
  %3535 = vmatpush.msra.mxu0 %v54
  %3536 = vmatpush.msra.mxu0 %v51
  %3537 = vmatpush.msra.mxu0 %v48
  %3538 = vmatpush.msra.mxu0 %v45
  %3539 = vmatpush.msra.mxu0 %v42
  %3540 = vmatpush.msra.mxu0 %v39
  %3541 = vmatpush.msra.mxu0 %v36
  %3542 = vmatpush.msra.mxu0 %v33
  %3543 = vmatpush.msra.mxu0 %v30
  %3544 = vmatpush.msra.mxu0 %v27
  %3545 = vmatpush.msra.mxu0 %v24
  %3546 = vmatmul.f32.gmra.mxu0 %v3528
  %v3547 = vpop.f32.mrf.mxu0
  %v3548 = vadd.f32 %v74, %v3547
  %3549 = vdwg.mxu0
  %3550 = vmatpush.msra.mxu0 %v70
  %3551 = vmatpush.msra.mxu0 %v67
  %3552 = vmatpush.msra.mxu0 %v64
  %3553 = vmatpush.msra.mxu0 %v61
  %3554 = vmatpush.msra.mxu0 %v58
  %3555 = vmatpush.msra.mxu0 %v55
  %3556 = vmatpush.msra.mxu0 %v52
  %3557 = vmatpush.msra.mxu0 %v49
  %3558 = vmatpush.msra.mxu0 %v46
  %3559 = vmatpush.msra.mxu0 %v43
  %3560 = vmatpush.msra.mxu0 %v40
  %3561 = vmatpush.msra.mxu0 %v37
  %3562 = vmatpush.msra.mxu0 %v34
  %3563 = vmatpush.msra.mxu0 %v31
  %3564 = vmatpush.msra.mxu0 %v28
  %3565 = vmatpush.msra.mxu0 %v25
  %3566 = vmatmul.f32.gmra.mxu0 %v3528
  %v3567 = vpop.f32.mrf.mxu0
  %v3568 = vadd.f32 %v75, %v3567
  %3569 = vdwg.mxu0
  %3570 = vmatpush.msra.mxu0 %v71
  %3571 = vmatpush.msra.mxu0 %v68
  %3572 = vmatpush.msra.mxu0 %v65
  %3573 = vmatpush.msra.mxu0 %v62
  %3574 = vmatpush.msra.mxu0 %v59
  %3575 = vmatpush.msra.mxu0 %v56
  %3576 = vmatpush.msra.mxu0 %v53
  %3577 = vmatpush.msra.mxu0 %v50
  %3578 = vmatpush.msra.mxu0 %v47
  %3579 = vmatpush.msra.mxu0 %v44
  %3580 = vmatpush.msra.mxu0 %v41
  %3581 = vmatpush.msra.mxu0 %v38
  %3582 = vmatpush.msra.mxu0 %v35
  %3583 = vmatpush.msra.mxu0 %v32
  %3584 = vmatpush.msra.mxu0 %v29
  %3585 = vmatpush.msra.mxu0 %v26
  %3586 = vmatmul.f32.gmra.mxu0 %v3528
  %v3587 = vpop.f32.mrf.mxu0
  %v3588 = vadd.f32 %v76, %v3587
  %3589 = vdwg.mxu0
  %v3591 = vrot.slane %v3548, 1
  %v3592 = vrot.slane %v3548, 2
  %v3593 = vrot.slane %v3548, 3
  %v3594 = vrot.slane %v3548, 4
  %v3595 = vrot.slane %v3548, 5
  %v3596 = vrot.slane %v3548, 6
  %v3597 = vrot.slane %v3548, 7
  %v3605 = vadd.f32 %v3490, %v3548
  %v3606 = vadd.f32 %v3492, %v3591
  %v3607 = vadd.f32 %v3494, %v3592
  %v3608 = vadd.f32 %v3496, %v3593
  %v3609 = vadd.f32 %v3498, %v3594
  %v3610 = vadd.f32 %v3500, %v3595
  %v3611 = vadd.f32 %v3502, %v3596
  %v3612 = vadd.f32 %v3504, %v3597
  %v3613 = vxor.u32 %v3605, 2147483648
  %v3614 = vxor.u32 %v3606, 2147483648
  %v3615 = vxor.u32 %v3607, 2147483648
  %v3616 = vxor.u32 %v3608, 2147483648
  %v3617 = vxor.u32 %v3609, 2147483648
  %v3618 = vxor.u32 %v3610, 2147483648
  %v3619 = vxor.u32 %v3611, 2147483648
  %v3620 = vxor.u32 %v3612, 2147483648
  %v3621 = vmul.f32 %v3613, 1.442695
  %v3622 = vpow.pop %v3621
  %v3623 = vmul.f32 %v3614, 1.442695
  %v3624 = vpow.pop %v3623
  %v3625 = vmul.f32 %v3615, 1.442695
  %v3626 = vpow.pop %v3625
  %v3627 = vmul.f32 %v3616, 1.442695
  %v3628 = vpow.pop %v3627
  %v3629 = vmul.f32 %v3617, 1.442695
  %v3630 = vpow.pop %v3629
  %v3631 = vmul.f32 %v3618, 1.442695
  %v3632 = vpow.pop %v3631
  %v3633 = vmul.f32 %v3619, 1.442695
  %v3634 = vpow.pop %v3633
  %v3635 = vmul.f32 %v3620, 1.442695
  %v3636 = vpow.pop %v3635
  %v3637 = vadd.f32 %v3622, 1.0
  %v3638 = vadd.f32 %v3624, 1.0
  %v3639 = vadd.f32 %v3626, 1.0
  %v3640 = vadd.f32 %v3628, 1.0
  %v3641 = vadd.f32 %v3630, 1.0
  %v3642 = vadd.f32 %v3632, 1.0
  %v3643 = vadd.f32 %v3634, 1.0
  %v3644 = vadd.f32 %v3636, 1.0
  %v3645 = vrcp.pop %v3637
  %v3646 = vmul.f32 %v3637, %v3645
  %v3647 = vsub.f32 1.0, %v3646
  %v3648 = vmul.f32 %v3645, %v3647
  %v3649 = vadd.f32 %v3645, %v3648
  %vm3650 = vweird.f32 %v3637
  %vm3651 = vweird.f32 %v3645
  %vm3652 = vmor %vm3650, %vm3651
  %v3653 = vsel %vm3652, %v3645, %v3649
  %v3654 = vand.u32 2147483647, %v3637
  %vm3655 = vcmp.eq.f32.partialorder %v3654, 8.507059e+37
  %v3656 = vand.u32 %v3637, 2147483648
  %v3657 = vor.u32 1.1754944e-38, %v3656
  %v3658 = vsel %vm3655, %v3657, %v3653
  %v3659 = vmul.f32 1.0, %v3658
  %v3660 = vrcp.pop %v3638
  %v3661 = vmul.f32 %v3638, %v3660
  %v3662 = vsub.f32 1.0, %v3661
  %v3663 = vmul.f32 %v3660, %v3662
  %v3664 = vadd.f32 %v3660, %v3663
  %vm3665 = vweird.f32 %v3638
  %vm3666 = vweird.f32 %v3660
  %vm3667 = vmor %vm3665, %vm3666
  %v3668 = vsel %vm3667, %v3660, %v3664
  %v3669 = vand.u32 2147483647, %v3638
  %vm3670 = vcmp.eq.f32.partialorder %v3669, 8.507059e+37
  %v3671 = vand.u32 %v3638, 2147483648
  %v3672 = vor.u32 1.1754944e-38, %v3671
  %v3673 = vsel %vm3670, %v3672, %v3668
  %v3674 = vmul.f32 1.0, %v3673
  %v3675 = vrcp.pop %v3639
  %v3676 = vmul.f32 %v3639, %v3675
  %v3677 = vsub.f32 1.0, %v3676
  %v3678 = vmul.f32 %v3675, %v3677
  %v3679 = vadd.f32 %v3675, %v3678
  %vm3680 = vweird.f32 %v3639
  %vm3681 = vweird.f32 %v3675
  %vm3682 = vmor %vm3680, %vm3681
  %v3683 = vsel %vm3682, %v3675, %v3679
  %v3684 = vand.u32 2147483647, %v3639
  %vm3685 = vcmp.eq.f32.partialorder %v3684, 8.507059e+37
  %v3686 = vand.u32 %v3639, 2147483648
  %v3687 = vor.u32 1.1754944e-38, %v3686
  %v3688 = vsel %vm3685, %v3687, %v3683
  %v3689 = vmul.f32 1.0, %v3688
  %v3690 = vrcp.pop %v3640
  %v3691 = vmul.f32 %v3640, %v3690
  %v3692 = vsub.f32 1.0, %v3691
  %v3693 = vmul.f32 %v3690, %v3692
  %v3694 = vadd.f32 %v3690, %v3693
  %vm3695 = vweird.f32 %v3640
  %vm3696 = vweird.f32 %v3690
  %vm3697 = vmor %vm3695, %vm3696
  %v3698 = vsel %vm3697, %v3690, %v3694
  %v3699 = vand.u32 2147483647, %v3640
  %vm3700 = vcmp.eq.f32.partialorder %v3699, 8.507059e+37
  %v3701 = vand.u32 %v3640, 2147483648
  %v3702 = vor.u32 1.1754944e-38, %v3701
  %v3703 = vsel %vm3700, %v3702, %v3698
  %v3704 = vmul.f32 1.0, %v3703
  %v3705 = vrcp.pop %v3641
  %v3706 = vmul.f32 %v3641, %v3705
  %v3707 = vsub.f32 1.0, %v3706
  %v3708 = vmul.f32 %v3705, %v3707
  %v3709 = vadd.f32 %v3705, %v3708
  %vm3710 = vweird.f32 %v3641
  %vm3711 = vweird.f32 %v3705
  %vm3712 = vmor %vm3710, %vm3711
  %v3713 = vsel %vm3712, %v3705, %v3709
  %v3714 = vand.u32 2147483647, %v3641
  %vm3715 = vcmp.eq.f32.partialorder %v3714, 8.507059e+37
  %v3716 = vand.u32 %v3641, 2147483648
  %v3717 = vor.u32 1.1754944e-38, %v3716
  %v3718 = vsel %vm3715, %v3717, %v3713
  %v3719 = vmul.f32 1.0, %v3718
  %v3720 = vrcp.pop %v3642
  %v3721 = vmul.f32 %v3642, %v3720
  %v3722 = vsub.f32 1.0, %v3721
  %v3723 = vmul.f32 %v3720, %v3722
  %v3724 = vadd.f32 %v3720, %v3723
  %vm3725 = vweird.f32 %v3642
  %vm3726 = vweird.f32 %v3720
  %vm3727 = vmor %vm3725, %vm3726
  %v3728 = vsel %vm3727, %v3720, %v3724
  %v3729 = vand.u32 2147483647, %v3642
  %vm3730 = vcmp.eq.f32.partialorder %v3729, 8.507059e+37
  %v3731 = vand.u32 %v3642, 2147483648
  %v3732 = vor.u32 1.1754944e-38, %v3731
  %v3733 = vsel %vm3730, %v3732, %v3728
  %v3734 = vmul.f32 1.0, %v3733
  %v3735 = vrcp.pop %v3643
  %v3736 = vmul.f32 %v3643, %v3735
  %v3737 = vsub.f32 1.0, %v3736
  %v3738 = vmul.f32 %v3735, %v3737
  %v3739 = vadd.f32 %v3735, %v3738
  %vm3740 = vweird.f32 %v3643
  %vm3741 = vweird.f32 %v3735
  %vm3742 = vmor %vm3740, %vm3741
  %v3743 = vsel %vm3742, %v3735, %v3739
  %v3744 = vand.u32 2147483647, %v3643
  %vm3745 = vcmp.eq.f32.partialorder %v3744, 8.507059e+37
  %v3746 = vand.u32 %v3643, 2147483648
  %v3747 = vor.u32 1.1754944e-38, %v3746
  %v3748 = vsel %vm3745, %v3747, %v3743
  %v3749 = vmul.f32 1.0, %v3748
  %v3750 = vrcp.pop %v3644
  %v3751 = vmul.f32 %v3644, %v3750
  %v3752 = vsub.f32 1.0, %v3751
  %v3753 = vmul.f32 %v3750, %v3752
  %v3754 = vadd.f32 %v3750, %v3753
  %vm3755 = vweird.f32 %v3644
  %vm3756 = vweird.f32 %v3750
  %vm3757 = vmor %vm3755, %vm3756
  %v3758 = vsel %vm3757, %v3750, %v3754
  %v3759 = vand.u32 2147483647, %v3644
  %vm3760 = vcmp.eq.f32.partialorder %v3759, 8.507059e+37
  %v3761 = vand.u32 %v3644, 2147483648
  %v3762 = vor.u32 1.1754944e-38, %v3761
  %v3763 = vsel %vm3760, %v3762, %v3758
  %v3764 = vmul.f32 1.0, %v3763
  %v3773 = vrot.slane %v3490, 1
  %v3774 = vrot.slane %v3492, 1
  %v3775 = vrot.slane %v3494, 1
  %v3776 = vrot.slane %v3496, 1
  %v3777 = vrot.slane %v3498, 1
  %v3778 = vrot.slane %v3500, 1
  %v3779 = vrot.slane %v3502, 1
  %v3780 = vrot.slane %v3504, 1
  %v3790 = vrot.slane %v3568, 1
  %v3791 = vrot.slane %v3568, 2
  %v3792 = vrot.slane %v3568, 3
  %v3793 = vrot.slane %v3568, 4
  %v3794 = vrot.slane %v3568, 5
  %v3795 = vrot.slane %v3568, 6
  %v3796 = vrot.slane %v3568, 7
  %v3804 = vadd.f32 %v3773, %v3568
  %v3805 = vadd.f32 %v3774, %v3790
  %v3806 = vadd.f32 %v3775, %v3791
  %v3807 = vadd.f32 %v3776, %v3792
  %v3808 = vadd.f32 %v3777, %v3793
  %v3809 = vadd.f32 %v3778, %v3794
  %v3810 = vadd.f32 %v3779, %v3795
  %v3811 = vadd.f32 %v3780, %v3796
  %v3812 = vxor.u32 %v3804, 2147483648
  %v3813 = vxor.u32 %v3805, 2147483648
  %v3814 = vxor.u32 %v3806, 2147483648
  %v3815 = vxor.u32 %v3807, 2147483648
  %v3816 = vxor.u32 %v3808, 2147483648
  %v3817 = vxor.u32 %v3809, 2147483648
  %v3818 = vxor.u32 %v3810, 2147483648
  %v3819 = vxor.u32 %v3811, 2147483648
  %v3820 = vmul.f32 %v3812, 1.442695
  %v3821 = vpow.pop %v3820
  %v3822 = vmul.f32 %v3813, 1.442695
  %v3823 = vpow.pop %v3822
  %v3824 = vmul.f32 %v3814, 1.442695
  %v3825 = vpow.pop %v3824
  %v3826 = vmul.f32 %v3815, 1.442695
  %v3827 = vpow.pop %v3826
  %v3828 = vmul.f32 %v3816, 1.442695
  %v3829 = vpow.pop %v3828
  %v3830 = vmul.f32 %v3817, 1.442695
  %v3831 = vpow.pop %v3830
  %v3832 = vmul.f32 %v3818, 1.442695
  %v3833 = vpow.pop %v3832
  %v3834 = vmul.f32 %v3819, 1.442695
  %v3835 = vpow.pop %v3834
  %v3836 = vadd.f32 %v3821, 1.0
  %v3837 = vadd.f32 %v3823, 1.0
  %v3838 = vadd.f32 %v3825, 1.0
  %v3839 = vadd.f32 %v3827, 1.0
  %v3840 = vadd.f32 %v3829, 1.0
  %v3841 = vadd.f32 %v3831, 1.0
  %v3842 = vadd.f32 %v3833, 1.0
  %v3843 = vadd.f32 %v3835, 1.0
  %v3844 = vrcp.pop %v3836
  %v3845 = vmul.f32 %v3836, %v3844
  %v3846 = vsub.f32 1.0, %v3845
  %v3847 = vmul.f32 %v3844, %v3846
  %v3848 = vadd.f32 %v3844, %v3847
  %vm3849 = vweird.f32 %v3836
  %vm3850 = vweird.f32 %v3844
  %vm3851 = vmor %vm3849, %vm3850
  %v3852 = vsel %vm3851, %v3844, %v3848
  %v3853 = vand.u32 2147483647, %v3836
  %vm3854 = vcmp.eq.f32.partialorder %v3853, 8.507059e+37
  %v3855 = vand.u32 %v3836, 2147483648
  %v3856 = vor.u32 1.1754944e-38, %v3855
  %v3857 = vsel %vm3854, %v3856, %v3852
  %v3858 = vmul.f32 1.0, %v3857
  %v3859 = vrcp.pop %v3837
  %v3860 = vmul.f32 %v3837, %v3859
  %v3861 = vsub.f32 1.0, %v3860
  %v3862 = vmul.f32 %v3859, %v3861
  %v3863 = vadd.f32 %v3859, %v3862
  %vm3864 = vweird.f32 %v3837
  %vm3865 = vweird.f32 %v3859
  %vm3866 = vmor %vm3864, %vm3865
  %v3867 = vsel %vm3866, %v3859, %v3863
  %v3868 = vand.u32 2147483647, %v3837
  %vm3869 = vcmp.eq.f32.partialorder %v3868, 8.507059e+37
  %v3870 = vand.u32 %v3837, 2147483648
  %v3871 = vor.u32 1.1754944e-38, %v3870
  %v3872 = vsel %vm3869, %v3871, %v3867
  %v3873 = vmul.f32 1.0, %v3872
  %v3874 = vrcp.pop %v3838
  %v3875 = vmul.f32 %v3838, %v3874
  %v3876 = vsub.f32 1.0, %v3875
  %v3877 = vmul.f32 %v3874, %v3876
  %v3878 = vadd.f32 %v3874, %v3877
  %vm3879 = vweird.f32 %v3838
  %vm3880 = vweird.f32 %v3874
  %vm3881 = vmor %vm3879, %vm3880
  %v3882 = vsel %vm3881, %v3874, %v3878
  %v3883 = vand.u32 2147483647, %v3838
  %vm3884 = vcmp.eq.f32.partialorder %v3883, 8.507059e+37
  %v3885 = vand.u32 %v3838, 2147483648
  %v3886 = vor.u32 1.1754944e-38, %v3885
  %v3887 = vsel %vm3884, %v3886, %v3882
  %v3888 = vmul.f32 1.0, %v3887
  %v3889 = vrcp.pop %v3839
  %v3890 = vmul.f32 %v3839, %v3889
  %v3891 = vsub.f32 1.0, %v3890
  %v3892 = vmul.f32 %v3889, %v3891
  %v3893 = vadd.f32 %v3889, %v3892
  %vm3894 = vweird.f32 %v3839
  %vm3895 = vweird.f32 %v3889
  %vm3896 = vmor %vm3894, %vm3895
  %v3897 = vsel %vm3896, %v3889, %v3893
  %v3898 = vand.u32 2147483647, %v3839
  %vm3899 = vcmp.eq.f32.partialorder %v3898, 8.507059e+37
  %v3900 = vand.u32 %v3839, 2147483648
  %v3901 = vor.u32 1.1754944e-38, %v3900
  %v3902 = vsel %vm3899, %v3901, %v3897
  %v3903 = vmul.f32 1.0, %v3902
  %v3904 = vrcp.pop %v3840
  %v3905 = vmul.f32 %v3840, %v3904
  %v3906 = vsub.f32 1.0, %v3905
  %v3907 = vmul.f32 %v3904, %v3906
  %v3908 = vadd.f32 %v3904, %v3907
  %vm3909 = vweird.f32 %v3840
  %vm3910 = vweird.f32 %v3904
  %vm3911 = vmor %vm3909, %vm3910
  %v3912 = vsel %vm3911, %v3904, %v3908
  %v3913 = vand.u32 2147483647, %v3840
  %vm3914 = vcmp.eq.f32.partialorder %v3913, 8.507059e+37
  %v3915 = vand.u32 %v3840, 2147483648
  %v3916 = vor.u32 1.1754944e-38, %v3915
  %v3917 = vsel %vm3914, %v3916, %v3912
  %v3918 = vmul.f32 1.0, %v3917
  %v3919 = vrcp.pop %v3841
  %v3920 = vmul.f32 %v3841, %v3919
  %v3921 = vsub.f32 1.0, %v3920
  %v3922 = vmul.f32 %v3919, %v3921
  %v3923 = vadd.f32 %v3919, %v3922
  %vm3924 = vweird.f32 %v3841
  %vm3925 = vweird.f32 %v3919
  %vm3926 = vmor %vm3924, %vm3925
  %v3927 = vsel %vm3926, %v3919, %v3923
  %v3928 = vand.u32 2147483647, %v3841
  %vm3929 = vcmp.eq.f32.partialorder %v3928, 8.507059e+37
  %v3930 = vand.u32 %v3841, 2147483648
  %v3931 = vor.u32 1.1754944e-38, %v3930
  %v3932 = vsel %vm3929, %v3931, %v3927
  %v3933 = vmul.f32 1.0, %v3932
  %v3934 = vrcp.pop %v3842
  %v3935 = vmul.f32 %v3842, %v3934
  %v3936 = vsub.f32 1.0, %v3935
  %v3937 = vmul.f32 %v3934, %v3936
  %v3938 = vadd.f32 %v3934, %v3937
  %vm3939 = vweird.f32 %v3842
  %vm3940 = vweird.f32 %v3934
  %vm3941 = vmor %vm3939, %vm3940
  %v3942 = vsel %vm3941, %v3934, %v3938
  %v3943 = vand.u32 2147483647, %v3842
  %vm3944 = vcmp.eq.f32.partialorder %v3943, 8.507059e+37
  %v3945 = vand.u32 %v3842, 2147483648
  %v3946 = vor.u32 1.1754944e-38, %v3945
  %v3947 = vsel %vm3944, %v3946, %v3942
  %v3948 = vmul.f32 1.0, %v3947
  %v3949 = vrcp.pop %v3843
  %v3950 = vmul.f32 %v3843, %v3949
  %v3951 = vsub.f32 1.0, %v3950
  %v3952 = vmul.f32 %v3949, %v3951
  %v3953 = vadd.f32 %v3949, %v3952
  %vm3954 = vweird.f32 %v3843
  %vm3955 = vweird.f32 %v3949
  %vm3956 = vmor %vm3954, %vm3955
  %v3957 = vsel %vm3956, %v3949, %v3953
  %v3958 = vand.u32 2147483647, %v3843
  %vm3959 = vcmp.eq.f32.partialorder %v3958, 8.507059e+37
  %v3960 = vand.u32 %v3843, 2147483648
  %v3961 = vor.u32 1.1754944e-38, %v3960
  %v3962 = vsel %vm3959, %v3961, %v3957
  %v3963 = vmul.f32 1.0, %v3962
  %v3965 = vrot.slane %v3588, 1
  %v3966 = vrot.slane %v3588, 2
  %v3967 = vrot.slane %v3588, 3
  %v3968 = vrot.slane %v3588, 4
  %v3969 = vrot.slane %v3588, 5
  %v3970 = vrot.slane %v3588, 6
  %v3971 = vrot.slane %v3588, 7
  %v3979 = vmul.f32 %v3659, %v3588
  %v3980 = vmul.f32 %v3674, %v3965
  %v3981 = vmul.f32 %v3689, %v3966
  %v3982 = vmul.f32 %v3704, %v3967
  %v3983 = vmul.f32 %v3719, %v3968
  %v3984 = vmul.f32 %v3734, %v3969
  %v3985 = vmul.f32 %v3749, %v3970
  %v3986 = vmul.f32 %v3764, %v3971
  %v3987 = vrot.slane %v3490, 2
  %v3988 = vrot.slane %v3492, 2
  %v3989 = vrot.slane %v3494, 2
  %v3990 = vrot.slane %v3496, 2
  %v3991 = vrot.slane %v3498, 2
  %v3992 = vrot.slane %v3500, 2
  %v3993 = vrot.slane %v3502, 2
  %v3994 = vrot.slane %v3504, 2
  %v4003 = vadd.f32 %v3987, %v3979
  %v4004 = vadd.f32 %v3988, %v3980
  %v4005 = vadd.f32 %v3989, %v3981
  %v4006 = vadd.f32 %v3990, %v3982
  %v4007 = vadd.f32 %v3991, %v3983
  %v4008 = vadd.f32 %v3992, %v3984
  %v4009 = vadd.f32 %v3993, %v3985
  %v4010 = vadd.f32 %v3994, %v3986
  %v4011 = vtanh.pop %v4003
  %v4012 = vtanh.pop %v4004
  %v4013 = vtanh.pop %v4005
  %v4014 = vtanh.pop %v4006
  %v4015 = vtanh.pop %v4007
  %v4016 = vtanh.pop %v4008
  %v4017 = vtanh.pop %v4009
  %v4018 = vtanh.pop %v4010
  %v4019 = vsub.f32 1.0, %v3858
  %v4020 = vsub.f32 1.0, %v3873
  %v4021 = vsub.f32 1.0, %v3888
  %v4022 = vsub.f32 1.0, %v3903
  %v4023 = vsub.f32 1.0, %v3918
  %v4024 = vsub.f32 1.0, %v3933
  %v4025 = vsub.f32 1.0, %v3948
  %v4026 = vsub.f32 1.0, %v3963
  %v4027 = vmul.f32 %v4019, %v4011
  %v4028 = vmul.f32 %v4020, %v4012
  %v4029 = vmul.f32 %v4021, %v4013
  %v4030 = vmul.f32 %v4022, %v4014
  %v4031 = vmul.f32 %v4023, %v4015
  %v4032 = vmul.f32 %v4024, %v4016
  %v4033 = vmul.f32 %v4025, %v4017
  %v4034 = vmul.f32 %v4026, %v4018
  %v4035 = vmul.f32 %v3858, %v3473
  %v4036 = vmul.f32 %v3873, %v3474
  %v4037 = vmul.f32 %v3888, %v3475
  %v4038 = vmul.f32 %v3903, %v3476
  %v4039 = vmul.f32 %v3918, %v3477
  %v4040 = vmul.f32 %v3933, %v3478
  %v4041 = vmul.f32 %v3948, %v3479
  %v4042 = vmul.f32 %v3963, %v3480
  %v4043 = vadd.f32 %v4027, %v4035
  %v4044 = vadd.f32 %v4028, %v4036
  %v4045 = vadd.f32 %v4029, %v4037
  %v4046 = vadd.f32 %v4030, %v4038
  %v4047 = vadd.f32 %v4031, %v4039
  %v4048 = vadd.f32 %v4032, %v4040
  %v4049 = vadd.f32 %v4033, %v4041
  %v4050 = vadd.f32 %v4034, %v4042
  %4051 = vst [vmem:[%s4 + $0x6] sm:$0x1] %v4043
  %4052 = vst [vmem:[%s4 + $0xe] sm:$0x1] %v4044
  %4053 = vst [vmem:[%s4 + $0x16] sm:$0x1] %v4045
  %4054 = vst [vmem:[%s4 + $0x1e] sm:$0x1] %v4046
  %4055 = vst [vmem:[%s4 + $0x26] sm:$0x1] %v4047
  %4056 = vst [vmem:[%s4 + $0x2e] sm:$0x1] %v4048
  %4057 = vst [vmem:[%s4 + $0x36] sm:$0x1] %v4049
  %4058 = vst [vmem:[%s4 + $0x3e] sm:$0x1] %v4050
  %s4059 = scalar_lea.vmem %s1, 7
  %v4060 = vld [vmem:[%s4059] ss:$8 sm:$0x7]
  %s4061 = scalar_lea.vmem %s1, 31
  %v4062 = vld [vmem:[%s4061] ss:$8 sm:$0x7]
  %s4063 = scalar_lea.vmem %s1, 55
  %v4064 = vld [vmem:[%s4063] ss:$8 sm:$0x7]
  %s4065 = scalar_lea.vmem %s1, 79
  %v4066 = vld [vmem:[%s4065] ss:$8 sm:$0x7]
  %s4067 = scalar_lea.vmem %s1, 103
  %v4068 = vld [vmem:[%s4067] ss:$8 sm:$0x7]
  %s4069 = scalar_lea.vmem %s1, 127
  %v4070 = vld [vmem:[%s4069] ss:$8 sm:$0x7]
  %s4071 = scalar_lea.vmem %s1, 151
  %v4072 = vld [vmem:[%s4071] ss:$8 sm:$0x7]
  %s4073 = scalar_lea.vmem %s1, 175
  %v4074 = vld [vmem:[%s4073] ss:$8 sm:$0x7]
  %4083 = vst [vmem:[#allocation1] ss:$9 sm:$0xff] %v4043
  %s4084 = scalar_lea.vmem [#allocation1], 1
  %4085 = vst [vmem:[%s4084] ss:$9 sm:$0xff] %v4044
  %s4086 = scalar_lea.vmem [#allocation1], 2
  %4087 = vst [vmem:[%s4086] ss:$9 sm:$0xff] %v4045
  %s4088 = scalar_lea.vmem [#allocation1], 3
  %4089 = vst [vmem:[%s4088] ss:$9 sm:$0xff] %v4046
  %s4090 = scalar_lea.vmem [#allocation1], 4
  %4091 = vst [vmem:[%s4090] ss:$9 sm:$0xff] %v4047
  %s4092 = scalar_lea.vmem [#allocation1], 5
  %4093 = vst [vmem:[%s4092] ss:$9 sm:$0xff] %v4048
  %s4094 = scalar_lea.vmem [#allocation1], 6
  %4095 = vst [vmem:[%s4094] ss:$9 sm:$0xff] %v4049
  %s4096 = scalar_lea.vmem [#allocation1], 7
  %4097 = vst [vmem:[%s4096] ss:$9 sm:$0xff] %v4050
  %v4098 = vld [vmem:[#allocation1] sm:$0xff]
  %4100 = vmatpush.msra.mxu0 %v69
  %4101 = vmatpush.msra.mxu0 %v66
  %4102 = vmatpush.msra.mxu0 %v63
  %4103 = vmatpush.msra.mxu0 %v60
  %4104 = vmatpush.msra.mxu0 %v57
  %4105 = vmatpush.msra.mxu0 %v54
  %4106 = vmatpush.msra.mxu0 %v51
  %4107 = vmatpush.msra.mxu0 %v48
  %4108 = vmatpush.msra.mxu0 %v45
  %4109 = vmatpush.msra.mxu0 %v42
  %4110 = vmatpush.msra.mxu0 %v39
  %4111 = vmatpush.msra.mxu0 %v36
  %4112 = vmatpush.msra.mxu0 %v33
  %4113 = vmatpush.msra.mxu0 %v30
  %4114 = vmatpush.msra.mxu0 %v27
  %4115 = vmatpush.msra.mxu0 %v24
  %4116 = vmatmul.f32.gmra.mxu0 %v4098
  %v4117 = vpop.f32.mrf.mxu0
  %v4118 = vadd.f32 %v74, %v4117
  %4119 = vdwg.mxu0
  %4120 = vmatpush.msra.mxu0 %v70
  %4121 = vmatpush.msra.mxu0 %v67
  %4122 = vmatpush.msra.mxu0 %v64
  %4123 = vmatpush.msra.mxu0 %v61
  %4124 = vmatpush.msra.mxu0 %v58
  %4125 = vmatpush.msra.mxu0 %v55
  %4126 = vmatpush.msra.mxu0 %v52
  %4127 = vmatpush.msra.mxu0 %v49
  %4128 = vmatpush.msra.mxu0 %v46
  %4129 = vmatpush.msra.mxu0 %v43
  %4130 = vmatpush.msra.mxu0 %v40
  %4131 = vmatpush.msra.mxu0 %v37
  %4132 = vmatpush.msra.mxu0 %v34
  %4133 = vmatpush.msra.mxu0 %v31
  %4134 = vmatpush.msra.mxu0 %v28
  %4135 = vmatpush.msra.mxu0 %v25
  %4136 = vmatmul.f32.gmra.mxu0 %v4098
  %v4137 = vpop.f32.mrf.mxu0
  %v4138 = vadd.f32 %v75, %v4137
  %4139 = vdwg.mxu0
  %4140 = vmatpush.msra.mxu0 %v71
  %4141 = vmatpush.msra.mxu0 %v68
  %4142 = vmatpush.msra.mxu0 %v65
  %4143 = vmatpush.msra.mxu0 %v62
  %4144 = vmatpush.msra.mxu0 %v59
  %4145 = vmatpush.msra.mxu0 %v56
  %4146 = vmatpush.msra.mxu0 %v53
  %4147 = vmatpush.msra.mxu0 %v50
  %4148 = vmatpush.msra.mxu0 %v47
  %4149 = vmatpush.msra.mxu0 %v44
  %4150 = vmatpush.msra.mxu0 %v41
  %4151 = vmatpush.msra.mxu0 %v38
  %4152 = vmatpush.msra.mxu0 %v35
  %4153 = vmatpush.msra.mxu0 %v32
  %4154 = vmatpush.msra.mxu0 %v29
  %4155 = vmatpush.msra.mxu0 %v26
  %4156 = vmatmul.f32.gmra.mxu0 %v4098
  %v4157 = vpop.f32.mrf.mxu0
  %v4158 = vadd.f32 %v76, %v4157
  %4159 = vdwg.mxu0
  %v4161 = vrot.slane %v4118, 1
  %v4162 = vrot.slane %v4118, 2
  %v4163 = vrot.slane %v4118, 3
  %v4164 = vrot.slane %v4118, 4
  %v4165 = vrot.slane %v4118, 5
  %v4166 = vrot.slane %v4118, 6
  %v4167 = vrot.slane %v4118, 7
  %v4175 = vadd.f32 %v4060, %v4118
  %v4176 = vadd.f32 %v4062, %v4161
  %v4177 = vadd.f32 %v4064, %v4162
  %v4178 = vadd.f32 %v4066, %v4163
  %v4179 = vadd.f32 %v4068, %v4164
  %v4180 = vadd.f32 %v4070, %v4165
  %v4181 = vadd.f32 %v4072, %v4166
  %v4182 = vadd.f32 %v4074, %v4167
  %v4183 = vxor.u32 %v4175, 2147483648
  %v4184 = vxor.u32 %v4176, 2147483648
  %v4185 = vxor.u32 %v4177, 2147483648
  %v4186 = vxor.u32 %v4178, 2147483648
  %v4187 = vxor.u32 %v4179, 2147483648
  %v4188 = vxor.u32 %v4180, 2147483648
  %v4189 = vxor.u32 %v4181, 2147483648
  %v4190 = vxor.u32 %v4182, 2147483648
  %v4191 = vmul.f32 %v4183, 1.442695
  %v4192 = vpow.pop %v4191
  %v4193 = vmul.f32 %v4184, 1.442695
  %v4194 = vpow.pop %v4193
  %v4195 = vmul.f32 %v4185, 1.442695
  %v4196 = vpow.pop %v4195
  %v4197 = vmul.f32 %v4186, 1.442695
  %v4198 = vpow.pop %v4197
  %v4199 = vmul.f32 %v4187, 1.442695
  %v4200 = vpow.pop %v4199
  %v4201 = vmul.f32 %v4188, 1.442695
  %v4202 = vpow.pop %v4201
  %v4203 = vmul.f32 %v4189, 1.442695
  %v4204 = vpow.pop %v4203
  %v4205 = vmul.f32 %v4190, 1.442695
  %v4206 = vpow.pop %v4205
  %v4207 = vadd.f32 %v4192, 1.0
  %v4208 = vadd.f32 %v4194, 1.0
  %v4209 = vadd.f32 %v4196, 1.0
  %v4210 = vadd.f32 %v4198, 1.0
  %v4211 = vadd.f32 %v4200, 1.0
  %v4212 = vadd.f32 %v4202, 1.0
  %v4213 = vadd.f32 %v4204, 1.0
  %v4214 = vadd.f32 %v4206, 1.0
  %v4215 = vrcp.pop %v4207
  %v4216 = vmul.f32 %v4207, %v4215
  %v4217 = vsub.f32 1.0, %v4216
  %v4218 = vmul.f32 %v4215, %v4217
  %v4219 = vadd.f32 %v4215, %v4218
  %vm4220 = vweird.f32 %v4207
  %vm4221 = vweird.f32 %v4215
  %vm4222 = vmor %vm4220, %vm4221
  %v4223 = vsel %vm4222, %v4215, %v4219
  %v4224 = vand.u32 2147483647, %v4207
  %vm4225 = vcmp.eq.f32.partialorder %v4224, 8.507059e+37
  %v4226 = vand.u32 %v4207, 2147483648
  %v4227 = vor.u32 1.1754944e-38, %v4226
  %v4228 = vsel %vm4225, %v4227, %v4223
  %v4229 = vmul.f32 1.0, %v4228
  %v4230 = vrcp.pop %v4208
  %v4231 = vmul.f32 %v4208, %v4230
  %v4232 = vsub.f32 1.0, %v4231
  %v4233 = vmul.f32 %v4230, %v4232
  %v4234 = vadd.f32 %v4230, %v4233
  %vm4235 = vweird.f32 %v4208
  %vm4236 = vweird.f32 %v4230
  %vm4237 = vmor %vm4235, %vm4236
  %v4238 = vsel %vm4237, %v4230, %v4234
  %v4239 = vand.u32 2147483647, %v4208
  %vm4240 = vcmp.eq.f32.partialorder %v4239, 8.507059e+37
  %v4241 = vand.u32 %v4208, 2147483648
  %v4242 = vor.u32 1.1754944e-38, %v4241
  %v4243 = vsel %vm4240, %v4242, %v4238
  %v4244 = vmul.f32 1.0, %v4243
  %v4245 = vrcp.pop %v4209
  %v4246 = vmul.f32 %v4209, %v4245
  %v4247 = vsub.f32 1.0, %v4246
  %v4248 = vmul.f32 %v4245, %v4247
  %v4249 = vadd.f32 %v4245, %v4248
  %vm4250 = vweird.f32 %v4209
  %vm4251 = vweird.f32 %v4245
  %vm4252 = vmor %vm4250, %vm4251
  %v4253 = vsel %vm4252, %v4245, %v4249
  %v4254 = vand.u32 2147483647, %v4209
  %vm4255 = vcmp.eq.f32.partialorder %v4254, 8.507059e+37
  %v4256 = vand.u32 %v4209, 2147483648
  %v4257 = vor.u32 1.1754944e-38, %v4256
  %v4258 = vsel %vm4255, %v4257, %v4253
  %v4259 = vmul.f32 1.0, %v4258
  %v4260 = vrcp.pop %v4210
  %v4261 = vmul.f32 %v4210, %v4260
  %v4262 = vsub.f32 1.0, %v4261
  %v4263 = vmul.f32 %v4260, %v4262
  %v4264 = vadd.f32 %v4260, %v4263
  %vm4265 = vweird.f32 %v4210
  %vm4266 = vweird.f32 %v4260
  %vm4267 = vmor %vm4265, %vm4266
  %v4268 = vsel %vm4267, %v4260, %v4264
  %v4269 = vand.u32 2147483647, %v4210
  %vm4270 = vcmp.eq.f32.partialorder %v4269, 8.507059e+37
  %v4271 = vand.u32 %v4210, 2147483648
  %v4272 = vor.u32 1.1754944e-38, %v4271
  %v4273 = vsel %vm4270, %v4272, %v4268
  %v4274 = vmul.f32 1.0, %v4273
  %v4275 = vrcp.pop %v4211
  %v4276 = vmul.f32 %v4211, %v4275
  %v4277 = vsub.f32 1.0, %v4276
  %v4278 = vmul.f32 %v4275, %v4277
  %v4279 = vadd.f32 %v4275, %v4278
  %vm4280 = vweird.f32 %v4211
  %vm4281 = vweird.f32 %v4275
  %vm4282 = vmor %vm4280, %vm4281
  %v4283 = vsel %vm4282, %v4275, %v4279
  %v4284 = vand.u32 2147483647, %v4211
  %vm4285 = vcmp.eq.f32.partialorder %v4284, 8.507059e+37
  %v4286 = vand.u32 %v4211, 2147483648
  %v4287 = vor.u32 1.1754944e-38, %v4286
  %v4288 = vsel %vm4285, %v4287, %v4283
  %v4289 = vmul.f32 1.0, %v4288
  %v4290 = vrcp.pop %v4212
  %v4291 = vmul.f32 %v4212, %v4290
  %v4292 = vsub.f32 1.0, %v4291
  %v4293 = vmul.f32 %v4290, %v4292
  %v4294 = vadd.f32 %v4290, %v4293
  %vm4295 = vweird.f32 %v4212
  %vm4296 = vweird.f32 %v4290
  %vm4297 = vmor %vm4295, %vm4296
  %v4298 = vsel %vm4297, %v4290, %v4294
  %v4299 = vand.u32 2147483647, %v4212
  %vm4300 = vcmp.eq.f32.partialorder %v4299, 8.507059e+37
  %v4301 = vand.u32 %v4212, 2147483648
  %v4302 = vor.u32 1.1754944e-38, %v4301
  %v4303 = vsel %vm4300, %v4302, %v4298
  %v4304 = vmul.f32 1.0, %v4303
  %v4305 = vrcp.pop %v4213
  %v4306 = vmul.f32 %v4213, %v4305
  %v4307 = vsub.f32 1.0, %v4306
  %v4308 = vmul.f32 %v4305, %v4307
  %v4309 = vadd.f32 %v4305, %v4308
  %vm4310 = vweird.f32 %v4213
  %vm4311 = vweird.f32 %v4305
  %vm4312 = vmor %vm4310, %vm4311
  %v4313 = vsel %vm4312, %v4305, %v4309
  %v4314 = vand.u32 2147483647, %v4213
  %vm4315 = vcmp.eq.f32.partialorder %v4314, 8.507059e+37
  %v4316 = vand.u32 %v4213, 2147483648
  %v4317 = vor.u32 1.1754944e-38, %v4316
  %v4318 = vsel %vm4315, %v4317, %v4313
  %v4319 = vmul.f32 1.0, %v4318
  %v4320 = vrcp.pop %v4214
  %v4321 = vmul.f32 %v4214, %v4320
  %v4322 = vsub.f32 1.0, %v4321
  %v4323 = vmul.f32 %v4320, %v4322
  %v4324 = vadd.f32 %v4320, %v4323
  %vm4325 = vweird.f32 %v4214
  %vm4326 = vweird.f32 %v4320
  %vm4327 = vmor %vm4325, %vm4326
  %v4328 = vsel %vm4327, %v4320, %v4324
  %v4329 = vand.u32 2147483647, %v4214
  %vm4330 = vcmp.eq.f32.partialorder %v4329, 8.507059e+37
  %v4331 = vand.u32 %v4214, 2147483648
  %v4332 = vor.u32 1.1754944e-38, %v4331
  %v4333 = vsel %vm4330, %v4332, %v4328
  %v4334 = vmul.f32 1.0, %v4333
  %v4343 = vrot.slane %v4060, 1
  %v4344 = vrot.slane %v4062, 1
  %v4345 = vrot.slane %v4064, 1
  %v4346 = vrot.slane %v4066, 1
  %v4347 = vrot.slane %v4068, 1
  %v4348 = vrot.slane %v4070, 1
  %v4349 = vrot.slane %v4072, 1
  %v4350 = vrot.slane %v4074, 1
  %v4360 = vrot.slane %v4138, 1
  %v4361 = vrot.slane %v4138, 2
  %v4362 = vrot.slane %v4138, 3
  %v4363 = vrot.slane %v4138, 4
  %v4364 = vrot.slane %v4138, 5
  %v4365 = vrot.slane %v4138, 6
  %v4366 = vrot.slane %v4138, 7
  %v4374 = vadd.f32 %v4343, %v4138
  %v4375 = vadd.f32 %v4344, %v4360
  %v4376 = vadd.f32 %v4345, %v4361
  %v4377 = vadd.f32 %v4346, %v4362
  %v4378 = vadd.f32 %v4347, %v4363
  %v4379 = vadd.f32 %v4348, %v4364
  %v4380 = vadd.f32 %v4349, %v4365
  %v4381 = vadd.f32 %v4350, %v4366
  %v4382 = vxor.u32 %v4374, 2147483648
  %v4383 = vxor.u32 %v4375, 2147483648
  %v4384 = vxor.u32 %v4376, 2147483648
  %v4385 = vxor.u32 %v4377, 2147483648
  %v4386 = vxor.u32 %v4378, 2147483648
  %v4387 = vxor.u32 %v4379, 2147483648
  %v4388 = vxor.u32 %v4380, 2147483648
  %v4389 = vxor.u32 %v4381, 2147483648
  %v4390 = vmul.f32 %v4382, 1.442695
  %v4391 = vpow.pop %v4390
  %v4392 = vmul.f32 %v4383, 1.442695
  %v4393 = vpow.pop %v4392
  %v4394 = vmul.f32 %v4384, 1.442695
  %v4395 = vpow.pop %v4394
  %v4396 = vmul.f32 %v4385, 1.442695
  %v4397 = vpow.pop %v4396
  %v4398 = vmul.f32 %v4386, 1.442695
  %v4399 = vpow.pop %v4398
  %v4400 = vmul.f32 %v4387, 1.442695
  %v4401 = vpow.pop %v4400
  %v4402 = vmul.f32 %v4388, 1.442695
  %v4403 = vpow.pop %v4402
  %v4404 = vmul.f32 %v4389, 1.442695
  %v4405 = vpow.pop %v4404
  %v4406 = vadd.f32 %v4391, 1.0
  %v4407 = vadd.f32 %v4393, 1.0
  %v4408 = vadd.f32 %v4395, 1.0
  %v4409 = vadd.f32 %v4397, 1.0
  %v4410 = vadd.f32 %v4399, 1.0
  %v4411 = vadd.f32 %v4401, 1.0
  %v4412 = vadd.f32 %v4403, 1.0
  %v4413 = vadd.f32 %v4405, 1.0
  %v4414 = vrcp.pop %v4406
  %v4415 = vmul.f32 %v4406, %v4414
  %v4416 = vsub.f32 1.0, %v4415
  %v4417 = vmul.f32 %v4414, %v4416
  %v4418 = vadd.f32 %v4414, %v4417
  %vm4419 = vweird.f32 %v4406
  %vm4420 = vweird.f32 %v4414
  %vm4421 = vmor %vm4419, %vm4420
  %v4422 = vsel %vm4421, %v4414, %v4418
  %v4423 = vand.u32 2147483647, %v4406
  %vm4424 = vcmp.eq.f32.partialorder %v4423, 8.507059e+37
  %v4425 = vand.u32 %v4406, 2147483648
  %v4426 = vor.u32 1.1754944e-38, %v4425
  %v4427 = vsel %vm4424, %v4426, %v4422
  %v4428 = vmul.f32 1.0, %v4427
  %v4429 = vrcp.pop %v4407
  %v4430 = vmul.f32 %v4407, %v4429
  %v4431 = vsub.f32 1.0, %v4430
  %v4432 = vmul.f32 %v4429, %v4431
  %v4433 = vadd.f32 %v4429, %v4432
  %vm4434 = vweird.f32 %v4407
  %vm4435 = vweird.f32 %v4429
  %vm4436 = vmor %vm4434, %vm4435
  %v4437 = vsel %vm4436, %v4429, %v4433
  %v4438 = vand.u32 2147483647, %v4407
  %vm4439 = vcmp.eq.f32.partialorder %v4438, 8.507059e+37
  %v4440 = vand.u32 %v4407, 2147483648
  %v4441 = vor.u32 1.1754944e-38, %v4440
  %v4442 = vsel %vm4439, %v4441, %v4437
  %v4443 = vmul.f32 1.0, %v4442
  %v4444 = vrcp.pop %v4408
  %v4445 = vmul.f32 %v4408, %v4444
  %v4446 = vsub.f32 1.0, %v4445
  %v4447 = vmul.f32 %v4444, %v4446
  %v4448 = vadd.f32 %v4444, %v4447
  %vm4449 = vweird.f32 %v4408
  %vm4450 = vweird.f32 %v4444
  %vm4451 = vmor %vm4449, %vm4450
  %v4452 = vsel %vm4451, %v4444, %v4448
  %v4453 = vand.u32 2147483647, %v4408
  %vm4454 = vcmp.eq.f32.partialorder %v4453, 8.507059e+37
  %v4455 = vand.u32 %v4408, 2147483648
  %v4456 = vor.u32 1.1754944e-38, %v4455
  %v4457 = vsel %vm4454, %v4456, %v4452
  %v4458 = vmul.f32 1.0, %v4457
  %v4459 = vrcp.pop %v4409
  %v4460 = vmul.f32 %v4409, %v4459
  %v4461 = vsub.f32 1.0, %v4460
  %v4462 = vmul.f32 %v4459, %v4461
  %v4463 = vadd.f32 %v4459, %v4462
  %vm4464 = vweird.f32 %v4409
  %vm4465 = vweird.f32 %v4459
  %vm4466 = vmor %vm4464, %vm4465
  %v4467 = vsel %vm4466, %v4459, %v4463
  %v4468 = vand.u32 2147483647, %v4409
  %vm4469 = vcmp.eq.f32.partialorder %v4468, 8.507059e+37
  %v4470 = vand.u32 %v4409, 2147483648
  %v4471 = vor.u32 1.1754944e-38, %v4470
  %v4472 = vsel %vm4469, %v4471, %v4467
  %v4473 = vmul.f32 1.0, %v4472
  %v4474 = vrcp.pop %v4410
  %v4475 = vmul.f32 %v4410, %v4474
  %v4476 = vsub.f32 1.0, %v4475
  %v4477 = vmul.f32 %v4474, %v4476
  %v4478 = vadd.f32 %v4474, %v4477
  %vm4479 = vweird.f32 %v4410
  %vm4480 = vweird.f32 %v4474
  %vm4481 = vmor %vm4479, %vm4480
  %v4482 = vsel %vm4481, %v4474, %v4478
  %v4483 = vand.u32 2147483647, %v4410
  %vm4484 = vcmp.eq.f32.partialorder %v4483, 8.507059e+37
  %v4485 = vand.u32 %v4410, 2147483648
  %v4486 = vor.u32 1.1754944e-38, %v4485
  %v4487 = vsel %vm4484, %v4486, %v4482
  %v4488 = vmul.f32 1.0, %v4487
  %v4489 = vrcp.pop %v4411
  %v4490 = vmul.f32 %v4411, %v4489
  %v4491 = vsub.f32 1.0, %v4490
  %v4492 = vmul.f32 %v4489, %v4491
  %v4493 = vadd.f32 %v4489, %v4492
  %vm4494 = vweird.f32 %v4411
  %vm4495 = vweird.f32 %v4489
  %vm4496 = vmor %vm4494, %vm4495
  %v4497 = vsel %vm4496, %v4489, %v4493
  %v4498 = vand.u32 2147483647, %v4411
  %vm4499 = vcmp.eq.f32.partialorder %v4498, 8.507059e+37
  %v4500 = vand.u32 %v4411, 2147483648
  %v4501 = vor.u32 1.1754944e-38, %v4500
  %v4502 = vsel %vm4499, %v4501, %v4497
  %v4503 = vmul.f32 1.0, %v4502
  %v4504 = vrcp.pop %v4412
  %v4505 = vmul.f32 %v4412, %v4504
  %v4506 = vsub.f32 1.0, %v4505
  %v4507 = vmul.f32 %v4504, %v4506
  %v4508 = vadd.f32 %v4504, %v4507
  %vm4509 = vweird.f32 %v4412
  %vm4510 = vweird.f32 %v4504
  %vm4511 = vmor %vm4509, %vm4510
  %v4512 = vsel %vm4511, %v4504, %v4508
  %v4513 = vand.u32 2147483647, %v4412
  %vm4514 = vcmp.eq.f32.partialorder %v4513, 8.507059e+37
  %v4515 = vand.u32 %v4412, 2147483648
  %v4516 = vor.u32 1.1754944e-38, %v4515
  %v4517 = vsel %vm4514, %v4516, %v4512
  %v4518 = vmul.f32 1.0, %v4517
  %v4519 = vrcp.pop %v4413
  %v4520 = vmul.f32 %v4413, %v4519
  %v4521 = vsub.f32 1.0, %v4520
  %v4522 = vmul.f32 %v4519, %v4521
  %v4523 = vadd.f32 %v4519, %v4522
  %vm4524 = vweird.f32 %v4413
  %vm4525 = vweird.f32 %v4519
  %vm4526 = vmor %vm4524, %vm4525
  %v4527 = vsel %vm4526, %v4519, %v4523
  %v4528 = vand.u32 2147483647, %v4413
  %vm4529 = vcmp.eq.f32.partialorder %v4528, 8.507059e+37
  %v4530 = vand.u32 %v4413, 2147483648
  %v4531 = vor.u32 1.1754944e-38, %v4530
  %v4532 = vsel %vm4529, %v4531, %v4527
  %v4533 = vmul.f32 1.0, %v4532
  %v4535 = vrot.slane %v4158, 1
  %v4536 = vrot.slane %v4158, 2
  %v4537 = vrot.slane %v4158, 3
  %v4538 = vrot.slane %v4158, 4
  %v4539 = vrot.slane %v4158, 5
  %v4540 = vrot.slane %v4158, 6
  %v4541 = vrot.slane %v4158, 7
  %v4549 = vmul.f32 %v4229, %v4158
  %v4550 = vmul.f32 %v4244, %v4535
  %v4551 = vmul.f32 %v4259, %v4536
  %v4552 = vmul.f32 %v4274, %v4537
  %v4553 = vmul.f32 %v4289, %v4538
  %v4554 = vmul.f32 %v4304, %v4539
  %v4555 = vmul.f32 %v4319, %v4540
  %v4556 = vmul.f32 %v4334, %v4541
  %v4557 = vrot.slane %v4060, 2
  %v4558 = vrot.slane %v4062, 2
  %v4559 = vrot.slane %v4064, 2
  %v4560 = vrot.slane %v4066, 2
  %v4561 = vrot.slane %v4068, 2
  %v4562 = vrot.slane %v4070, 2
  %v4563 = vrot.slane %v4072, 2
  %v4564 = vrot.slane %v4074, 2
  %v4573 = vadd.f32 %v4557, %v4549
  %v4574 = vadd.f32 %v4558, %v4550
  %v4575 = vadd.f32 %v4559, %v4551
  %v4576 = vadd.f32 %v4560, %v4552
  %v4577 = vadd.f32 %v4561, %v4553
  %v4578 = vadd.f32 %v4562, %v4554
  %v4579 = vadd.f32 %v4563, %v4555
  %v4580 = vadd.f32 %v4564, %v4556
  %v4581 = vtanh.pop %v4573
  %v4582 = vtanh.pop %v4574
  %v4583 = vtanh.pop %v4575
  %v4584 = vtanh.pop %v4576
  %v4585 = vtanh.pop %v4577
  %v4586 = vtanh.pop %v4578
  %v4587 = vtanh.pop %v4579
  %v4588 = vtanh.pop %v4580
  %v4589 = vsub.f32 1.0, %v4428
  %v4590 = vsub.f32 1.0, %v4443
  %v4591 = vsub.f32 1.0, %v4458
  %v4592 = vsub.f32 1.0, %v4473
  %v4593 = vsub.f32 1.0, %v4488
  %v4594 = vsub.f32 1.0, %v4503
  %v4595 = vsub.f32 1.0, %v4518
  %v4596 = vsub.f32 1.0, %v4533
  %v4597 = vmul.f32 %v4589, %v4581
  %v4598 = vmul.f32 %v4590, %v4582
  %v4599 = vmul.f32 %v4591, %v4583
  %v4600 = vmul.f32 %v4592, %v4584
  %v4601 = vmul.f32 %v4593, %v4585
  %v4602 = vmul.f32 %v4594, %v4586
  %v4603 = vmul.f32 %v4595, %v4587
  %v4604 = vmul.f32 %v4596, %v4588
  %v4605 = vmul.f32 %v4428, %v4043
  %v4606 = vmul.f32 %v4443, %v4044
  %v4607 = vmul.f32 %v4458, %v4045
  %v4608 = vmul.f32 %v4473, %v4046
  %v4609 = vmul.f32 %v4488, %v4047
  %v4610 = vmul.f32 %v4503, %v4048
  %v4611 = vmul.f32 %v4518, %v4049
  %v4612 = vmul.f32 %v4533, %v4050
  %v4613 = vadd.f32 %v4597, %v4605
  %v4614 = vadd.f32 %v4598, %v4606
  %v4615 = vadd.f32 %v4599, %v4607
  %v4616 = vadd.f32 %v4600, %v4608
  %v4617 = vadd.f32 %v4601, %v4609
  %v4618 = vadd.f32 %v4602, %v4610
  %v4619 = vadd.f32 %v4603, %v4611
  %v4620 = vadd.f32 %v4604, %v4612
  %4621 = vst [vmem:[%s4 + $0x7] sm:$0x1] %v4613
  %4622 = vst [vmem:[%s4 + $0xf] sm:$0x1] %v4614
  %4623 = vst [vmem:[%s4 + $0x17] sm:$0x1] %v4615
  %4624 = vst [vmem:[%s4 + $0x1f] sm:$0x1] %v4616
  %4625 = vst [vmem:[%s4 + $0x27] sm:$0x1] %v4617
  %4626 = vst [vmem:[%s4 + $0x2f] sm:$0x1] %v4618
  %4627 = vst [vmem:[%s4 + $0x37] sm:$0x1] %v4619
  %4628 = vst [vmem:[%s4 + $0x3f] sm:$0x1] %v4620
  %4637 = vst [vmem:[#allocation1] ss:$9 sm:$0xff] %v4613
  %s4638 = scalar_lea.vmem [#allocation1], 1
  %4639 = vst [vmem:[%s4638] ss:$9 sm:$0xff] %v4614
  %s4640 = scalar_lea.vmem [#allocation1], 2
  %4641 = vst [vmem:[%s4640] ss:$9 sm:$0xff] %v4615
  %s4642 = scalar_lea.vmem [#allocation1], 3
  %4643 = vst [vmem:[%s4642] ss:$9 sm:$0xff] %v4616
  %s4644 = scalar_lea.vmem [#allocation1], 4
  %4645 = vst [vmem:[%s4644] ss:$9 sm:$0xff] %v4617
  %s4646 = scalar_lea.vmem [#allocation1], 5
  %4647 = vst [vmem:[%s4646] ss:$9 sm:$0xff] %v4618
  %s4648 = scalar_lea.vmem [#allocation1], 6
  %4649 = vst [vmem:[%s4648] ss:$9 sm:$0xff] %v4619
  %s4650 = scalar_lea.vmem [#allocation1], 7
  %4651 = vst [vmem:[%s4650] ss:$9 sm:$0xff] %v4620
  %v4652 = vld [vmem:[#allocation1] sm:$0xff]
  %4654 = vst [vmem:[#allocation2] sm:$0xff] %v4652
  // Predicated region
  $region22: #{gru4rec_forward.4} parent=0 // pred_check
    _
  $region23: #{gru4rec_forward.4} parent=0 // pred_check_branch
    %4656 = sbr.rel (0) target = $region25
  $region24: #{gru4rec_forward.4} parent=0 // pred_region
    _
  $region25: #{gru4rec_forward.4} parent=0 // pred_fallthru
    _
  // Predicated region
  $region26: #{gru4rec_forward.4} parent=0 // pred_check
    _
  $region27: #{gru4rec_forward.4} parent=0 // pred_check_branch
    %4658 = sbr.rel (0) target = $region29
  $region28: #{gru4rec_forward.4} parent=0 // pred_region
    _
  $region29: #{gru4rec_forward.4} parent=0 // pred_fallthru
    _

</llo_original>
